<compile_context>
chip_gen: v7x
topology: tpu7x:2x2x1
jax: 0.10.0
libtpu: 0.0.40
codegen_flags: <defaults>
</compile_context>

<pallas_src>
import functools

import jax
import jax.numpy as jnp
from jax.experimental import pallas as pl
from jax.experimental.pallas import tpu as pltpu

# Feature taps of the reference module (conv layers 0, 5, 10, 19, 28).
REQ_FEATURES = (0, 5, 10, 19, 28)

# torchvision vgg19.features[:29]: ("conv", Cin, Cout) | ("relu",) | ("pool",)
VGG19_LAYERS = [
    ("conv", 3, 64), ("relu",), ("conv", 64, 64), ("relu",), ("pool",),
    ("conv", 64, 128), ("relu",), ("conv", 128, 128), ("relu",), ("pool",),
    ("conv", 128, 256), ("relu",), ("conv", 256, 256), ("relu",),
    ("conv", 256, 256), ("relu",), ("conv", 256, 256), ("relu",), ("pool",),
    ("conv", 256, 512), ("relu",), ("conv", 512, 512), ("relu",),
    ("conv", 512, 512), ("relu",), ("conv", 512, 512), ("relu",), ("pool",),
    ("conv", 512, 512),
]


def _vmem_limit_bytes():
    # Per-generation VMEM budget: ~48 MiB on v7x (64 MiB physical), 96 MiB on
    # v5e/v6e (128 MiB physical). Falls back to a safe value if unavailable.
    try:
        cap = int(pltpu.get_tpu_info().vmem_capacity_bytes)
    except Exception:
        cap = 64 * 1024 * 1024
    return min(96 * 1024 * 1024, (cap * 3) // 4)


_VMEM_LIMIT = _vmem_limit_bytes()
_COUT_TILE = 256            # v6e/v7x MXU width; two 128-wide passes on v5e


# ------------------ conv 3x3 (pad 1, stride 1) + fused ReLU ------------------
def _conv3x3_kernel(x_ref, w_ref, b_ref, o_ref, xpad_ref, *, H, W, fuse_relu):
    """One batch element x one Cout tile.

    x_ref   : (1, H*W, Cin)       bf16  flattened-spatial input
    w_ref   : (3, 3, Cin, Ct)     bf16
    b_ref   : (1, Ct)             f32
    o_ref   : (1, H*W, Ct)        bf16
    xpad_ref: ((H+3)*(W+2), Cin)  bf16  VMEM scratch: zero-padded image stored
              flat row-major with row stride W+2 (one spare zero row keeps the
              shifted tap slices in bounds).
    """
    Wp = W + 2
    HP = H * Wp                        # flattened output length incl. junk cols
    ct = o_ref.shape[-1]

    # Build the zero-padded image in VMEM (no HBM pad round trip).
    xpad_ref[...] = jnp.zeros_like(xpad_ref)
    for h in range(H):
        xpad_ref[pl.ds((h + 1) * Wp + 1, W), :] = x_ref[0, pl.ds(h * W, W), :]

    # 9 big MXU matmuls: each tap is a contiguous (HP, Cin) slab of the padded
    # image.  acc[h*Wp + w] is the conv output at (h, w) for w < W; the two
    # trailing columns of every row are junk and dropped at write-back.
    acc = jnp.zeros((HP, ct), jnp.float32)
    for dy in range(3):
        for dx in range(3):
            patch = xpad_ref[pl.ds(dy * Wp + dx, HP), :]     # (HP, Cin) bf16
            acc = acc + jnp.dot(patch, w_ref[dy, dx],
                                preferred_element_type=jnp.float32)

    out = acc + b_ref[...]                                   # (HP, Ct) f32
    if fuse_relu:
        out = jnp.maximum(out, 0.0)                          # fused ReLU

    # Drop the 2 junk columns per row; store lane-dense rows.
    for h in range(H):
        row = out[h * Wp:h * Wp + W, :]                      # (W, Ct) f32
        o_ref[0, pl.ds(h * W, W), :] = row.astype(o_ref.dtype)


def conv3x3(x, w, b, *, fuse_relu):
    """x: (N, H, W, Cin) bf16, w: (3, 3, Cin, Cout) bf16, b: (Cout,) f32."""
    N, H, W, cin = x.shape
    cout = w.shape[-1]
    # Pad Cin up to a multiple of 8 (layer 0 has Cin=3) for sane vreg packing.
    if cin % 8:
        pc = 8 - cin % 8
        x = jnp.pad(x, ((0, 0), (0, 0), (0, 0), (0, pc)))
        w = jnp.pad(w, ((0, 0), (0, 0), (0, pc), (0, 0)))
        cin += pc
    xf = x.reshape(N, H * W, cin)           # free reshape, lane/sublane dense
    b2 = b.reshape(1, cout).astype(jnp.float32)
    ct = cout if cout <= _COUT_TILE else _COUT_TILE
    kernel = functools.partial(_conv3x3_kernel, H=H, W=W, fuse_relu=fuse_relu)
    out = pl.pallas_call(
        kernel,
        out_shape=jax.ShapeDtypeStruct((N, H * W, cout), jnp.bfloat16),
        grid=(N, cout // ct),
        in_specs=[
            pl.BlockSpec((1, H * W, cin), lambda n, c: (n, 0, 0)),
            pl.BlockSpec((3, 3, cin, ct), lambda n, c: (0, 0, 0, c)),
            pl.BlockSpec((1, ct), lambda n, c: (0, c)),
        ],
        out_specs=pl.BlockSpec((1, H * W, ct), lambda n, c: (n, 0, c)),
        scratch_shapes=[pltpu.VMEM(((H + 3) * (W + 2), cin), jnp.bfloat16)],
        compiler_params=pltpu.CompilerParams(
            dimension_semantics=("parallel", "parallel"),
            vmem_limit_bytes=_VMEM_LIMIT),
    )(xf, w, b2)
    return out.reshape(N, H, W, cout)


# --------------------------- max pool 2x2, stride 2 --------------------------
def _maxpool2_kernel(x_ref, o_ref, *, C):
    # x_ref: (1, Ho, 2, Wo, 2*C)  — row pair on axis 2, column pair folded into
    #                               the lane axis;  o_ref: (1, Ho, Wo, C).
    top = x_ref[0, :, 0, :, :]                               # (Ho, Wo, 2C)
    bot = x_ref[0, :, 1, :, :]
    m = jnp.maximum(top, bot)                                # vertical pair max
    o_ref[0] = jnp.maximum(m[:, :, :C], m[:, :, C:])         # horizontal pair


def maxpool2(x):
    N, H, W, C = x.shape
    Ho, Wo = H // 2, W // 2
    xr = x.reshape(N, Ho, 2, Wo, 2 * C)                      # free reshape
    return pl.pallas_call(
        functools.partial(_maxpool2_kernel, C=C),
        out_shape=jax.ShapeDtypeStruct((N, Ho, Wo, C), x.dtype),
        grid=(N,),
        in_specs=[pl.BlockSpec((1, Ho, 2, Wo, 2 * C),
                               lambda n: (n, 0, 0, 0, 0))],
        out_specs=pl.BlockSpec((1, Ho, Wo, C), lambda n: (n, 0, 0, 0)),
        compiler_params=pltpu.CompilerParams(
            dimension_semantics=("parallel",),
            vmem_limit_bytes=_VMEM_LIMIT),
    )(xr)


# ------------------------------ parameter setup ------------------------------
def init_params(key):
    # Deterministic synthetic weights with the exact VGG19 conv shapes; weights
    # are stored bf16 (MXU-native), biases f32.
    # TODO(synk): load real torchvision pretrained weights (no file/network IO
    # allowed in this script).
    params = []
    for layer in VGG19_LAYERS:
        if layer[0] == "conv":
            _, cin, cout = layer
            key, kw, kb = jax.random.split(key, 3)
            scale = 1.0 / jnp.sqrt(jnp.float32(cin * 9))
            w = (jax.random.normal(kw, (3, 3, cin, cout), jnp.float32)
                 * scale).astype(jnp.bfloat16)
            b = jax.random.normal(kb, (cout,), jnp.float32) * 0.01
            params.append((w, b))
    return params


# --------------------------------- forward -----------------------------------
def vgg_forward(x_nchw, params):
    """Replicates VGG.forward: vgg19.features[:29], collecting layers
    0, 5, 10, 19, 28.  torchvision uses ReLU(inplace=True), so the tensors the
    PyTorch module returns for taps 0/5/10/19 are post-ReLU (mutated in place
    by the ReLU that follows); tap 28 has no following ReLU in features[:29].
    ReLU is fused into the conv kernels, so the taps here match that."""
    x = jnp.transpose(x_nchw, (0, 2, 3, 1)).astype(jnp.bfloat16)  # NCHW -> NHWC
    feats = []
    ci = 0
    i = 0
    n_layers = len(VGG19_LAYERS)
    while i < n_layers:
        kind = VGG19_LAYERS[i][0]
        if kind == "conv":
            w, b = params[ci]
            ci += 1
            fused_relu = i + 1 < n_layers and VGG19_LAYERS[i + 1][0] == "relu"
            x = conv3x3(x, w, b, fuse_relu=fused_relu)
            if i in REQ_FEATURES:
                feats.append(jnp.transpose(x, (0, 3, 1, 2)).astype(jnp.float32))
            i += 2 if fused_relu else 1          # the following ReLU was fused
        elif kind == "relu":                     # only reached if not fused
            x = jnp.maximum(x, 0)
            i += 1
        else:                                    # pool
            x = maxpool2(x)
            i += 1
    return feats


if __name__ == "__main__":
    key = jax.random.PRNGKey(0)
    pkey, xkey = jax.random.split(key)
    params = init_params(pkey)

    # Small input consistent with the module: NCHW, 3 input channels (VGG).
    x = jax.random.normal(xkey, (2, 3, 16, 16), jnp.float32)

    feats = vgg_forward(x, params)
    feats = jax.block_until_ready(feats)

    expected = [(2, 64, 16, 16), (2, 128, 8, 8), (2, 256, 4, 4),
                (2, 512, 2, 2), (2, 512, 1, 1)]
    assert len(feats) == 5
    for f, s in zip(feats, expected):
        assert f.shape == s, (f.shape, s)
        assert bool(jnp.all(jnp.isfinite(f)))

    print("KERNEL_OK")
</pallas_src>

<mosaic_0001>
module attributes {stable_mosaic.version = 11 : i64} {
  func.func @_conv3x3_kernel(%arg0: i32, %arg1: i32, %arg2: memref<1x256x8xbf16, #tpu.memory_space<vmem>>, %arg3: memref<3x3x8x64xbf16, #tpu.memory_space<vmem>>, %arg4: memref<1x64xf32, #tpu.memory_space<vmem>>, %arg5: memref<1x256x64xbf16, #tpu.memory_space<vmem>>, %arg6: memref<342x8xbf16, #tpu.memory_space<vmem>>) attributes {dimension_semantics = [#tpu.dimension_semantics<parallel>, #tpu.dimension_semantics<parallel>], iteration_bounds = array<i64: 2, 1>, scalar_prefetch = 0 : i64, scratch_operands = 1 : i64, tpu.core_type = #tpu.core_type<tc>, window_params = [{transform_indices = @transform_0, window_bounds = array<i64: 1, 256, 8>}, {transform_indices = @transform_1, window_bounds = array<i64: 3, 3, 8, 64>}, {transform_indices = @transform_2, window_bounds = array<i64: 1, 64>}, {transform_indices = @transform_3, window_bounds = array<i64: 1, 256, 64>}]} {
    %cst = arith.constant 0.000000e+00 : bf16
    %0 = vector.broadcast %cst : bf16 to vector<342x8xbf16>
    %c0 = arith.constant 0 : index
    %c0_0 = arith.constant 0 : index
    %1 = vector.load %arg6[%c0, %c0_0] : memref<342x8xbf16, #tpu.memory_space<vmem>>, vector<342x8xbf16>
    tpu.vector_store %arg6[%c0, %c0_0], %0 {strides = array<i32>} : memref<342x8xbf16, #tpu.memory_space<vmem>>, vector<342x8xbf16>,
    %c0_1 = arith.constant 0 : index
    %c0_2 = arith.constant 0 : index
    %c0_3 = arith.constant 0 : index
    %2 = vector.load %arg2[%c0_1, %c0_2, %c0_3] : memref<1x256x8xbf16, #tpu.memory_space<vmem>>, vector<1x16x8xbf16>
    %3 = vector.shape_cast %2 : vector<1x16x8xbf16> to vector<16x8xbf16>
    %c19 = arith.constant 19 : index
    %c0_4 = arith.constant 0 : index
    %4 = vector.load %arg6[%c19, %c0_4] : memref<342x8xbf16, #tpu.memory_space<vmem>>, vector<16x8xbf16>
    tpu.vector_store %arg6[%c19, %c0_4], %3 {strides = array<i32>} : memref<342x8xbf16, #tpu.memory_space<vmem>>, vector<16x8xbf16>,
    %c0_5 = arith.constant 0 : index
    %c16 = arith.constant 16 : index
    %c0_6 = arith.constant 0 : index
    %5 = vector.load %arg2[%c0_5, %c16, %c0_6] : memref<1x256x8xbf16, #tpu.memory_space<vmem>>, vector<1x16x8xbf16>
    %6 = vector.shape_cast %5 : vector<1x16x8xbf16> to vector<16x8xbf16>
    %c37 = arith.constant 37 : index
    %c0_7 = arith.constant 0 : index
    %7 = vector.load %arg6[%c37, %c0_7] : memref<342x8xbf16, #tpu.memory_space<vmem>>, vector<16x8xbf16>
    tpu.vector_store %arg6[%c37, %c0_7], %6 {strides = array<i32>} : memref<342x8xbf16, #tpu.memory_space<vmem>>, vector<16x8xbf16>,
    %c0_8 = arith.constant 0 : index
    %c32 = arith.constant 32 : index
    %c0_9 = arith.constant 0 : index
    %8 = vector.load %arg2[%c0_8, %c32, %c0_9] : memref<1x256x8xbf16, #tpu.memory_space<vmem>>, vector<1x16x8xbf16>
    %9 = vector.shape_cast %8 : vector<1x16x8xbf16> to vector<16x8xbf16>
    %c55 = arith.constant 55 : index
    %c0_10 = arith.constant 0 : index
    %10 = vector.load %arg6[%c55, %c0_10] : memref<342x8xbf16, #tpu.memory_space<vmem>>, vector<16x8xbf16>
    tpu.vector_store %arg6[%c55, %c0_10], %9 {strides = array<i32>} : memref<342x8xbf16, #tpu.memory_space<vmem>>, vector<16x8xbf16>,
    %c0_11 = arith.constant 0 : index
    %c48 = arith.constant 48 : index
    %c0_12 = arith.constant 0 : index
    %11 = vector.load %arg2[%c0_11, %c48, %c0_12] : memref<1x256x8xbf16, #tpu.memory_space<vmem>>, vector<1x16x8xbf16>
    %12 = vector.shape_cast %11 : vector<1x16x8xbf16> to vector<16x8xbf16>
    %c73 = arith.constant 73 : index
    %c0_13 = arith.constant 0 : index
    %13 = vector.load %arg6[%c73, %c0_13] : memref<342x8xbf16, #tpu.memory_space<vmem>>, vector<16x8xbf16>
    tpu.vector_store %arg6[%c73, %c0_13], %12 {strides = array<i32>} : memref<342x8xbf16, #tpu.memory_space<vmem>>, vector<16x8xbf16>,
    %c0_14 = arith.constant 0 : index
    %c64 = arith.constant 64 : index
    %c0_15 = arith.constant 0 : index
    %14 = vector.load %arg2[%c0_14, %c64, %c0_15] : memref<1x256x8xbf16, #tpu.memory_space<vmem>>, vector<1x16x8xbf16>
    %15 = vector.shape_cast %14 : vector<1x16x8xbf16> to vector<16x8xbf16>
    %c91 = arith.constant 91 : index
    %c0_16 = arith.constant 0 : index
    %16 = vector.load %arg6[%c91, %c0_16] : memref<342x8xbf16, #tpu.memory_space<vmem>>, vector<16x8xbf16>
    tpu.vector_store %arg6[%c91, %c0_16], %15 {strides = array<i32>} : memref<342x8xbf16, #tpu.memory_space<vmem>>, vector<16x8xbf16>,
    %c0_17 = arith.constant 0 : index
    %c80 = arith.constant 80 : index
    %c0_18 = arith.constant 0 : index
    %17 = vector.load %arg2[%c0_17, %c80, %c0_18] : memref<1x256x8xbf16, #tpu.memory_space<vmem>>, vector<1x16x8xbf16>
    %18 = vector.shape_cast %17 : vector<1x16x8xbf16> to vector<16x8xbf16>
    %c109 = arith.constant 109 : index
    %c0_19 = arith.constant 0 : index
    %19 = vector.load %arg6[%c109, %c0_19] : memref<342x8xbf16, #tpu.memory_space<vmem>>, vector<16x8xbf16>
    tpu.vector_store %arg6[%c109, %c0_19], %18 {strides = array<i32>} : memref<342x8xbf16, #tpu.memory_space<vmem>>, vector<16x8xbf16>,
    %c0_20 = arith.constant 0 : index
    %c96 = arith.constant 96 : index
    %c0_21 = arith.constant 0 : index
    %20 = vector.load %arg2[%c0_20, %c96, %c0_21] : memref<1x256x8xbf16, #tpu.memory_space<vmem>>, vector<1x16x8xbf16>
    %21 = vector.shape_cast %20 : vector<1x16x8xbf16> to vector<16x8xbf16>
    %c127 = arith.constant 127 : index
    %c0_22 = arith.constant 0 : index
    %22 = vector.load %arg6[%c127, %c0_22] : memref<342x8xbf16, #tpu.memory_space<vmem>>, vector<16x8xbf16>
    tpu.vector_store %arg6[%c127, %c0_22], %21 {strides = array<i32>} : memref<342x8xbf16, #tpu.memory_space<vmem>>, vector<16x8xbf16>,
    %c0_23 = arith.constant 0 : index
    %c112 = arith.constant 112 : index
    %c0_24 = arith.constant 0 : index
    %23 = vector.load %arg2[%c0_23, %c112, %c0_24] : memref<1x256x8xbf16, #tpu.memory_space<vmem>>, vector<1x16x8xbf16>
    %24 = vector.shape_cast %23 : vector<1x16x8xbf16> to vector<16x8xbf16>
    %c145 = arith.constant 145 : index
    %c0_25 = arith.constant 0 : index
    %25 = vector.load %arg6[%c145, %c0_25] : memref<342x8xbf16, #tpu.memory_space<vmem>>, vector<16x8xbf16>
    tpu.vector_store %arg6[%c145, %c0_25], %24 {strides = array<i32>} : memref<342x8xbf16, #tpu.memory_space<vmem>>, vector<16x8xbf16>,
    %c0_26 = arith.constant 0 : index
    %c128 = arith.constant 128 : index
    %c0_27 = arith.constant 0 : index
    %26 = vector.load %arg2[%c0_26, %c128, %c0_27] : memref<1x256x8xbf16, #tpu.memory_space<vmem>>, vector<1x16x8xbf16>
    %27 = vector.shape_cast %26 : vector<1x16x8xbf16> to vector<16x8xbf16>
    %c163 = arith.constant 163 : index
    %c0_28 = arith.constant 0 : index
    %28 = vector.load %arg6[%c163, %c0_28] : memref<342x8xbf16, #tpu.memory_space<vmem>>, vector<16x8xbf16>
    tpu.vector_store %arg6[%c163, %c0_28], %27 {strides = array<i32>} : memref<342x8xbf16, #tpu.memory_space<vmem>>, vector<16x8xbf16>,
    %c0_29 = arith.constant 0 : index
    %c144 = arith.constant 144 : index
    %c0_30 = arith.constant 0 : index
    %29 = vector.load %arg2[%c0_29, %c144, %c0_30] : memref<1x256x8xbf16, #tpu.memory_space<vmem>>, vector<1x16x8xbf16>
    %30 = vector.shape_cast %29 : vector<1x16x8xbf16> to vector<16x8xbf16>
    %c181 = arith.constant 181 : index
    %c0_31 = arith.constant 0 : index
    %31 = vector.load %arg6[%c181, %c0_31] : memref<342x8xbf16, #tpu.memory_space<vmem>>, vector<16x8xbf16>
    tpu.vector_store %arg6[%c181, %c0_31], %30 {strides = array<i32>} : memref<342x8xbf16, #tpu.memory_space<vmem>>, vector<16x8xbf16>,
    %c0_32 = arith.constant 0 : index
    %c160 = arith.constant 160 : index
    %c0_33 = arith.constant 0 : index
    %32 = vector.load %arg2[%c0_32, %c160, %c0_33] : memref<1x256x8xbf16, #tpu.memory_space<vmem>>, vector<1x16x8xbf16>
    %33 = vector.shape_cast %32 : vector<1x16x8xbf16> to vector<16x8xbf16>
    %c199 = arith.constant 199 : index
    %c0_34 = arith.constant 0 : index
    %34 = vector.load %arg6[%c199, %c0_34] : memref<342x8xbf16, #tpu.memory_space<vmem>>, vector<16x8xbf16>
    tpu.vector_store %arg6[%c199, %c0_34], %33 {strides = array<i32>} : memref<342x8xbf16, #tpu.memory_space<vmem>>, vector<16x8xbf16>,
    %c0_35 = arith.constant 0 : index
    %c176 = arith.constant 176 : index
    %c0_36 = arith.constant 0 : index
    %35 = vector.load %arg2[%c0_35, %c176, %c0_36] : memref<1x256x8xbf16, #tpu.memory_space<vmem>>, vector<1x16x8xbf16>
    %36 = vector.shape_cast %35 : vector<1x16x8xbf16> to vector<16x8xbf16>
    %c217 = arith.constant 217 : index
    %c0_37 = arith.constant 0 : index
    %37 = vector.load %arg6[%c217, %c0_37] : memref<342x8xbf16, #tpu.memory_space<vmem>>, vector<16x8xbf16>
    tpu.vector_store %arg6[%c217, %c0_37], %36 {strides = array<i32>} : memref<342x8xbf16, #tpu.memory_space<vmem>>, vector<16x8xbf16>,
    %c0_38 = arith.constant 0 : index
    %c192 = arith.constant 192 : index
    %c0_39 = arith.constant 0 : index
    %38 = vector.load %arg2[%c0_38, %c192, %c0_39] : memref<1x256x8xbf16, #tpu.memory_space<vmem>>, vector<1x16x8xbf16>
    %39 = vector.shape_cast %38 : vector<1x16x8xbf16> to vector<16x8xbf16>
    %c235 = arith.constant 235 : index
    %c0_40 = arith.constant 0 : index
    %40 = vector.load %arg6[%c235, %c0_40] : memref<342x8xbf16, #tpu.memory_space<vmem>>, vector<16x8xbf16>
    tpu.vector_store %arg6[%c235, %c0_40], %39 {strides = array<i32>} : memref<342x8xbf16, #tpu.memory_space<vmem>>, vector<16x8xbf16>,
    %c0_41 = arith.constant 0 : index
    %c208 = arith.constant 208 : index
    %c0_42 = arith.constant 0 : index
    %41 = vector.load %arg2[%c0_41, %c208, %c0_42] : memref<1x256x8xbf16, #tpu.memory_space<vmem>>, vector<1x16x8xbf16>
    %42 = vector.shape_cast %41 : vector<1x16x8xbf16> to vector<16x8xbf16>
    %c253 = arith.constant 253 : index
    %c0_43 = arith.constant 0 : index
    %43 = vector.load %arg6[%c253, %c0_43] : memref<342x8xbf16, #tpu.memory_space<vmem>>, vector<16x8xbf16>
    tpu.vector_store %arg6[%c253, %c0_43], %42 {strides = array<i32>} : memref<342x8xbf16, #tpu.memory_space<vmem>>, vector<16x8xbf16>,
    %c0_44 = arith.constant 0 : index
    %c224 = arith.constant 224 : index
    %c0_45 = arith.constant 0 : index
    %44 = vector.load %arg2[%c0_44, %c224, %c0_45] : memref<1x256x8xbf16, #tpu.memory_space<vmem>>, vector<1x16x8xbf16>
    %45 = vector.shape_cast %44 : vector<1x16x8xbf16> to vector<16x8xbf16>
    %c271 = arith.constant 271 : index
    %c0_46 = arith.constant 0 : index
    %46 = vector.load %arg6[%c271, %c0_46] : memref<342x8xbf16, #tpu.memory_space<vmem>>, vector<16x8xbf16>
    tpu.vector_store %arg6[%c271, %c0_46], %45 {strides = array<i32>} : memref<342x8xbf16, #tpu.memory_space<vmem>>, vector<16x8xbf16>,
    %c0_47 = arith.constant 0 : index
    %c240 = arith.constant 240 : index
    %c0_48 = arith.constant 0 : index
    %47 = vector.load %arg2[%c0_47, %c240, %c0_48] : memref<1x256x8xbf16, #tpu.memory_space<vmem>>, vector<1x16x8xbf16>
    %48 = vector.shape_cast %47 : vector<1x16x8xbf16> to vector<16x8xbf16>
    %c289 = arith.constant 289 : index
    %c0_49 = arith.constant 0 : index
    %49 = vector.load %arg6[%c289, %c0_49] : memref<342x8xbf16, #tpu.memory_space<vmem>>, vector<16x8xbf16>
    tpu.vector_store %arg6[%c289, %c0_49], %48 {strides = array<i32>} : memref<342x8xbf16, #tpu.memory_space<vmem>>, vector<16x8xbf16>,
    %cst_50 = arith.constant 0.000000e+00 : f32
    %50 = vector.broadcast %cst_50 : f32 to vector<288x64xf32>
    %c0_51 = arith.constant 0 : index
    %c0_52 = arith.constant 0 : index
    %51 = vector.load %arg6[%c0_51, %c0_52] : memref<342x8xbf16, #tpu.memory_space<vmem>>, vector<288x8xbf16>
    %c0_53 = arith.constant 0 : index
    %c0_54 = arith.constant 0 : index
    %c0_55 = arith.constant 0 : index
    %c0_56 = arith.constant 0 : index
    %52 = vector.load %arg3[%c0_53, %c0_54, %c0_55, %c0_56] : memref<3x3x8x64xbf16, #tpu.memory_space<vmem>>, vector<1x1x8x64xbf16>
    %53 = vector.shape_cast %52 : vector<1x1x8x64xbf16> to vector<8x64xbf16>
    %cst_57 = arith.constant dense<0.000000e+00> : vector<288x64xf32>
    %54 = tpu.matmul %51, %53, %cst_57 {dimension_numbers = #tpu.dot_dimension_numbers<[1], [0], [0], [1], [0, 0, 1, 1], [], []>} : vector<288x8xbf16>, vector<8x64xbf16>, vector<288x64xf32> -> vector<288x64xf32>
    %55 = arith.addf %50, %54 : vector<288x64xf32>
    %c1 = arith.constant 1 : index
    %c0_58 = arith.constant 0 : index
    %56 = vector.load %arg6[%c1, %c0_58] : memref<342x8xbf16, #tpu.memory_space<vmem>>, vector<288x8xbf16>
    %c0_59 = arith.constant 0 : index
    %c1_60 = arith.constant 1 : index
    %c0_61 = arith.constant 0 : index
    %c0_62 = arith.constant 0 : index
    %57 = vector.load %arg3[%c0_59, %c1_60, %c0_61, %c0_62] : memref<3x3x8x64xbf16, #tpu.memory_space<vmem>>, vector<1x1x8x64xbf16>
    %58 = vector.shape_cast %57 : vector<1x1x8x64xbf16> to vector<8x64xbf16>
    %cst_63 = arith.constant dense<0.000000e+00> : vector<288x64xf32>
    %59 = tpu.matmul %56, %58, %cst_63 {dimension_numbers = #tpu.dot_dimension_numbers<[1], [0], [0], [1], [0, 0, 1, 1], [], []>} : vector<288x8xbf16>, vector<8x64xbf16>, vector<288x64xf32> -> vector<288x64xf32>
    %60 = arith.addf %55, %59 : vector<288x64xf32>
    %c2 = arith.constant 2 : index
    %c0_64 = arith.constant 0 : index
    %61 = vector.load %arg6[%c2, %c0_64] : memref<342x8xbf16, #tpu.memory_space<vmem>>, vector<288x8xbf16>
    %c0_65 = arith.constant 0 : index
    %c2_66 = arith.constant 2 : index
    %c0_67 = arith.constant 0 : index
    %c0_68 = arith.constant 0 : index
    %62 = vector.load %arg3[%c0_65, %c2_66, %c0_67, %c0_68] : memref<3x3x8x64xbf16, #tpu.memory_space<vmem>>, vector<1x1x8x64xbf16>
    %63 = vector.shape_cast %62 : vector<1x1x8x64xbf16> to vector<8x64xbf16>
    %cst_69 = arith.constant dense<0.000000e+00> : vector<288x64xf32>
    %64 = tpu.matmul %61, %63, %cst_69 {dimension_numbers = #tpu.dot_dimension_numbers<[1], [0], [0], [1], [0, 0, 1, 1], [], []>} : vector<288x8xbf16>, vector<8x64xbf16>, vector<288x64xf32> -> vector<288x64xf32>
    %65 = arith.addf %60, %64 : vector<288x64xf32>
    %c18 = arith.constant 18 : index
    %c0_70 = arith.constant 0 : index
    %66 = vector.load %arg6[%c18, %c0_70] : memref<342x8xbf16, #tpu.memory_space<vmem>>, vector<288x8xbf16>
    %c1_71 = arith.constant 1 : index
    %c0_72 = arith.constant 0 : index
    %c0_73 = arith.constant 0 : index
    %c0_74 = arith.constant 0 : index
    %67 = vector.load %arg3[%c1_71, %c0_72, %c0_73, %c0_74] : memref<3x3x8x64xbf16, #tpu.memory_space<vmem>>, vector<1x1x8x64xbf16>
    %68 = vector.shape_cast %67 : vector<1x1x8x64xbf16> to vector<8x64xbf16>
    %cst_75 = arith.constant dense<0.000000e+00> : vector<288x64xf32>
    %69 = tpu.matmul %66, %68, %cst_75 {dimension_numbers = #tpu.dot_dimension_numbers<[1], [0], [0], [1], [0, 0, 1, 1], [], []>} : vector<288x8xbf16>, vector<8x64xbf16>, vector<288x64xf32> -> vector<288x64xf32>
    %70 = arith.addf %65, %69 : vector<288x64xf32>
    %c19_76 = arith.constant 19 : index
    %c0_77 = arith.constant 0 : index
    %71 = vector.load %arg6[%c19_76, %c0_77] : memref<342x8xbf16, #tpu.memory_space<vmem>>, vector<288x8xbf16>
    %c1_78 = arith.constant 1 : index
    %c1_79 = arith.constant 1 : index
    %c0_80 = arith.constant 0 : index
    %c0_81 = arith.constant 0 : index
    %72 = vector.load %arg3[%c1_78, %c1_79, %c0_80, %c0_81] : memref<3x3x8x64xbf16, #tpu.memory_space<vmem>>, vector<1x1x8x64xbf16>
    %73 = vector.shape_cast %72 : vector<1x1x8x64xbf16> to vector<8x64xbf16>
    %cst_82 = arith.constant dense<0.000000e+00> : vector<288x64xf32>
    %74 = tpu.matmul %71, %73, %cst_82 {dimension_numbers = #tpu.dot_dimension_numbers<[1], [0], [0], [1], [0, 0, 1, 1], [], []>} : vector<288x8xbf16>, vector<8x64xbf16>, vector<288x64xf32> -> vector<288x64xf32>
    %75 = arith.addf %70, %74 : vector<288x64xf32>
    %c20 = arith.constant 20 : index
    %c0_83 = arith.constant 0 : index
    %76 = vector.load %arg6[%c20, %c0_83] : memref<342x8xbf16, #tpu.memory_space<vmem>>, vector<288x8xbf16>
    %c1_84 = arith.constant 1 : index
    %c2_85 = arith.constant 2 : index
    %c0_86 = arith.constant 0 : index
    %c0_87 = arith.constant 0 : index
    %77 = vector.load %arg3[%c1_84, %c2_85, %c0_86, %c0_87] : memref<3x3x8x64xbf16, #tpu.memory_space<vmem>>, vector<1x1x8x64xbf16>
    %78 = vector.shape_cast %77 : vector<1x1x8x64xbf16> to vector<8x64xbf16>
    %cst_88 = arith.constant dense<0.000000e+00> : vector<288x64xf32>
    %79 = tpu.matmul %76, %78, %cst_88 {dimension_numbers = #tpu.dot_dimension_numbers<[1], [0], [0], [1], [0, 0, 1, 1], [], []>} : vector<288x8xbf16>, vector<8x64xbf16>, vector<288x64xf32> -> vector<288x64xf32>
    %80 = arith.addf %75, %79 : vector<288x64xf32>
    %c36 = arith.constant 36 : index
    %c0_89 = arith.constant 0 : index
    %81 = vector.load %arg6[%c36, %c0_89] : memref<342x8xbf16, #tpu.memory_space<vmem>>, vector<288x8xbf16>
    %c2_90 = arith.constant 2 : index
    %c0_91 = arith.constant 0 : index
    %c0_92 = arith.constant 0 : index
    %c0_93 = arith.constant 0 : index
    %82 = vector.load %arg3[%c2_90, %c0_91, %c0_92, %c0_93] : memref<3x3x8x64xbf16, #tpu.memory_space<vmem>>, vector<1x1x8x64xbf16>
    %83 = vector.shape_cast %82 : vector<1x1x8x64xbf16> to vector<8x64xbf16>
    %cst_94 = arith.constant dense<0.000000e+00> : vector<288x64xf32>
    %84 = tpu.matmul %81, %83, %cst_94 {dimension_numbers = #tpu.dot_dimension_numbers<[1], [0], [0], [1], [0, 0, 1, 1], [], []>} : vector<288x8xbf16>, vector<8x64xbf16>, vector<288x64xf32> -> vector<288x64xf32>
    %85 = arith.addf %80, %84 : vector<288x64xf32>
    %c37_95 = arith.constant 37 : index
    %c0_96 = arith.constant 0 : index
    %86 = vector.load %arg6[%c37_95, %c0_96] : memref<342x8xbf16, #tpu.memory_space<vmem>>, vector<288x8xbf16>
    %c2_97 = arith.constant 2 : index
    %c1_98 = arith.constant 1 : index
    %c0_99 = arith.constant 0 : index
    %c0_100 = arith.constant 0 : index
    %87 = vector.load %arg3[%c2_97, %c1_98, %c0_99, %c0_100] : memref<3x3x8x64xbf16, #tpu.memory_space<vmem>>, vector<1x1x8x64xbf16>
    %88 = vector.shape_cast %87 : vector<1x1x8x64xbf16> to vector<8x64xbf16>
    %cst_101 = arith.constant dense<0.000000e+00> : vector<288x64xf32>
    %89 = tpu.matmul %86, %88, %cst_101 {dimension_numbers = #tpu.dot_dimension_numbers<[1], [0], [0], [1], [0, 0, 1, 1], [], []>} : vector<288x8xbf16>, vector<8x64xbf16>, vector<288x64xf32> -> vector<288x64xf32>
    %90 = arith.addf %85, %89 : vector<288x64xf32>
    %c38 = arith.constant 38 : index
    %c0_102 = arith.constant 0 : index
    %91 = vector.load %arg6[%c38, %c0_102] : memref<342x8xbf16, #tpu.memory_space<vmem>>, vector<288x8xbf16>
    %c2_103 = arith.constant 2 : index
    %c2_104 = arith.constant 2 : index
    %c0_105 = arith.constant 0 : index
    %c0_106 = arith.constant 0 : index
    %92 = vector.load %arg3[%c2_103, %c2_104, %c0_105, %c0_106] : memref<3x3x8x64xbf16, #tpu.memory_space<vmem>>, vector<1x1x8x64xbf16>
    %93 = vector.shape_cast %92 : vector<1x1x8x64xbf16> to vector<8x64xbf16>
    %cst_107 = arith.constant dense<0.000000e+00> : vector<288x64xf32>
    %94 = tpu.matmul %91, %93, %cst_107 {dimension_numbers = #tpu.dot_dimension_numbers<[1], [0], [0], [1], [0, 0, 1, 1], [], []>} : vector<288x8xbf16>, vector<8x64xbf16>, vector<288x64xf32> -> vector<288x64xf32>
    %95 = arith.addf %90, %94 : vector<288x64xf32>
    %c0_108 = arith.constant 0 : index
    %c0_109 = arith.constant 0 : index
    %96 = vector.load %arg4[%c0_108, %c0_109] : memref<1x64xf32, #tpu.memory_space<vmem>>, vector<1x64xf32>
    %97 = vector.broadcast %96 : vector<1x64xf32> to vector<288x64xf32>
    %98 = arith.addf %95, %97 : vector<288x64xf32>
    %cst_110 = arith.constant 0.000000e+00 : f32
    %99 = vector.broadcast %cst_110 : f32 to vector<288x64xf32>
    %100 = arith.maximumf %98, %99 : vector<288x64xf32>
    %101 = vector.extract_strided_slice %100 {offsets = [0, 0], sizes = [16, 64], strides = [1, 1]} : vector<288x64xf32> to vector<16x64xf32>
    %102 = arith.truncf %101 : vector<16x64xf32> to vector<16x64xbf16>
    %c0_111 = arith.constant 0 : index
    %c0_112 = arith.constant 0 : index
    %c0_113 = arith.constant 0 : index
    %103 = vector.load %arg5[%c0_111, %c0_112, %c0_113] : memref<1x256x64xbf16, #tpu.memory_space<vmem>>, vector<1x16x64xbf16>
    %104 = vector.shape_cast %103 : vector<1x16x64xbf16> to vector<16x64xbf16>
    %105 = vector.shape_cast %102 : vector<16x64xbf16> to vector<1x16x64xbf16>
    tpu.vector_store %arg5[%c0_111, %c0_112, %c0_113], %105 {strides = array<i32>} : memref<1x256x64xbf16, #tpu.memory_space<vmem>>, vector<1x16x64xbf16>,
    %106 = vector.extract_strided_slice %100 {offsets = [18, 0], sizes = [16, 64], strides = [1, 1]} : vector<288x64xf32> to vector<16x64xf32>
    %107 = arith.truncf %106 : vector<16x64xf32> to vector<16x64xbf16>
    %c0_114 = arith.constant 0 : index
    %c16_115 = arith.constant 16 : index
    %c0_116 = arith.constant 0 : index
    %108 = vector.load %arg5[%c0_114, %c16_115, %c0_116] : memref<1x256x64xbf16, #tpu.memory_space<vmem>>, vector<1x16x64xbf16>
    %109 = vector.shape_cast %108 : vector<1x16x64xbf16> to vector<16x64xbf16>
    %110 = vector.shape_cast %107 : vector<16x64xbf16> to vector<1x16x64xbf16>
    tpu.vector_store %arg5[%c0_114, %c16_115, %c0_116], %110 {strides = array<i32>} : memref<1x256x64xbf16, #tpu.memory_space<vmem>>, vector<1x16x64xbf16>,
    %111 = vector.extract_strided_slice %100 {offsets = [36, 0], sizes = [16, 64], strides = [1, 1]} : vector<288x64xf32> to vector<16x64xf32>
    %112 = arith.truncf %111 : vector<16x64xf32> to vector<16x64xbf16>
    %c0_117 = arith.constant 0 : index
    %c32_118 = arith.constant 32 : index
    %c0_119 = arith.constant 0 : index
    %113 = vector.load %arg5[%c0_117, %c32_118, %c0_119] : memref<1x256x64xbf16, #tpu.memory_space<vmem>>, vector<1x16x64xbf16>
    %114 = vector.shape_cast %113 : vector<1x16x64xbf16> to vector<16x64xbf16>
    %115 = vector.shape_cast %112 : vector<16x64xbf16> to vector<1x16x64xbf16>
    tpu.vector_store %arg5[%c0_117, %c32_118, %c0_119], %115 {strides = array<i32>} : memref<1x256x64xbf16, #tpu.memory_space<vmem>>, vector<1x16x64xbf16>,
    %116 = vector.extract_strided_slice %100 {offsets = [54, 0], sizes = [16, 64], strides = [1, 1]} : vector<288x64xf32> to vector<16x64xf32>
    %117 = arith.truncf %116 : vector<16x64xf32> to vector<16x64xbf16>
    %c0_120 = arith.constant 0 : index
    %c48_121 = arith.constant 48 : index
    %c0_122 = arith.constant 0 : index
    %118 = vector.load %arg5[%c0_120, %c48_121, %c0_122] : memref<1x256x64xbf16, #tpu.memory_space<vmem>>, vector<1x16x64xbf16>
    %119 = vector.shape_cast %118 : vector<1x16x64xbf16> to vector<16x64xbf16>
    %120 = vector.shape_cast %117 : vector<16x64xbf16> to vector<1x16x64xbf16>
    tpu.vector_store %arg5[%c0_120, %c48_121, %c0_122], %120 {strides = array<i32>} : memref<1x256x64xbf16, #tpu.memory_space<vmem>>, vector<1x16x64xbf16>,
    %121 = vector.extract_strided_slice %100 {offsets = [72, 0], sizes = [16, 64], strides = [1, 1]} : vector<288x64xf32> to vector<16x64xf32>
    %122 = arith.truncf %121 : vector<16x64xf32> to vector<16x64xbf16>
    %c0_123 = arith.constant 0 : index
    %c64_124 = arith.constant 64 : index
    %c0_125 = arith.constant 0 : index
    %123 = vector.load %arg5[%c0_123, %c64_124, %c0_125] : memref<1x256x64xbf16, #tpu.memory_space<vmem>>, vector<1x16x64xbf16>
    %124 = vector.shape_cast %123 : vector<1x16x64xbf16> to vector<16x64xbf16>
    %125 = vector.shape_cast %122 : vector<16x64xbf16> to vector<1x16x64xbf16>
    tpu.vector_store %arg5[%c0_123, %c64_124, %c0_125], %125 {strides = array<i32>} : memref<1x256x64xbf16, #tpu.memory_space<vmem>>, vector<1x16x64xbf16>,
    %126 = vector.extract_strided_slice %100 {offsets = [90, 0], sizes = [16, 64], strides = [1, 1]} : vector<288x64xf32> to vector<16x64xf32>
    %127 = arith.truncf %126 : vector<16x64xf32> to vector<16x64xbf16>
    %c0_126 = arith.constant 0 : index
    %c80_127 = arith.constant 80 : index
    %c0_128 = arith.constant 0 : index
    %128 = vector.load %arg5[%c0_126, %c80_127, %c0_128] : memref<1x256x64xbf16, #tpu.memory_space<vmem>>, vector<1x16x64xbf16>
    %129 = vector.shape_cast %128 : vector<1x16x64xbf16> to vector<16x64xbf16>
    %130 = vector.shape_cast %127 : vector<16x64xbf16> to vector<1x16x64xbf16>
    tpu.vector_store %arg5[%c0_126, %c80_127, %c0_128], %130 {strides = array<i32>} : memref<1x256x64xbf16, #tpu.memory_space<vmem>>, vector<1x16x64xbf16>,
    %131 = vector.extract_strided_slice %100 {offsets = [108, 0], sizes = [16, 64], strides = [1, 1]} : vector<288x64xf32> to vector<16x64xf32>
    %132 = arith.truncf %131 : vector<16x64xf32> to vector<16x64xbf16>
    %c0_129 = arith.constant 0 : index
    %c96_130 = arith.constant 96 : index
    %c0_131 = arith.constant 0 : index
    %133 = vector.load %arg5[%c0_129, %c96_130, %c0_131] : memref<1x256x64xbf16, #tpu.memory_space<vmem>>, vector<1x16x64xbf16>
    %134 = vector.shape_cast %133 : vector<1x16x64xbf16> to vector<16x64xbf16>
    %135 = vector.shape_cast %132 : vector<16x64xbf16> to vector<1x16x64xbf16>
    tpu.vector_store %arg5[%c0_129, %c96_130, %c0_131], %135 {strides = array<i32>} : memref<1x256x64xbf16, #tpu.memory_space<vmem>>, vector<1x16x64xbf16>,
    %136 = vector.extract_strided_slice %100 {offsets = [126, 0], sizes = [16, 64], strides = [1, 1]} : vector<288x64xf32> to vector<16x64xf32>
    %137 = arith.truncf %136 : vector<16x64xf32> to vector<16x64xbf16>
    %c0_132 = arith.constant 0 : index
    %c112_133 = arith.constant 112 : index
    %c0_134 = arith.constant 0 : index
    %138 = vector.load %arg5[%c0_132, %c112_133, %c0_134] : memref<1x256x64xbf16, #tpu.memory_space<vmem>>, vector<1x16x64xbf16>
    %139 = vector.shape_cast %138 : vector<1x16x64xbf16> to vector<16x64xbf16>
    %140 = vector.shape_cast %137 : vector<16x64xbf16> to vector<1x16x64xbf16>
    tpu.vector_store %arg5[%c0_132, %c112_133, %c0_134], %140 {strides = array<i32>} : memref<1x256x64xbf16, #tpu.memory_space<vmem>>, vector<1x16x64xbf16>,
    %141 = vector.extract_strided_slice %100 {offsets = [144, 0], sizes = [16, 64], strides = [1, 1]} : vector<288x64xf32> to vector<16x64xf32>
    %142 = arith.truncf %141 : vector<16x64xf32> to vector<16x64xbf16>
    %c0_135 = arith.constant 0 : index
    %c128_136 = arith.constant 128 : index
    %c0_137 = arith.constant 0 : index
    %143 = vector.load %arg5[%c0_135, %c128_136, %c0_137] : memref<1x256x64xbf16, #tpu.memory_space<vmem>>, vector<1x16x64xbf16>
    %144 = vector.shape_cast %143 : vector<1x16x64xbf16> to vector<16x64xbf16>
    %145 = vector.shape_cast %142 : vector<16x64xbf16> to vector<1x16x64xbf16>
    tpu.vector_store %arg5[%c0_135, %c128_136, %c0_137], %145 {strides = array<i32>} : memref<1x256x64xbf16, #tpu.memory_space<vmem>>, vector<1x16x64xbf16>,
    %146 = vector.extract_strided_slice %100 {offsets = [162, 0], sizes = [16, 64], strides = [1, 1]} : vector<288x64xf32> to vector<16x64xf32>
    %147 = arith.truncf %146 : vector<16x64xf32> to vector<16x64xbf16>
    %c0_138 = arith.constant 0 : index
    %c144_139 = arith.constant 144 : index
    %c0_140 = arith.constant 0 : index
    %148 = vector.load %arg5[%c0_138, %c144_139, %c0_140] : memref<1x256x64xbf16, #tpu.memory_space<vmem>>, vector<1x16x64xbf16>
    %149 = vector.shape_cast %148 : vector<1x16x64xbf16> to vector<16x64xbf16>
    %150 = vector.shape_cast %147 : vector<16x64xbf16> to vector<1x16x64xbf16>
    tpu.vector_store %arg5[%c0_138, %c144_139, %c0_140], %150 {strides = array<i32>} : memref<1x256x64xbf16, #tpu.memory_space<vmem>>, vector<1x16x64xbf16>,
    %151 = vector.extract_strided_slice %100 {offsets = [180, 0], sizes = [16, 64], strides = [1, 1]} : vector<288x64xf32> to vector<16x64xf32>
    %152 = arith.truncf %151 : vector<16x64xf32> to vector<16x64xbf16>
    %c0_141 = arith.constant 0 : index
    %c160_142 = arith.constant 160 : index
    %c0_143 = arith.constant 0 : index
    %153 = vector.load %arg5[%c0_141, %c160_142, %c0_143] : memref<1x256x64xbf16, #tpu.memory_space<vmem>>, vector<1x16x64xbf16>
    %154 = vector.shape_cast %153 : vector<1x16x64xbf16> to vector<16x64xbf16>
    %155 = vector.shape_cast %152 : vector<16x64xbf16> to vector<1x16x64xbf16>
    tpu.vector_store %arg5[%c0_141, %c160_142, %c0_143], %155 {strides = array<i32>} : memref<1x256x64xbf16, #tpu.memory_space<vmem>>, vector<1x16x64xbf16>,
    %156 = vector.extract_strided_slice %100 {offsets = [198, 0], sizes = [16, 64], strides = [1, 1]} : vector<288x64xf32> to vector<16x64xf32>
    %157 = arith.truncf %156 : vector<16x64xf32> to vector<16x64xbf16>
    %c0_144 = arith.constant 0 : index
    %c176_145 = arith.constant 176 : index
    %c0_146 = arith.constant 0 : index
    %158 = vector.load %arg5[%c0_144, %c176_145, %c0_146] : memref<1x256x64xbf16, #tpu.memory_space<vmem>>, vector<1x16x64xbf16>
    %159 = vector.shape_cast %158 : vector<1x16x64xbf16> to vector<16x64xbf16>
    %160 = vector.shape_cast %157 : vector<16x64xbf16> to vector<1x16x64xbf16>
    tpu.vector_store %arg5[%c0_144, %c176_145, %c0_146], %160 {strides = array<i32>} : memref<1x256x64xbf16, #tpu.memory_space<vmem>>, vector<1x16x64xbf16>,
    %161 = vector.extract_strided_slice %100 {offsets = [216, 0], sizes = [16, 64], strides = [1, 1]} : vector<288x64xf32> to vector<16x64xf32>
    %162 = arith.truncf %161 : vector<16x64xf32> to vector<16x64xbf16>
    %c0_147 = arith.constant 0 : index
    %c192_148 = arith.constant 192 : index
    %c0_149 = arith.constant 0 : index
    %163 = vector.load %arg5[%c0_147, %c192_148, %c0_149] : memref<1x256x64xbf16, #tpu.memory_space<vmem>>, vector<1x16x64xbf16>
    %164 = vector.shape_cast %163 : vector<1x16x64xbf16> to vector<16x64xbf16>
    %165 = vector.shape_cast %162 : vector<16x64xbf16> to vector<1x16x64xbf16>
    tpu.vector_store %arg5[%c0_147, %c192_148, %c0_149], %165 {strides = array<i32>} : memref<1x256x64xbf16, #tpu.memory_space<vmem>>, vector<1x16x64xbf16>,
    %166 = vector.extract_strided_slice %100 {offsets = [234, 0], sizes = [16, 64], strides = [1, 1]} : vector<288x64xf32> to vector<16x64xf32>
    %167 = arith.truncf %166 : vector<16x64xf32> to vector<16x64xbf16>
    %c0_150 = arith.constant 0 : index
    %c208_151 = arith.constant 208 : index
    %c0_152 = arith.constant 0 : index
    %168 = vector.load %arg5[%c0_150, %c208_151, %c0_152] : memref<1x256x64xbf16, #tpu.memory_space<vmem>>, vector<1x16x64xbf16>
    %169 = vector.shape_cast %168 : vector<1x16x64xbf16> to vector<16x64xbf16>
    %170 = vector.shape_cast %167 : vector<16x64xbf16> to vector<1x16x64xbf16>
    tpu.vector_store %arg5[%c0_150, %c208_151, %c0_152], %170 {strides = array<i32>} : memref<1x256x64xbf16, #tpu.memory_space<vmem>>, vector<1x16x64xbf16>,
    %171 = vector.extract_strided_slice %100 {offsets = [252, 0], sizes = [16, 64], strides = [1, 1]} : vector<288x64xf32> to vector<16x64xf32>
    %172 = arith.truncf %171 : vector<16x64xf32> to vector<16x64xbf16>
    %c0_153 = arith.constant 0 : index
    %c224_154 = arith.constant 224 : index
    %c0_155 = arith.constant 0 : index
    %173 = vector.load %arg5[%c0_153, %c224_154, %c0_155] : memref<1x256x64xbf16, #tpu.memory_space<vmem>>, vector<1x16x64xbf16>
    %174 = vector.shape_cast %173 : vector<1x16x64xbf16> to vector<16x64xbf16>
    %175 = vector.shape_cast %172 : vector<16x64xbf16> to vector<1x16x64xbf16>
    tpu.vector_store %arg5[%c0_153, %c224_154, %c0_155], %175 {strides = array<i32>} : memref<1x256x64xbf16, #tpu.memory_space<vmem>>, vector<1x16x64xbf16>,
    %176 = vector.extract_strided_slice %100 {offsets = [270, 0], sizes = [16, 64], strides = [1, 1]} : vector<288x64xf32> to vector<16x64xf32>
    %177 = arith.truncf %176 : vector<16x64xf32> to vector<16x64xbf16>
    %c0_156 = arith.constant 0 : index
    %c240_157 = arith.constant 240 : index
    %c0_158 = arith.constant 0 : index
    %178 = vector.load %arg5[%c0_156, %c240_157, %c0_158] : memref<1x256x64xbf16, #tpu.memory_space<vmem>>, vector<1x16x64xbf16>
    %179 = vector.shape_cast %178 : vector<1x16x64xbf16> to vector<16x64xbf16>
    %180 = vector.shape_cast %177 : vector<16x64xbf16> to vector<1x16x64xbf16>
    tpu.vector_store %arg5[%c0_156, %c240_157, %c0_158], %180 {strides = array<i32>} : memref<1x256x64xbf16, #tpu.memory_space<vmem>>, vector<1x16x64xbf16>,
    return
  }
  func.func @transform_0(%arg0: i32, %arg1: i32) -> (i32, i32, i32) {
    %c0_i32 = arith.constant 0 : i32
    %c0_i32_0 = arith.constant 0 : i32
    %c0_i32_1 = arith.constant 0 : i32
    return %arg0, %c0_i32, %c0_i32_0 : i32, i32, i32
  }
  func.func @transform_1(%arg0: i32, %arg1: i32) -> (i32, i32, i32, i32) {
    %c0_i32 = arith.constant 0 : i32
    %c0_i32_0 = arith.constant 0 : i32
    %c0_i32_1 = arith.constant 0 : i32
    %c0_i32_2 = arith.constant 0 : i32
    return %c0_i32, %c0_i32_0, %c0_i32_1, %arg1 : i32, i32, i32, i32
  }
  func.func @transform_2(%arg0: i32, %arg1: i32) -> (i32, i32) {
    %c0_i32 = arith.constant 0 : i32
    %c0_i32_0 = arith.constant 0 : i32
    return %c0_i32, %arg1 : i32, i32
  }
  func.func @transform_3(%arg0: i32, %arg1: i32) -> (i32, i32, i32) {
    %c0_i32 = arith.constant 0 : i32
    %c0_i32_0 = arith.constant 0 : i32
    return %arg0, %c0_i32, %arg1 : i32, i32, i32
  }
}

</mosaic_0001>

<llo_original>
// kernel: tpu_custom_call.1
$region0: #{tpu_custom_call.1}
  #allocation0 [shape = 'u32[]', space=smem, size = 0x4, offset = 0x4, fixed_abs, tag = 'smem constant byte address 0x4 - core index']
  #allocation1 [shape = 'u32[144,128]{1,0:T(1,128)}', space=vmem, size = 0x12000, scoped, tag = 'internal scratch']
  #allocation2 [shape = 'bf16[342,8]{1,0:T(8,128)(2,1)}', space=vmem, size = 0x15800, scoped, tag = 'scratch operand']
  %s0 = inlined_call_operand.vmem [shape: bf16[2,256,8], index: 0, kind: input, shape index: {}]
  %s1 = inlined_call_operand.vmem [shape: bf16[3,3,8,64], index: 1, kind: input, shape index: {}]
  %s2 = inlined_call_operand.vmem [shape: f32[1,64], index: 2, kind: input, shape index: {}]
  %s3 = inlined_call_operand.vmem [shape: bf16[2,256,64], index: 3, kind: output, shape index: {}]
  %s4 = sld [smem:[#allocation0]]
  $region45: #{tpu_custom_call.1} parent=0
    _
  %s6 = ssub.s32 1, %s4
  %s7 = scalar_select 0, %s6, %s4
  loop: start=0, step=1, limit=4
  $region2: #{tpu_custom_call.1} parent=0 // loop_pre_header
    _
  $region3: #{tpu_custom_call.1} parent=0 // loop_header
    %s9 = sphi 0, %s13
    %p10 = scmp.ge.s32.totalorder %s9, 4
    %s16 = sphi 0, %s28
    %s17 = sphi 0, %s24
    %s18 = sphi 0, %s16
    %s19 = sphi 0, %s17
    %s20 = sphi 0, %s18
    %s21 = sphi 0, %s19
    %s31 = sphi 0, %s33
    %s34 = sphi 0, %s31
    %s35 = sphi 0, %s34
    %s51 = sphi 0, %s35
    %s57 = sphi 0, %s59
    %s60 = sphi 0, %s57
    %s61 = sphi 0, %s60
    %s77 = sphi 0, %s61
    %s83 = sphi 0, %s85
    %s86 = sphi 0, %s83
    %s87 = sphi 0, %s86
    %s103 = sphi 0, %s87
    %s111 = sphi 0, %s113
    %s114 = sphi 0, %s111
    %s115 = sphi 0, %s114
    %s131 = sphi 0, %s115
  $region4: #{tpu_custom_call.1} parent=0 // loop_header_branch
    %12 = sbr.rel (%p10) target = $region8
  $region5: #{tpu_custom_call.1} parent=0 // loop_body
    %s14 = ssub.s32 %s9, 1
    %s15 = ssub.s32 %s9, 2
    %s22 = sadd.s32 1, %s17
    %p23 = scmp.ge.s32.totalorder %s22, 1
    %s24 = scalar_select %p23, 0, %s22
    %s25 = sadd.s32 1, %s16
    %s26 = scalar_select %p23, %s25, %s16
    %p27 = scmp.ge.s32.totalorder %s26, 2
    %s28 = scalar_select %p27, 0, %s26
    %s29 = ssub.s32 %s16, %s28
    %p30 = scmp.eq.s32.totalorder %s29, 0
    %s32 = sadd.s32 %s31, 1
    %s33 = scalar_select %p30, %s31, %s32
    %p36 = pneg %p30
    %p37 = scmp.eq.s32.totalorder %s9, 1
    %p38 = por %p36, %p37
    %p39 = scmp.ne.s32.totalorder %s31, %s34
    %p40 = scmp.eq.s32.totalorder %s9, 0
    %p41 = por %p39, %p40
    %p42 = scmp.ne.s32.totalorder %s31, %s34
    %p43 = scmp.eq.s32.totalorder %s14, 1
    %p44 = por %p42, %p43
    %p45 = scmp.ne.s32.totalorder %s34, %s35
    %p46 = scmp.eq.s32.totalorder %s14, 0
    %p47 = por %p45, %p46
    %p48 = scmp.ne.s32.totalorder %s34, %s35
    %p49 = scmp.eq.s32.totalorder %s15, 1
    %p50 = por %p48, %p49
    %p52 = scmp.ne.s32.totalorder %s35, %s51
    %p53 = scmp.eq.s32.totalorder %s15, 0
    %p54 = por %p52, %p53
    %s55 = ssub.s32 %s17, %s24
    %p56 = scmp.eq.s32.totalorder %s55, 0
    %s58 = sadd.s32 %s57, 1
    %s59 = scalar_select %p56, %s57, %s58
    %p62 = pneg %p56
    %p63 = scmp.eq.s32.totalorder %s9, 1
    %p64 = por %p62, %p63
    %p65 = scmp.ne.s32.totalorder %s57, %s60
    %p66 = scmp.eq.s32.totalorder %s9, 0
    %p67 = por %p65, %p66
    %p68 = scmp.ne.s32.totalorder %s57, %s60
    %p69 = scmp.eq.s32.totalorder %s14, 1
    %p70 = por %p68, %p69
    %p71 = scmp.ne.s32.totalorder %s60, %s61
    %p72 = scmp.eq.s32.totalorder %s14, 0
    %p73 = por %p71, %p72
    %p74 = scmp.ne.s32.totalorder %s60, %s61
    %p75 = scmp.eq.s32.totalorder %s15, 1
    %p76 = por %p74, %p75
    %p78 = scmp.ne.s32.totalorder %s61, %s77
    %p79 = scmp.eq.s32.totalorder %s15, 0
    %p80 = por %p78, %p79
    %s81 = ssub.s32 %s17, %s24
    %p82 = scmp.eq.s32.totalorder %s81, 0
    %s84 = sadd.s32 %s83, 1
    %s85 = scalar_select %p82, %s83, %s84
    %p88 = pneg %p82
    %p89 = scmp.eq.s32.totalorder %s9, 1
    %p90 = por %p88, %p89
    %p91 = scmp.ne.s32.totalorder %s83, %s86
    %p92 = scmp.eq.s32.totalorder %s9, 0
    %p93 = por %p91, %p92
    %p94 = scmp.ne.s32.totalorder %s83, %s86
    %p95 = scmp.eq.s32.totalorder %s14, 1
    %p96 = por %p94, %p95
    %p97 = scmp.ne.s32.totalorder %s86, %s87
    %p98 = scmp.eq.s32.totalorder %s14, 0
    %p99 = por %p97, %p98
    %p100 = scmp.ne.s32.totalorder %s86, %s87
    %p101 = scmp.eq.s32.totalorder %s15, 1
    %p102 = por %p100, %p101
    %p104 = scmp.ne.s32.totalorder %s87, %s103
    %p105 = scmp.eq.s32.totalorder %s15, 0
    %p106 = por %p104, %p105
    %s107 = ssub.s32 %s16, %s28
    %s108 = ssub.s32 %s17, %s24
    %s109 = sor.u32 %s107, %s108
    %p110 = scmp.eq.s32.totalorder %s109, 0
    %s112 = sadd.s32 %s111, 1
    %s113 = scalar_select %p110, %s111, %s112
    %p116 = pneg %p110
    %p117 = scmp.eq.s32.totalorder %s9, 1
    %p118 = por %p116, %p117
    %p119 = scmp.ne.s32.totalorder %s111, %s114
    %p120 = scmp.eq.s32.totalorder %s9, 0
    %p121 = por %p119, %p120
    %p122 = scmp.ne.s32.totalorder %s111, %s114
    %p123 = scmp.eq.s32.totalorder %s14, 1
    %p124 = por %p122, %p123
    %p125 = scmp.ne.s32.totalorder %s114, %s115
    %p126 = scmp.eq.s32.totalorder %s14, 0
    %p127 = por %p125, %p126
    %p128 = scmp.ne.s32.totalorder %s114, %s115
    %p129 = scmp.eq.s32.totalorder %s15, 1
    %p130 = por %p128, %p129
    %p132 = scmp.ne.s32.totalorder %s115, %s131
    %p133 = scmp.eq.s32.totalorder %s15, 0
    %p134 = por %p132, %p133
    %p135 = scmp.le.s32.totalorder 1, %s9
    %p136 = scmp.lt.s32.totalorder %s9, 3
    %p137 = pnand %p135, %p136
    %p138 = pneg %p137
    // Predicated region
    $region9: #{tpu_custom_call.1} parent=5 // pred_check
      _
    $region10: #{tpu_custom_call.1} parent=5 // pred_check_branch
      %140 = sbr.rel (%p137) target = $region12
    $region11: #{tpu_custom_call.1} parent=5 // pred_region
      %s141 = ssub.s32 %s9, 1
      // Predicated region
      $region13: #{tpu_custom_call.1} parent=11 // pred_check
        %p142 = pneg %p73
      $region14: #{tpu_custom_call.1} parent=11 // pred_check_branch
        %144 = sbr.rel (%p142) target = $region16
      $region15: #{tpu_custom_call.1} parent=11 // pred_region
        %p145 = scmp.lt.s32.totalorder %s19, 0
        %s146 = scalar_select %p145, %s19, 0
        %s147 = smul.addr %s146, 4
        %s148 = scalar_lea.vmem %s1, %s147
      $region16: #{tpu_custom_call.1} parent=11 // pred_fallthru
        _
      // Predicated region
      $region17: #{tpu_custom_call.1} parent=11 // pred_check
        %p149 = pneg %p99
      $region18: #{tpu_custom_call.1} parent=11 // pred_check_branch
        %151 = sbr.rel (%p149) target = $region20
      $region19: #{tpu_custom_call.1} parent=11 // pred_region
        %p152 = scmp.lt.s32.totalorder %s19, 0
        %s153 = scalar_select %p152, %s19, 0
        %s154 = scalar_lea.vmem %s2, %s153
      $region20: #{tpu_custom_call.1} parent=11 // pred_fallthru
        _
    $region12: #{tpu_custom_call.1} parent=5 // pred_fallthru
      _
    %p155 = scmp.lt.s32.totalorder %s9, 2
    // Predicated region
    $region21: #{tpu_custom_call.1} parent=5 // pred_check
      %p156 = pneg %p155
    $region22: #{tpu_custom_call.1} parent=5 // pred_check_branch
      %158 = sbr.rel (%p156) target = $region24
    $region23: #{tpu_custom_call.1} parent=5 // pred_region
      // Predicated region
      $region25: #{tpu_custom_call.1} parent=23 // pred_check
        %p159 = pneg %p41
      $region26: #{tpu_custom_call.1} parent=23 // pred_check_branch
        %161 = sbr.rel (%p159) target = $region28
      $region27: #{tpu_custom_call.1} parent=23 // pred_region
        %p162 = scmp.lt.s32.totalorder %s16, 1
        %s163 = scalar_select %p162, %s16, 1
        %s164 = smul.addr %s163, 32
        %s165 = smul.addr %s164, 4
        %s166 = scalar_lea.vmem %s0, %s165
      $region28: #{tpu_custom_call.1} parent=23 // pred_fallthru
        _
    $region24: #{tpu_custom_call.1} parent=5 // pred_fallthru
      _
    %p167 = scmp.le.s32.totalorder 1, %s9
    %p168 = scmp.lt.s32.totalorder %s9, 3
    %p169 = pnand %p167, %p168
    %p170 = pneg %p169
    // Predicated region
    $region29: #{tpu_custom_call.1} parent=5 // pred_check
      _
    $region30: #{tpu_custom_call.1} parent=5 // pred_check_branch
      %172 = sbr.rel (%p169) target = $region32
    $region31: #{tpu_custom_call.1} parent=5 // pred_region
      %s173 = ssub.s32 %s9, 1
      %p174 = scmp.lt.s32.totalorder %s18, 1
      %s175 = scalar_select %p174, %s18, 1
      %s176 = smul.addr %s175, 32
      %s177 = smul.addr %s176, 4
      %s178 = scalar_lea.vmem %s0, %s177
      %p179 = pneg %p47
      %p180 = pneg %p44
      %p181 = scmp.lt.s32.totalorder %s19, 0
      %s182 = scalar_select %p181, %s19, 0
      %s183 = smul.addr %s182, 4
      %s184 = scalar_lea.vmem %s1, %s183
      %p185 = pneg %p73
      %p186 = pneg %p70
      %p187 = scmp.lt.s32.totalorder %s19, 0
      %s188 = scalar_select %p187, %s19, 0
      %s189 = scalar_lea.vmem %s2, %s188
      %p190 = pneg %p99
      %p191 = pneg %p96
      %p192 = pneg %p127
      %p193 = pneg %p124
      %p194 = scmp.lt.s32.totalorder %s18, 1
      %s195 = scalar_select %p194, %s18, 1
      %p196 = scmp.lt.s32.totalorder %s19, 0
      %s197 = scalar_select %p196, %s19, 0
      %s198 = smul.addr %s195, 32
      %s199 = sadd.s32 %s197, %s198
      %s200 = smul.addr %s199, 4
      %s201 = scalar_lea.vmem %s3, %s200
      %p202 = scmp.lt.s32.totalorder %s18, 1
      %s203 = scalar_select %p202, %s18, 1
      %s204 = smul.addr %s203, 32
      %s205 = smul.addr %s204, 4
      %s206 = scalar_lea.vmem %s0, %s205
      %p207 = scmp.lt.s32.totalorder %s19, 0
      %s208 = scalar_select %p207, %s19, 0
      %s209 = smul.addr %s208, 4
      %s210 = scalar_lea.vmem %s1, %s209
      %p211 = scmp.lt.s32.totalorder %s19, 0
      %s212 = scalar_select %p211, %s19, 0
      %s213 = scalar_lea.vmem %s2, %s212
      %p214 = scmp.lt.s32.totalorder %s18, 1
      %s215 = scalar_select %p214, %s18, 1
      %p216 = scmp.lt.s32.totalorder %s19, 0
      %s217 = scalar_select %p216, %s19, 0
      %s218 = smul.addr %s215, 32
      %s219 = sadd.s32 %s217, %s218
      %s220 = smul.addr %s219, 4
      %s221 = scalar_lea.vmem %s3, %s220
      %vm223 = vcmask 60416
      %224 = vst.msk [vmem:[#allocation2] sm:$0xf] %vm223, 0
      %225 = vst.msk [vmem:[#allocation2 + $0x4] sm:$0xf] %vm223, 0
      %226 = vst.msk [vmem:[#allocation2 + $0x8] sm:$0xf] %vm223, 0
      %227 = vst.msk [vmem:[#allocation2 + $0xc] sm:$0xf] %vm223, 0
      %228 = vst.msk [vmem:[#allocation2 + $0x10] sm:$0xf] %vm223, 0
      %229 = vst.msk [vmem:[#allocation2 + $0x14] sm:$0xf] %vm223, 0
      %230 = vst.msk [vmem:[#allocation2 + $0x18] sm:$0xf] %vm223, 0
      %231 = vst.msk [vmem:[#allocation2 + $0x1c] sm:$0xf] %vm223, 0
      %232 = vst.msk [vmem:[#allocation2 + $0x20] sm:$0xf] %vm223, 0
      %233 = vst.msk [vmem:[#allocation2 + $0x24] sm:$0xf] %vm223, 0
      %234 = vst.msk [vmem:[#allocation2 + $0x28] sm:$0xf] %vm223, 0
      %235 = vst.msk [vmem:[#allocation2 + $0x2c] sm:$0xf] %vm223, 0
      %236 = vst.msk [vmem:[#allocation2 + $0x30] sm:$0xf] %vm223, 0
      %237 = vst.msk [vmem:[#allocation2 + $0x34] sm:$0xf] %vm223, 0
      %238 = vst.msk [vmem:[#allocation2 + $0x38] sm:$0xf] %vm223, 0
      %239 = vst.msk [vmem:[#allocation2 + $0x3c] sm:$0xf] %vm223, 0
      %240 = vst.msk [vmem:[#allocation2 + $0x40] sm:$0xf] %vm223, 0
      %241 = vst.msk [vmem:[#allocation2 + $0x44] sm:$0xf] %vm223, 0
      %242 = vst.msk [vmem:[#allocation2 + $0x48] sm:$0xf] %vm223, 0
      %243 = vst.msk [vmem:[#allocation2 + $0x4c] sm:$0xf] %vm223, 0
      %244 = vst.msk [vmem:[#allocation2 + $0x50] sm:$0xf] %vm223, 0
      %245 = vst.msk [vmem:[#allocation2 + $0x54] sm:$0xf] %vm223, 0
      %246 = vst.msk [vmem:[#allocation2 + $0x58] sm:$0xf] %vm223, 0
      %247 = vst.msk [vmem:[#allocation2 + $0x5c] sm:$0xf] %vm223, 0
      %248 = vst.msk [vmem:[#allocation2 + $0x60] sm:$0xf] %vm223, 0
      %249 = vst.msk [vmem:[#allocation2 + $0x64] sm:$0xf] %vm223, 0
      %250 = vst.msk [vmem:[#allocation2 + $0x68] sm:$0xf] %vm223, 0
      %251 = vst.msk [vmem:[#allocation2 + $0x6c] sm:$0xf] %vm223, 0
      %252 = vst.msk [vmem:[#allocation2 + $0x70] sm:$0xf] %vm223, 0
      %253 = vst.msk [vmem:[#allocation2 + $0x74] sm:$0xf] %vm223, 0
      %254 = vst.msk [vmem:[#allocation2 + $0x78] sm:$0xf] %vm223, 0
      %255 = vst.msk [vmem:[#allocation2 + $0x7c] sm:$0xf] %vm223, 0
      %256 = vst.msk [vmem:[#allocation2 + $0x80] sm:$0xf] %vm223, 0
      %257 = vst.msk [vmem:[#allocation2 + $0x84] sm:$0xf] %vm223, 0
      %258 = vst.msk [vmem:[#allocation2 + $0x88] sm:$0xf] %vm223, 0
      %259 = vst.msk [vmem:[#allocation2 + $0x8c] sm:$0xf] %vm223, 0
      %260 = vst.msk [vmem:[#allocation2 + $0x90] sm:$0xf] %vm223, 0
      %261 = vst.msk [vmem:[#allocation2 + $0x94] sm:$0xf] %vm223, 0
      %262 = vst.msk [vmem:[#allocation2 + $0x98] sm:$0xf] %vm223, 0
      %263 = vst.msk [vmem:[#allocation2 + $0x9c] sm:$0xf] %vm223, 0
      %264 = vst.msk [vmem:[#allocation2 + $0xa0] sm:$0xf] %vm223, 0
      %265 = vst.msk [vmem:[#allocation2 + $0xa4] sm:$0xf] %vm223, 0
      %vm266 = vcmask 59392
      %267 = vst.msk [vmem:[#allocation2 + $0xa8] sm:$0x7] %vm266, 0
      %v268 = vld [vmem:[%s206] sm:$0xf]
      %v269 = vld [vmem:[%s206 + $0x4] sm:$0xf]
      %vm270 = vsmask.f32 1280
      %vm271 = vsmask.f32 5392
      %vm272 = vmor %vm270, %vm271
      %v274 = vshrl.u32 %v268, 16
      %v276 = vrot.slane %v274, 6
      %v277 = vshll.u32 %v268, 16
      %v279 = vrot.slane %v277, 7
      %v280 = vor.u32 %v276, %v279
      %v281 = vrot.slane %v280, 4
      %v283 = vshrl.u32 %v269, 16
      %v285 = vrot.slane %v283, 6
      %v286 = vshll.u32 %v269, 16
      %v288 = vrot.slane %v286, 7
      %v289 = vor.u32 %v285, %v288
      %v290 = vsel %vm272, %v281, %v289
      %v291 = vrot.slane %v289, 4
      %vm295 = vcmask 60417
      %vm296 = vsmask.f32 7942
      %vm297 = vmand %vm295, %vm296
      %v298 = vld [vmem:[#allocation2 + $0x8] sm:$0xe]
      %v299 = vsel %vm297, %v280, %v298
      %300 = vst [vmem:[#allocation2 + $0x8] sm:$0xe] %v299
      %301 = vst.msk [vmem:[#allocation2 + $0xc] sm:$0xf] %vm223, %v290
      %vm302 = vcmask 58368
      %vm303 = vmand %vm302, %vm270
      %v304 = vld [vmem:[#allocation2 + $0x10] sm:$0x3]
      %v305 = vsel %vm303, %v291, %v304
      %306 = vst [vmem:[#allocation2 + $0x10] sm:$0x3] %v305
      %v307 = vld [vmem:[%s206 + $0x8] sm:$0xf]
      %v308 = vld [vmem:[%s206 + $0xc] sm:$0xf]
      %vm309 = vsmask.f32 2304
      %vm310 = vsmask.f32 6416
      %vm311 = vmor %vm309, %vm310
      %v313 = vshrl.u32 %v307, 16
      %v315 = vrot.slane %v313, 5
      %v316 = vshll.u32 %v307, 16
      %v318 = vrot.slane %v316, 6
      %v319 = vor.u32 %v315, %v318
      %v320 = vrot.slane %v319, 4
      %v322 = vshrl.u32 %v308, 16
      %v324 = vrot.slane %v322, 5
      %v325 = vshll.u32 %v308, 16
      %v327 = vrot.slane %v325, 6
      %v328 = vor.u32 %v324, %v327
      %v329 = vsel %vm311, %v320, %v328
      %v330 = vrot.slane %v328, 4
      %vm334 = vcmask 60418
      %vm335 = vsmask.f32 7946
      %vm336 = vmand %vm334, %vm335
      %v337 = vld [vmem:[#allocation2 + $0x10] sm:$0xc]
      %v338 = vsel %vm336, %v319, %v337
      %339 = vst [vmem:[#allocation2 + $0x10] sm:$0xc] %v338
      %340 = vst.msk [vmem:[#allocation2 + $0x14] sm:$0xf] %vm223, %v329
      %vm341 = vcmask 59392
      %vm342 = vmand %vm341, %vm309
      %v343 = vld [vmem:[#allocation2 + $0x18] sm:$0x7]
      %v344 = vsel %vm342, %v330, %v343
      %345 = vst [vmem:[#allocation2 + $0x18] sm:$0x7] %v344
      %v346 = vld [vmem:[%s206 + $0x10] sm:$0xf]
      %v347 = vld [vmem:[%s206 + $0x14] sm:$0xf]
      %vm348 = vsmask.f32 3328
      %vm349 = vsmask.f32 7440
      %vm350 = vmor %vm348, %vm349
      %v352 = vshll.u32 %v346, 16
      %v354 = vrot.slane %v352, 5
      %v355 = vshrl.u32 %v346, 16
      %v357 = vrot.slane %v355, 4
      %v358 = vor.u32 %v357, %v354
      %v359 = vrot.slane %v358, 4
      %v361 = vshll.u32 %v347, 16
      %v363 = vrot.slane %v361, 5
      %v364 = vsel %vm350, %v359, %v363
      %v365 = vshrl.u32 %v347, 16
      %v367 = vrot.slane %v365, 4
      %v368 = vor.u32 %v367, %v363
      %v369 = vrot.slane %v368, 4
      %vm373 = vcmask 60419
      %vm374 = vsmask.f32 7950
      %vm375 = vmand %vm373, %vm374
      %v376 = vld [vmem:[#allocation2 + $0x18] sm:$0x8]
      %v377 = vsel %vm375, %v354, %v376
      %378 = vst [vmem:[#allocation2 + $0x18] sm:$0x8] %v377
      %379 = vst.msk [vmem:[#allocation2 + $0x1c] sm:$0xf] %vm223, %v364
      %vm380 = vcmask 60416
      %vm381 = vmand %vm380, %vm348
      %v382 = vld [vmem:[#allocation2 + $0x20] sm:$0xf]
      %v383 = vsel %vm381, %v369, %v382
      %384 = vst [vmem:[#allocation2 + $0x20] sm:$0xf] %v383
      %v385 = vld [vmem:[%s206 + $0x18] sm:$0xf]
      %v386 = vld [vmem:[%s206 + $0x1c] sm:$0xf]
      %vm387 = vsmask.f32 256
      %vm388 = vsmask.f32 4368
      %vm389 = vmor %vm387, %vm388
      %v391 = vshrl.u32 %v385, 16
      %v393 = vrot.slane %v391, 7
      %v394 = vshll.u32 %v385, 16
      %v396 = vor.u32 %v393, %v394
      %v397 = vrot.slane %v393, 4
      %v399 = vshrl.u32 %v386, 16
      %v401 = vrot.slane %v399, 7
      %v402 = vshll.u32 %v386, 16
      %v404 = vor.u32 %v401, %v402
      %v405 = vsel %vm389, %v397, %v404
      %v406 = vrot.slane %v401, 4
      %vm410 = vsmask.f32 7938
      %vm411 = vmand %vm380, %vm410
      %v412 = vld [vmem:[#allocation2 + $0x24] sm:$0xf]
      %v413 = vsel %vm411, %v396, %v412
      %414 = vst [vmem:[#allocation2 + $0x24] sm:$0xf] %v413
      %415 = vst.msk [vmem:[#allocation2 + $0x28] sm:$0xf] %vm223, %v405
      %vm416 = vcmask 57344
      %vm417 = vmand %vm416, %vm387
      %v418 = vld [vmem:[#allocation2 + $0x2c] sm:$0x1]
      %v419 = vsel %vm417, %v406, %v418
      %420 = vst [vmem:[#allocation2 + $0x2c] sm:$0x1] %v419
      %v421 = vld [vmem:[%s206 + $0x20] sm:$0xf]
      %v422 = vld [vmem:[%s206 + $0x24] sm:$0xf]
      %v424 = vshrl.u32 %v421, 16
      %v426 = vrot.slane %v424, 6
      %v427 = vshll.u32 %v421, 16
      %v429 = vrot.slane %v427, 7
      %v430 = vor.u32 %v426, %v429
      %v431 = vrot.slane %v430, 4
      %v433 = vshrl.u32 %v422, 16
      %v435 = vrot.slane %v433, 6
      %v436 = vshll.u32 %v422, 16
      %v438 = vrot.slane %v436, 7
      %v439 = vor.u32 %v435, %v438
      %v440 = vsel %vm272, %v431, %v439
      %v441 = vrot.slane %v439, 4
      %v445 = vld [vmem:[#allocation2 + $0x2c] sm:$0xe]
      %v446 = vsel %vm297, %v430, %v445
      %447 = vst [vmem:[#allocation2 + $0x2c] sm:$0xe] %v446
      %448 = vst.msk [vmem:[#allocation2 + $0x30] sm:$0xf] %vm223, %v440
      %v449 = vld [vmem:[#allocation2 + $0x34] sm:$0x3]
      %v450 = vsel %vm303, %v441, %v449
      %451 = vst [vmem:[#allocation2 + $0x34] sm:$0x3] %v450
      %v452 = vld [vmem:[%s206 + $0x28] sm:$0xf]
      %v453 = vld [vmem:[%s206 + $0x2c] sm:$0xf]
      %v455 = vshrl.u32 %v452, 16
      %v457 = vrot.slane %v455, 5
      %v458 = vshll.u32 %v452, 16
      %v460 = vrot.slane %v458, 6
      %v461 = vor.u32 %v457, %v460
      %v462 = vrot.slane %v461, 4
      %v464 = vshrl.u32 %v453, 16
      %v466 = vrot.slane %v464, 5
      %v467 = vshll.u32 %v453, 16
      %v469 = vrot.slane %v467, 6
      %v470 = vor.u32 %v466, %v469
      %v471 = vsel %vm311, %v462, %v470
      %v472 = vrot.slane %v470, 4
      %v476 = vld [vmem:[#allocation2 + $0x34] sm:$0xc]
      %v477 = vsel %vm336, %v461, %v476
      %478 = vst [vmem:[#allocation2 + $0x34] sm:$0xc] %v477
      %479 = vst.msk [vmem:[#allocation2 + $0x38] sm:$0xf] %vm223, %v471
      %v480 = vld [vmem:[#allocation2 + $0x3c] sm:$0x7]
      %v481 = vsel %vm342, %v472, %v480
      %482 = vst [vmem:[#allocation2 + $0x3c] sm:$0x7] %v481
      %v483 = vld [vmem:[%s206 + $0x30] sm:$0xf]
      %v484 = vld [vmem:[%s206 + $0x34] sm:$0xf]
      %v486 = vshll.u32 %v483, 16
      %v488 = vrot.slane %v486, 5
      %v489 = vshrl.u32 %v483, 16
      %v491 = vrot.slane %v489, 4
      %v492 = vor.u32 %v491, %v488
      %v493 = vrot.slane %v492, 4
      %v495 = vshll.u32 %v484, 16
      %v497 = vrot.slane %v495, 5
      %v498 = vsel %vm350, %v493, %v497
      %v499 = vshrl.u32 %v484, 16
      %v501 = vrot.slane %v499, 4
      %v502 = vor.u32 %v501, %v497
      %v503 = vrot.slane %v502, 4
      %v507 = vld [vmem:[#allocation2 + $0x3c] sm:$0x8]
      %v508 = vsel %vm375, %v488, %v507
      %509 = vst [vmem:[#allocation2 + $0x3c] sm:$0x8] %v508
      %510 = vst.msk [vmem:[#allocation2 + $0x40] sm:$0xf] %vm223, %v498
      %v511 = vld [vmem:[#allocation2 + $0x44] sm:$0xf]
      %v512 = vsel %vm381, %v503, %v511
      %513 = vst [vmem:[#allocation2 + $0x44] sm:$0xf] %v512
      %v514 = vld [vmem:[%s206 + $0x38] sm:$0xf]
      %v515 = vld [vmem:[%s206 + $0x3c] sm:$0xf]
      %v517 = vshrl.u32 %v514, 16
      %v519 = vrot.slane %v517, 7
      %v520 = vshll.u32 %v514, 16
      %v522 = vor.u32 %v519, %v520
      %v523 = vrot.slane %v519, 4
      %v525 = vshrl.u32 %v515, 16
      %v527 = vrot.slane %v525, 7
      %v528 = vshll.u32 %v515, 16
      %v530 = vor.u32 %v527, %v528
      %v531 = vsel %vm389, %v523, %v530
      %v532 = vrot.slane %v527, 4
      %v536 = vld [vmem:[#allocation2 + $0x48] sm:$0xf]
      %v537 = vsel %vm411, %v522, %v536
      %538 = vst [vmem:[#allocation2 + $0x48] sm:$0xf] %v537
      %539 = vst.msk [vmem:[#allocation2 + $0x4c] sm:$0xf] %vm223, %v531
      %v540 = vld [vmem:[#allocation2 + $0x50] sm:$0x1]
      %v541 = vsel %vm417, %v532, %v540
      %542 = vst [vmem:[#allocation2 + $0x50] sm:$0x1] %v541
      %v543 = vld [vmem:[%s206 + $0x40] sm:$0xf]
      %v544 = vld [vmem:[%s206 + $0x44] sm:$0xf]
      %v546 = vshrl.u32 %v543, 16
      %v548 = vrot.slane %v546, 6
      %v549 = vshll.u32 %v543, 16
      %v551 = vrot.slane %v549, 7
      %v552 = vor.u32 %v548, %v551
      %v553 = vrot.slane %v552, 4
      %v555 = vshrl.u32 %v544, 16
      %v557 = vrot.slane %v555, 6
      %v558 = vshll.u32 %v544, 16
      %v560 = vrot.slane %v558, 7
      %v561 = vor.u32 %v557, %v560
      %v562 = vsel %vm272, %v553, %v561
      %v563 = vrot.slane %v561, 4
      %v567 = vld [vmem:[#allocation2 + $0x50] sm:$0xe]
      %v568 = vsel %vm297, %v552, %v567
      %569 = vst [vmem:[#allocation2 + $0x50] sm:$0xe] %v568
      %570 = vst.msk [vmem:[#allocation2 + $0x54] sm:$0xf] %vm223, %v562
      %v571 = vld [vmem:[#allocation2 + $0x58] sm:$0x3]
      %v572 = vsel %vm303, %v563, %v571
      %573 = vst [vmem:[#allocation2 + $0x58] sm:$0x3] %v572
      %v574 = vld [vmem:[%s206 + $0x48] sm:$0xf]
      %v575 = vld [vmem:[%s206 + $0x4c] sm:$0xf]
      %v577 = vshrl.u32 %v574, 16
      %v579 = vrot.slane %v577, 5
      %v580 = vshll.u32 %v574, 16
      %v582 = vrot.slane %v580, 6
      %v583 = vor.u32 %v579, %v582
      %v584 = vrot.slane %v583, 4
      %v586 = vshrl.u32 %v575, 16
      %v588 = vrot.slane %v586, 5
      %v589 = vshll.u32 %v575, 16
      %v591 = vrot.slane %v589, 6
      %v592 = vor.u32 %v588, %v591
      %v593 = vsel %vm311, %v584, %v592
      %v594 = vrot.slane %v592, 4
      %v598 = vld [vmem:[#allocation2 + $0x58] sm:$0xc]
      %v599 = vsel %vm336, %v583, %v598
      %600 = vst [vmem:[#allocation2 + $0x58] sm:$0xc] %v599
      %601 = vst.msk [vmem:[#allocation2 + $0x5c] sm:$0xf] %vm223, %v593
      %v602 = vld [vmem:[#allocation2 + $0x60] sm:$0x7]
      %v603 = vsel %vm342, %v594, %v602
      %604 = vst [vmem:[#allocation2 + $0x60] sm:$0x7] %v603
      %v605 = vld [vmem:[%s206 + $0x50] sm:$0xf]
      %v606 = vld [vmem:[%s206 + $0x54] sm:$0xf]
      %v608 = vshll.u32 %v605, 16
      %v610 = vrot.slane %v608, 5
      %v611 = vshrl.u32 %v605, 16
      %v613 = vrot.slane %v611, 4
      %v614 = vor.u32 %v613, %v610
      %v615 = vrot.slane %v614, 4
      %v617 = vshll.u32 %v606, 16
      %v619 = vrot.slane %v617, 5
      %v620 = vsel %vm350, %v615, %v619
      %v621 = vshrl.u32 %v606, 16
      %v623 = vrot.slane %v621, 4
      %v624 = vor.u32 %v623, %v619
      %v625 = vrot.slane %v624, 4
      %v629 = vld [vmem:[#allocation2 + $0x60] sm:$0x8]
      %v630 = vsel %vm375, %v610, %v629
      %631 = vst [vmem:[#allocation2 + $0x60] sm:$0x8] %v630
      %632 = vst.msk [vmem:[#allocation2 + $0x64] sm:$0xf] %vm223, %v620
      %v633 = vld [vmem:[#allocation2 + $0x68] sm:$0xf]
      %v634 = vsel %vm381, %v625, %v633
      %635 = vst [vmem:[#allocation2 + $0x68] sm:$0xf] %v634
      %v636 = vld [vmem:[%s206 + $0x58] sm:$0xf]
      %v637 = vld [vmem:[%s206 + $0x5c] sm:$0xf]
      %v639 = vshrl.u32 %v636, 16
      %v641 = vrot.slane %v639, 7
      %v642 = vshll.u32 %v636, 16
      %v644 = vor.u32 %v641, %v642
      %v645 = vrot.slane %v641, 4
      %v647 = vshrl.u32 %v637, 16
      %v649 = vrot.slane %v647, 7
      %v650 = vshll.u32 %v637, 16
      %v652 = vor.u32 %v649, %v650
      %v653 = vsel %vm389, %v645, %v652
      %v654 = vrot.slane %v649, 4
      %v658 = vld [vmem:[#allocation2 + $0x6c] sm:$0xf]
      %v659 = vsel %vm411, %v644, %v658
      %660 = vst [vmem:[#allocation2 + $0x6c] sm:$0xf] %v659
      %661 = vst.msk [vmem:[#allocation2 + $0x70] sm:$0xf] %vm223, %v653
      %v662 = vld [vmem:[#allocation2 + $0x74] sm:$0x1]
      %v663 = vsel %vm417, %v654, %v662
      %664 = vst [vmem:[#allocation2 + $0x74] sm:$0x1] %v663
      %v665 = vld [vmem:[%s206 + $0x60] sm:$0xf]
      %v666 = vld [vmem:[%s206 + $0x64] sm:$0xf]
      %v668 = vshrl.u32 %v665, 16
      %v670 = vrot.slane %v668, 6
      %v671 = vshll.u32 %v665, 16
      %v673 = vrot.slane %v671, 7
      %v674 = vor.u32 %v670, %v673
      %v675 = vrot.slane %v674, 4
      %v677 = vshrl.u32 %v666, 16
      %v679 = vrot.slane %v677, 6
      %v680 = vshll.u32 %v666, 16
      %v682 = vrot.slane %v680, 7
      %v683 = vor.u32 %v679, %v682
      %v684 = vsel %vm272, %v675, %v683
      %v685 = vrot.slane %v683, 4
      %v689 = vld [vmem:[#allocation2 + $0x74] sm:$0xe]
      %v690 = vsel %vm297, %v674, %v689
      %691 = vst [vmem:[#allocation2 + $0x74] sm:$0xe] %v690
      %692 = vst.msk [vmem:[#allocation2 + $0x78] sm:$0xf] %vm223, %v684
      %v693 = vld [vmem:[#allocation2 + $0x7c] sm:$0x3]
      %v694 = vsel %vm303, %v685, %v693
      %695 = vst [vmem:[#allocation2 + $0x7c] sm:$0x3] %v694
      %v696 = vld [vmem:[%s206 + $0x68] sm:$0xf]
      %v697 = vld [vmem:[%s206 + $0x6c] sm:$0xf]
      %v699 = vshrl.u32 %v696, 16
      %v701 = vrot.slane %v699, 5
      %v702 = vshll.u32 %v696, 16
      %v704 = vrot.slane %v702, 6
      %v705 = vor.u32 %v701, %v704
      %v706 = vrot.slane %v705, 4
      %v708 = vshrl.u32 %v697, 16
      %v710 = vrot.slane %v708, 5
      %v711 = vshll.u32 %v697, 16
      %v713 = vrot.slane %v711, 6
      %v714 = vor.u32 %v710, %v713
      %v715 = vsel %vm311, %v706, %v714
      %v716 = vrot.slane %v714, 4
      %v720 = vld [vmem:[#allocation2 + $0x7c] sm:$0xc]
      %v721 = vsel %vm336, %v705, %v720
      %722 = vst [vmem:[#allocation2 + $0x7c] sm:$0xc] %v721
      %723 = vst.msk [vmem:[#allocation2 + $0x80] sm:$0xf] %vm223, %v715
      %v724 = vld [vmem:[#allocation2 + $0x84] sm:$0x7]
      %v725 = vsel %vm342, %v716, %v724
      %726 = vst [vmem:[#allocation2 + $0x84] sm:$0x7] %v725
      %v727 = vld [vmem:[%s206 + $0x70] sm:$0xf]
      %v728 = vld [vmem:[%s206 + $0x74] sm:$0xf]
      %v730 = vshll.u32 %v727, 16
      %v732 = vrot.slane %v730, 5
      %v733 = vshrl.u32 %v727, 16
      %v735 = vrot.slane %v733, 4
      %v736 = vor.u32 %v735, %v732
      %v737 = vrot.slane %v736, 4
      %v739 = vshll.u32 %v728, 16
      %v741 = vrot.slane %v739, 5
      %v742 = vsel %vm350, %v737, %v741
      %v743 = vshrl.u32 %v728, 16
      %v745 = vrot.slane %v743, 4
      %v746 = vor.u32 %v745, %v741
      %v747 = vrot.slane %v746, 4
      %v751 = vld [vmem:[#allocation2 + $0x84] sm:$0x8]
      %v752 = vsel %vm375, %v732, %v751
      %753 = vst [vmem:[#allocation2 + $0x84] sm:$0x8] %v752
      %754 = vst.msk [vmem:[#allocation2 + $0x88] sm:$0xf] %vm223, %v742
      %v755 = vld [vmem:[#allocation2 + $0x8c] sm:$0xf]
      %v756 = vsel %vm381, %v747, %v755
      %757 = vst [vmem:[#allocation2 + $0x8c] sm:$0xf] %v756
      %v758 = vld [vmem:[%s206 + $0x78] sm:$0xf]
      %v759 = vld [vmem:[%s206 + $0x7c] sm:$0xf]
      %v761 = vshrl.u32 %v758, 16
      %v763 = vrot.slane %v761, 7
      %v764 = vshll.u32 %v758, 16
      %v766 = vor.u32 %v763, %v764
      %v767 = vrot.slane %v763, 4
      %v769 = vshrl.u32 %v759, 16
      %v771 = vrot.slane %v769, 7
      %v772 = vshll.u32 %v759, 16
      %v774 = vor.u32 %v771, %v772
      %v775 = vsel %vm389, %v767, %v774
      %v776 = vrot.slane %v771, 4
      %v780 = vld [vmem:[#allocation2 + $0x90] sm:$0xf]
      %v781 = vsel %vm411, %v766, %v780
      %782 = vst [vmem:[#allocation2 + $0x90] sm:$0xf] %v781
      %783 = vst.msk [vmem:[#allocation2 + $0x94] sm:$0xf] %vm223, %v775
      %v784 = vld [vmem:[#allocation2 + $0x98] sm:$0x1]
      %v785 = vsel %vm417, %v776, %v784
      %786 = vst [vmem:[#allocation2 + $0x98] sm:$0x1] %v785
      %v787 = vld [vmem:[#allocation2] sm:$0xf]
      %v788 = vld [vmem:[#allocation2 + $0x4] sm:$0xf]
      %v789 = vld [vmem:[#allocation2 + $0x8] sm:$0xf]
      %v790 = vld [vmem:[#allocation2 + $0xc] sm:$0xf]
      %v791 = vld [vmem:[#allocation2 + $0x10] sm:$0xf]
      %v792 = vld [vmem:[#allocation2 + $0x14] sm:$0xf]
      %v793 = vld [vmem:[#allocation2 + $0x18] sm:$0xf]
      %v794 = vld [vmem:[#allocation2 + $0x1c] sm:$0xf]
      %v795 = vld [vmem:[#allocation2 + $0x20] sm:$0xf]
      %v796 = vld [vmem:[#allocation2 + $0x24] sm:$0xf]
      %v797 = vld [vmem:[#allocation2 + $0x28] sm:$0xf]
      %v798 = vld [vmem:[#allocation2 + $0x2c] sm:$0xf]
      %v799 = vld [vmem:[#allocation2 + $0x30] sm:$0xf]
      %v800 = vld [vmem:[#allocation2 + $0x34] sm:$0xf]
      %v801 = vld [vmem:[#allocation2 + $0x38] sm:$0xf]
      %v802 = vld [vmem:[#allocation2 + $0x3c] sm:$0xf]
      %v803 = vld [vmem:[#allocation2 + $0x40] sm:$0xf]
      %v804 = vld [vmem:[#allocation2 + $0x44] sm:$0xf]
      %v805 = vld [vmem:[#allocation2 + $0x48] sm:$0xf]
      %v806 = vld [vmem:[#allocation2 + $0x4c] sm:$0xf]
      %v807 = vld [vmem:[#allocation2 + $0x50] sm:$0xf]
      %v808 = vld [vmem:[#allocation2 + $0x54] sm:$0xf]
      %v809 = vld [vmem:[#allocation2 + $0x58] sm:$0xf]
      %v810 = vld [vmem:[#allocation2 + $0x5c] sm:$0xf]
      %v811 = vld [vmem:[#allocation2 + $0x60] sm:$0xf]
      %v812 = vld [vmem:[#allocation2 + $0x64] sm:$0xf]
      %v813 = vld [vmem:[#allocation2 + $0x68] sm:$0xf]
      %v814 = vld [vmem:[#allocation2 + $0x6c] sm:$0xf]
      %v815 = vld [vmem:[#allocation2 + $0x70] sm:$0xf]
      %v816 = vld [vmem:[#allocation2 + $0x74] sm:$0xf]
      %v817 = vld [vmem:[#allocation2 + $0x78] sm:$0xf]
      %v818 = vld [vmem:[#allocation2 + $0x7c] sm:$0xf]
      %v819 = vld [vmem:[#allocation2 + $0x80] sm:$0xf]
      %v820 = vld [vmem:[#allocation2 + $0x84] sm:$0xf]
      %v821 = vld [vmem:[#allocation2 + $0x88] sm:$0xf]
      %v822 = vld [vmem:[#allocation2 + $0x8c] sm:$0xf]
      %v823 = vld [vmem:[%s210] sm:$0xf]
      %v824 = vld [vmem:[#allocation2 + $0x90] sm:$0x1]
      %s825 = scalar_lea.vmem %s210, 4
      %v826 = vld [vmem:[%s825] sm:$0xf]
      %v864 = vunpack.c.l.b16 %v787
      %v865 = vunpack.c.l.b16 %v788
      %v866 = vunpack.c.l.b16 %v789
      %v867 = vunpack.c.l.b16 %v790
      %v868 = vunpack.c.l.b16 %v791
      %v869 = vunpack.c.l.b16 %v792
      %v870 = vunpack.c.l.b16 %v793
      %v871 = vunpack.c.l.b16 %v794
      %v872 = vunpack.c.l.b16 %v795
      %v873 = vunpack.c.l.b16 %v796
      %v874 = vunpack.c.l.b16 %v797
      %v875 = vunpack.c.l.b16 %v798
      %v876 = vunpack.c.l.b16 %v799
      %v877 = vunpack.c.l.b16 %v800
      %v878 = vunpack.c.l.b16 %v801
      %v879 = vunpack.c.l.b16 %v802
      %v880 = vunpack.c.l.b16 %v803
      %v881 = vunpack.c.l.b16 %v804
      %v882 = vunpack.c.l.b16 %v805
      %v883 = vunpack.c.l.b16 %v806
      %v884 = vunpack.c.l.b16 %v807
      %v885 = vunpack.c.l.b16 %v808
      %v886 = vunpack.c.l.b16 %v809
      %v887 = vunpack.c.l.b16 %v810
      %v888 = vunpack.c.l.b16 %v811
      %v889 = vunpack.c.l.b16 %v812
      %v890 = vunpack.c.l.b16 %v813
      %v891 = vunpack.c.l.b16 %v814
      %v892 = vunpack.c.l.b16 %v815
      %v893 = vunpack.c.l.b16 %v816
      %v894 = vunpack.c.l.b16 %v817
      %v895 = vunpack.c.l.b16 %v818
      %v896 = vunpack.c.l.b16 %v819
      %v897 = vunpack.c.l.b16 %v820
      %v898 = vunpack.c.l.b16 %v821
      %v899 = vunpack.c.l.b16 %v822
      %v900 = vunpack.c.l.b16 %v824
      %v901 = vpack.c.b16 %v865, %v864
      %v902 = vpack.c.b16 %v867, %v866
      %v903 = vpack.c.b16 %v869, %v868
      %v904 = vpack.c.b16 %v871, %v870
      %v905 = vpack.c.b16 %v873, %v872
      %v906 = vpack.c.b16 %v875, %v874
      %v907 = vpack.c.b16 %v877, %v876
      %v908 = vpack.c.b16 %v879, %v878
      %v909 = vpack.c.b16 %v881, %v880
      %v910 = vpack.c.b16 %v883, %v882
      %v911 = vpack.c.b16 %v885, %v884
      %v912 = vpack.c.b16 %v887, %v886
      %v913 = vpack.c.b16 %v889, %v888
      %v914 = vpack.c.b16 %v891, %v890
      %v915 = vpack.c.b16 %v893, %v892
      %v916 = vpack.c.b16 %v895, %v894
      %v917 = vpack.c.b16 %v897, %v896
      %v918 = vpack.c.b16 %v899, %v898
      %v919 = vpack.c.b16 %v900, %v900
      %vm920 = vsmask.f32 7424
      %v922 = vshrl.u32 %v901, 16
      %v924 = vshll.u32 %v901, 16
      %v926 = vrot.slane %v924, 1
      %v927 = vor.u32 %v922, %v926
      %v929 = vshll.u32 %v902, 16
      %v931 = vrot.slane %v929, 1
      %v932 = vsel %vm920, %v927, %v931
      %v933 = vshrl.u32 %v902, 16
      %v935 = vor.u32 %v933, %v931
      %v937 = vshll.u32 %v903, 16
      %v939 = vrot.slane %v937, 1
      %v940 = vsel %vm920, %v935, %v939
      %v941 = vshrl.u32 %v903, 16
      %v943 = vor.u32 %v941, %v939
      %v945 = vshll.u32 %v904, 16
      %v947 = vrot.slane %v945, 1
      %v948 = vsel %vm920, %v943, %v947
      %v949 = vshrl.u32 %v904, 16
      %v951 = vor.u32 %v949, %v947
      %v953 = vshll.u32 %v905, 16
      %v955 = vrot.slane %v953, 1
      %v956 = vsel %vm920, %v951, %v955
      %v957 = vshrl.u32 %v905, 16
      %v959 = vor.u32 %v957, %v955
      %v961 = vshll.u32 %v906, 16
      %v963 = vrot.slane %v961, 1
      %v964 = vsel %vm920, %v959, %v963
      %v965 = vshrl.u32 %v906, 16
      %v967 = vor.u32 %v965, %v963
      %v969 = vshll.u32 %v907, 16
      %v971 = vrot.slane %v969, 1
      %v972 = vsel %vm920, %v967, %v971
      %v973 = vshrl.u32 %v907, 16
      %v975 = vor.u32 %v973, %v971
      %v977 = vshll.u32 %v908, 16
      %v979 = vrot.slane %v977, 1
      %v980 = vsel %vm920, %v975, %v979
      %v981 = vshrl.u32 %v908, 16
      %v983 = vor.u32 %v981, %v979
      %v985 = vshll.u32 %v909, 16
      %v987 = vrot.slane %v985, 1
      %v988 = vsel %vm920, %v983, %v987
      %v989 = vshrl.u32 %v909, 16
      %v991 = vor.u32 %v989, %v987
      %v993 = vshll.u32 %v910, 16
      %v995 = vrot.slane %v993, 1
      %v996 = vsel %vm920, %v991, %v995
      %v997 = vshrl.u32 %v910, 16
      %v999 = vor.u32 %v997, %v995
      %v1001 = vshll.u32 %v911, 16
      %v1003 = vrot.slane %v1001, 1
      %v1004 = vsel %vm920, %v999, %v1003
      %v1005 = vshrl.u32 %v911, 16
      %v1007 = vor.u32 %v1005, %v1003
      %v1009 = vshll.u32 %v912, 16
      %v1011 = vrot.slane %v1009, 1
      %v1012 = vsel %vm920, %v1007, %v1011
      %v1013 = vshrl.u32 %v912, 16
      %v1015 = vor.u32 %v1013, %v1011
      %v1017 = vshll.u32 %v913, 16
      %v1019 = vrot.slane %v1017, 1
      %v1020 = vsel %vm920, %v1015, %v1019
      %v1021 = vshrl.u32 %v913, 16
      %v1023 = vor.u32 %v1021, %v1019
      %v1025 = vshll.u32 %v914, 16
      %v1027 = vrot.slane %v1025, 1
      %v1028 = vsel %vm920, %v1023, %v1027
      %v1029 = vshrl.u32 %v914, 16
      %v1031 = vor.u32 %v1029, %v1027
      %v1033 = vshll.u32 %v915, 16
      %v1035 = vrot.slane %v1033, 1
      %v1036 = vsel %vm920, %v1031, %v1035
      %v1037 = vshrl.u32 %v915, 16
      %v1039 = vor.u32 %v1037, %v1035
      %v1041 = vshll.u32 %v916, 16
      %v1043 = vrot.slane %v1041, 1
      %v1044 = vsel %vm920, %v1039, %v1043
      %v1045 = vshrl.u32 %v916, 16
      %v1047 = vor.u32 %v1045, %v1043
      %v1049 = vshll.u32 %v917, 16
      %v1051 = vrot.slane %v1049, 1
      %v1052 = vsel %vm920, %v1047, %v1051
      %v1053 = vshrl.u32 %v917, 16
      %v1055 = vor.u32 %v1053, %v1051
      %v1057 = vshll.u32 %v918, 16
      %v1059 = vrot.slane %v1057, 1
      %v1060 = vsel %vm920, %v1055, %v1059
      %v1061 = vshrl.u32 %v918, 16
      %v1063 = vor.u32 %v1061, %v1059
      %v1065 = vshll.u32 %v919, 16
      %v1067 = vrot.slane %v1065, 1
      %v1068 = vsel %vm920, %v1063, %v1067
      %vm1069 = vcmask 64512
      %v1071 = vsel %vm1069, %v932, 0
      %v1074 = vsel %vm1069, %v940, 0
      %v1077 = vsel %vm1069, %v948, 0
      %v1080 = vsel %vm1069, %v956, 0
      %v1083 = vsel %vm1069, %v964, 0
      %v1086 = vsel %vm1069, %v972, 0
      %v1089 = vsel %vm1069, %v980, 0
      %v1092 = vsel %vm1069, %v988, 0
      %v1095 = vsel %vm1069, %v996, 0
      %v1098 = vsel %vm1069, %v1004, 0
      %v1101 = vsel %vm1069, %v1012, 0
      %v1104 = vsel %vm1069, %v1020, 0
      %v1107 = vsel %vm1069, %v1028, 0
      %v1110 = vsel %vm1069, %v1036, 0
      %v1113 = vsel %vm1069, %v1044, 0
      %v1116 = vsel %vm1069, %v1052, 0
      %v1119 = vsel %vm1069, %v1060, 0
      %v1122 = vsel %vm1069, %v1068, 0
      %vm1124 = vcmask 1043456
      %v1126 = vsel %vm1124, %v826, 0
      %1128 = vmatprep.subr.bf16.mxu0 0
      %1129 = vmatpush1.bf16.msra.mxu0 %v1126
      %1130 = vmatprep.subr.bf16.mxu0 0
      %1131 = vmatpush1.bf16.msra.mxu0 0
      %1132 = vmatprep.subr.bf16.mxu0 0
      %1133 = vmatpush1.bf16.msra.mxu0 0
      %1134 = vmatprep.subr.bf16.mxu0 0
      %1135 = vmatpush1.bf16.msra.mxu0 0
      %1136 = vmatprep.subr.bf16.mxu0 0
      %1137 = vmatpush1.bf16.msra.mxu0 0
      %1138 = vmatprep.subr.bf16.mxu0 0
      %1139 = vmatpush1.bf16.msra.mxu0 0
      %1140 = vmatprep.subr.bf16.mxu0 0
      %1141 = vmatpush1.bf16.msra.mxu0 0
      %1142 = vmatprep.subr.bf16.mxu0 0
      %1143 = vmatpush1.bf16.msra.mxu0 0
      %1144 = vmatprep.subr.bf16.mxu0 0
      %1145 = vmatpush1.bf16.msra.mxu0 0
      %1146 = vmatprep.subr.bf16.mxu0 0
      %1147 = vmatpush1.bf16.msra.mxu0 0
      %1148 = vmatprep.subr.bf16.mxu0 0
      %1149 = vmatpush1.bf16.msra.mxu0 0
      %1150 = vmatprep.subr.bf16.mxu0 0
      %1151 = vmatpush1.bf16.msra.mxu0 0
      %1152 = vmatprep.subr.bf16.mxu0 0
      %1153 = vmatpush1.bf16.msra.mxu0 0
      %1154 = vmatprep.subr.bf16.mxu0 0
      %1155 = vmatpush1.bf16.msra.mxu0 0
      %1156 = vmatprep.subr.bf16.mxu0 0
      %1157 = vmatpush1.bf16.msra.mxu0 0
      %1158 = vmatprep.subr.bf16.mxu0 0
      %1159 = vmatpush1.bf16.msra.mxu0 0
      %1160 = vmatprep.mubr.bf16.mxu0 0
      %1161 = vmatmul.mubr.bf16.gmra.mrb[0].mxu0 %v1071
      %v1162 = vpop.f32.mrb[0].mxu0
      %v1163 = vadd.f32 0.0, %v1162
      %v1164 = vpop.f32.mrb[0].mxu0
      %v1165 = vpop.f32.mrb[0].mxu0
      %v1166 = vadd.f32 0.0, %v1165
      %v1167 = vpop.f32.mrb[0].mxu0
      %1168 = vmatprep.mubr.bf16.mxu0 0
      %1169 = vmatmul.mubr.bf16.gmra.mrb[0].mxu0 %v1074
      %v1170 = vpop.f32.mrb[0].mxu0
      %v1171 = vadd.f32 0.0, %v1170
      %v1172 = vpop.f32.mrb[0].mxu0
      %v1173 = vpop.f32.mrb[0].mxu0
      %v1174 = vadd.f32 0.0, %v1173
      %v1175 = vpop.f32.mrb[0].mxu0
      %1176 = vmatprep.mubr.bf16.mxu0 0
      %1177 = vmatmul.mubr.bf16.gmra.mrb[0].mxu0 %v1077
      %v1178 = vpop.f32.mrb[0].mxu0
      %v1179 = vadd.f32 0.0, %v1178
      %v1180 = vpop.f32.mrb[0].mxu0
      %v1181 = vpop.f32.mrb[0].mxu0
      %v1182 = vadd.f32 0.0, %v1181
      %v1183 = vpop.f32.mrb[0].mxu0
      %1184 = vmatprep.mubr.bf16.mxu0 0
      %1185 = vmatmul.mubr.bf16.gmra.mrb[0].mxu0 %v1080
      %v1186 = vpop.f32.mrb[0].mxu0
      %v1187 = vadd.f32 0.0, %v1186
      %v1188 = vpop.f32.mrb[0].mxu0
      %v1189 = vpop.f32.mrb[0].mxu0
      %v1190 = vadd.f32 0.0, %v1189
      %v1191 = vpop.f32.mrb[0].mxu0
      %1192 = vmatprep.mubr.bf16.mxu0 0
      %1193 = vmatmul.mubr.bf16.gmra.mrb[0].mxu0 %v1083
      %v1194 = vpop.f32.mrb[0].mxu0
      %v1195 = vadd.f32 0.0, %v1194
      %v1196 = vpop.f32.mrb[0].mxu0
      %v1197 = vpop.f32.mrb[0].mxu0
      %v1198 = vadd.f32 0.0, %v1197
      %v1199 = vpop.f32.mrb[0].mxu0
      %1200 = vmatprep.mubr.bf16.mxu0 0
      %1201 = vmatmul.mubr.bf16.gmra.mrb[0].mxu0 %v1086
      %v1202 = vpop.f32.mrb[0].mxu0
      %v1203 = vadd.f32 0.0, %v1202
      %v1204 = vpop.f32.mrb[0].mxu0
      %v1205 = vpop.f32.mrb[0].mxu0
      %v1206 = vadd.f32 0.0, %v1205
      %v1207 = vpop.f32.mrb[0].mxu0
      %1208 = vmatprep.mubr.bf16.mxu0 0
      %1209 = vmatmul.mubr.bf16.gmra.mrb[0].mxu0 %v1089
      %v1210 = vpop.f32.mrb[0].mxu0
      %v1211 = vadd.f32 0.0, %v1210
      %v1212 = vpop.f32.mrb[0].mxu0
      %v1213 = vpop.f32.mrb[0].mxu0
      %v1214 = vadd.f32 0.0, %v1213
      %v1215 = vpop.f32.mrb[0].mxu0
      %1216 = vmatprep.mubr.bf16.mxu0 0
      %1217 = vmatmul.mubr.bf16.gmra.mrb[0].mxu0 %v1092
      %v1218 = vpop.f32.mrb[0].mxu0
      %v1219 = vadd.f32 0.0, %v1218
      %v1220 = vpop.f32.mrb[0].mxu0
      %v1221 = vpop.f32.mrb[0].mxu0
      %v1222 = vadd.f32 0.0, %v1221
      %v1223 = vpop.f32.mrb[0].mxu0
      %1224 = vmatprep.mubr.bf16.mxu0 0
      %1225 = vmatmul.mubr.bf16.gmra.mrb[0].mxu0 %v1095
      %v1226 = vpop.f32.mrb[0].mxu0
      %v1227 = vadd.f32 0.0, %v1226
      %v1228 = vpop.f32.mrb[0].mxu0
      %v1229 = vpop.f32.mrb[0].mxu0
      %v1230 = vadd.f32 0.0, %v1229
      %v1231 = vpop.f32.mrb[0].mxu0
      %1232 = vmatprep.mubr.bf16.mxu0 0
      %1233 = vmatmul.mubr.bf16.gmra.mrb[0].mxu0 %v1098
      %v1234 = vpop.f32.mrb[0].mxu0
      %v1235 = vadd.f32 0.0, %v1234
      %v1236 = vpop.f32.mrb[0].mxu0
      %v1237 = vpop.f32.mrb[0].mxu0
      %v1238 = vadd.f32 0.0, %v1237
      %v1239 = vpop.f32.mrb[0].mxu0
      %1240 = vmatprep.mubr.bf16.mxu0 0
      %1241 = vmatmul.mubr.bf16.gmra.mrb[0].mxu0 %v1101
      %v1242 = vpop.f32.mrb[0].mxu0
      %v1243 = vadd.f32 0.0, %v1242
      %v1244 = vpop.f32.mrb[0].mxu0
      %v1245 = vpop.f32.mrb[0].mxu0
      %v1246 = vadd.f32 0.0, %v1245
      %v1247 = vpop.f32.mrb[0].mxu0
      %1248 = vmatprep.mubr.bf16.mxu0 0
      %1249 = vmatmul.mubr.bf16.gmra.mrb[0].mxu0 %v1104
      %v1250 = vpop.f32.mrb[0].mxu0
      %v1251 = vadd.f32 0.0, %v1250
      %v1252 = vpop.f32.mrb[0].mxu0
      %v1253 = vpop.f32.mrb[0].mxu0
      %v1254 = vadd.f32 0.0, %v1253
      %v1255 = vpop.f32.mrb[0].mxu0
      %1256 = vmatprep.mubr.bf16.mxu0 0
      %1257 = vmatmul.mubr.bf16.gmra.mrb[0].mxu0 %v1107
      %v1258 = vpop.f32.mrb[0].mxu0
      %v1259 = vadd.f32 0.0, %v1258
      %v1260 = vpop.f32.mrb[0].mxu0
      %v1261 = vpop.f32.mrb[0].mxu0
      %v1262 = vadd.f32 0.0, %v1261
      %v1263 = vpop.f32.mrb[0].mxu0
      %1264 = vmatprep.mubr.bf16.mxu0 0
      %1265 = vmatmul.mubr.bf16.gmra.mrb[0].mxu0 %v1110
      %v1266 = vpop.f32.mrb[0].mxu0
      %v1267 = vadd.f32 0.0, %v1266
      %v1268 = vpop.f32.mrb[0].mxu0
      %v1269 = vpop.f32.mrb[0].mxu0
      %v1270 = vadd.f32 0.0, %v1269
      %v1271 = vpop.f32.mrb[0].mxu0
      %1272 = vmatprep.mubr.bf16.mxu0 0
      %1273 = vmatmul.mubr.bf16.gmra.mrb[0].mxu0 %v1113
      %v1274 = vpop.f32.mrb[0].mxu0
      %v1275 = vadd.f32 0.0, %v1274
      %v1276 = vpop.f32.mrb[0].mxu0
      %v1277 = vpop.f32.mrb[0].mxu0
      %v1278 = vadd.f32 0.0, %v1277
      %v1279 = vpop.f32.mrb[0].mxu0
      %1280 = vmatprep.mubr.bf16.mxu0 0
      %1281 = vmatmul.mubr.bf16.gmra.mrb[0].mxu0 %v1116
      %v1282 = vpop.f32.mrb[0].mxu0
      %v1283 = vadd.f32 0.0, %v1282
      %v1284 = vpop.f32.mrb[0].mxu0
      %v1285 = vpop.f32.mrb[0].mxu0
      %v1286 = vadd.f32 0.0, %v1285
      %v1287 = vpop.f32.mrb[0].mxu0
      %1288 = vmatprep.mubr.bf16.mxu0 0
      %1289 = vmatmul.mubr.bf16.gmra.mrb[0].mxu0 %v1119
      %v1290 = vpop.f32.mrb[0].mxu0
      %v1291 = vadd.f32 0.0, %v1290
      %v1292 = vpop.f32.mrb[0].mxu0
      %v1293 = vpop.f32.mrb[0].mxu0
      %v1294 = vadd.f32 0.0, %v1293
      %v1295 = vpop.f32.mrb[0].mxu0
      %1296 = vmatprep.mubr.bf16.mxu0 0
      %1297 = vmatmul.mubr.bf16.gmra.mrb[0].mxu0 %v1122
      %v1298 = vpop.f32.mrb[0].mxu0
      %v1299 = vadd.f32 0.0, %v1298
      %v1300 = vpop.f32.mrb[0].mxu0
      %v1301 = vpop.f32.mrb[0].mxu0
      %v1302 = vadd.f32 0.0, %v1301
      %v1303 = vpop.f32.mrb[0].mxu0
      %1304 = vdwg.mxu0
      %v1305 = vsel %vm1069, %v901, 0
      %v1307 = vsel %vm1069, %v902, 0
      %v1309 = vsel %vm1069, %v903, 0
      %v1311 = vsel %vm1069, %v904, 0
      %v1313 = vsel %vm1069, %v905, 0
      %v1315 = vsel %vm1069, %v906, 0
      %v1317 = vsel %vm1069, %v907, 0
      %v1319 = vsel %vm1069, %v908, 0
      %v1321 = vsel %vm1069, %v909, 0
      %v1323 = vsel %vm1069, %v910, 0
      %v1325 = vsel %vm1069, %v911, 0
      %v1327 = vsel %vm1069, %v912, 0
      %v1329 = vsel %vm1069, %v913, 0
      %v1331 = vsel %vm1069, %v914, 0
      %v1333 = vsel %vm1069, %v915, 0
      %v1335 = vsel %vm1069, %v916, 0
      %v1337 = vsel %vm1069, %v917, 0
      %v1339 = vsel %vm1069, %v918, 0
      %v1342 = vsel %vm1124, %v823, 0
      %1344 = vmatprep.subr.bf16.mxu0 0
      %1345 = vmatpush1.bf16.msra.mxu0 %v1342
      %1346 = vmatprep.subr.bf16.mxu0 0
      %1347 = vmatpush1.bf16.msra.mxu0 0
      %1348 = vmatprep.subr.bf16.mxu0 0
      %1349 = vmatpush1.bf16.msra.mxu0 0
      %1350 = vmatprep.subr.bf16.mxu0 0
      %1351 = vmatpush1.bf16.msra.mxu0 0
      %1352 = vmatprep.subr.bf16.mxu0 0
      %1353 = vmatpush1.bf16.msra.mxu0 0
      %1354 = vmatprep.subr.bf16.mxu0 0
      %1355 = vmatpush1.bf16.msra.mxu0 0
      %1356 = vmatprep.subr.bf16.mxu0 0
      %1357 = vmatpush1.bf16.msra.mxu0 0
      %1358 = vmatprep.subr.bf16.mxu0 0
      %1359 = vmatpush1.bf16.msra.mxu0 0
      %1360 = vmatprep.subr.bf16.mxu0 0
      %1361 = vmatpush1.bf16.msra.mxu0 0
      %1362 = vmatprep.subr.bf16.mxu0 0
      %1363 = vmatpush1.bf16.msra.mxu0 0
      %1364 = vmatprep.subr.bf16.mxu0 0
      %1365 = vmatpush1.bf16.msra.mxu0 0
      %1366 = vmatprep.subr.bf16.mxu0 0
      %1367 = vmatpush1.bf16.msra.mxu0 0
      %1368 = vmatprep.subr.bf16.mxu0 0
      %1369 = vmatpush1.bf16.msra.mxu0 0
      %1370 = vmatprep.subr.bf16.mxu0 0
      %1371 = vmatpush1.bf16.msra.mxu0 0
      %1372 = vmatprep.subr.bf16.mxu0 0
      %1373 = vmatpush1.bf16.msra.mxu0 0
      %1374 = vmatprep.subr.bf16.mxu0 0
      %1375 = vmatpush1.bf16.msra.mxu0 0
      %1376 = vmatprep.mubr.bf16.mxu0 0
      %1377 = vmatmul.mubr.bf16.gmra.mrb[0].mxu0 %v1305
      %v1378 = vpop.f32.mrb[0].mxu0
      %v1379 = vadd.f32 %v1163, %v1378
      %v1380 = vpop.f32.mrb[0].mxu0
      %v1381 = vpop.f32.mrb[0].mxu0
      %v1382 = vadd.f32 %v1166, %v1381
      %v1383 = vpop.f32.mrb[0].mxu0
      %1384 = vmatprep.mubr.bf16.mxu0 0
      %1385 = vmatmul.mubr.bf16.gmra.mrb[0].mxu0 %v1307
      %v1386 = vpop.f32.mrb[0].mxu0
      %v1387 = vadd.f32 %v1171, %v1386
      %v1388 = vpop.f32.mrb[0].mxu0
      %v1389 = vpop.f32.mrb[0].mxu0
      %v1390 = vadd.f32 %v1174, %v1389
      %v1391 = vpop.f32.mrb[0].mxu0
      %1392 = vmatprep.mubr.bf16.mxu0 0
      %1393 = vmatmul.mubr.bf16.gmra.mrb[0].mxu0 %v1309
      %v1394 = vpop.f32.mrb[0].mxu0
      %v1395 = vadd.f32 %v1179, %v1394
      %v1396 = vpop.f32.mrb[0].mxu0
      %v1397 = vpop.f32.mrb[0].mxu0
      %v1398 = vadd.f32 %v1182, %v1397
      %v1399 = vpop.f32.mrb[0].mxu0
      %1400 = vmatprep.mubr.bf16.mxu0 0
      %1401 = vmatmul.mubr.bf16.gmra.mrb[0].mxu0 %v1311
      %v1402 = vpop.f32.mrb[0].mxu0
      %v1403 = vadd.f32 %v1187, %v1402
      %v1404 = vpop.f32.mrb[0].mxu0
      %v1405 = vpop.f32.mrb[0].mxu0
      %v1406 = vadd.f32 %v1190, %v1405
      %v1407 = vpop.f32.mrb[0].mxu0
      %1408 = vmatprep.mubr.bf16.mxu0 0
      %1409 = vmatmul.mubr.bf16.gmra.mrb[0].mxu0 %v1313
      %v1410 = vpop.f32.mrb[0].mxu0
      %v1411 = vadd.f32 %v1195, %v1410
      %v1412 = vpop.f32.mrb[0].mxu0
      %v1413 = vpop.f32.mrb[0].mxu0
      %v1414 = vadd.f32 %v1198, %v1413
      %v1415 = vpop.f32.mrb[0].mxu0
      %1416 = vmatprep.mubr.bf16.mxu0 0
      %1417 = vmatmul.mubr.bf16.gmra.mrb[0].mxu0 %v1315
      %v1418 = vpop.f32.mrb[0].mxu0
      %v1419 = vadd.f32 %v1203, %v1418
      %v1420 = vpop.f32.mrb[0].mxu0
      %v1421 = vpop.f32.mrb[0].mxu0
      %v1422 = vadd.f32 %v1206, %v1421
      %v1423 = vpop.f32.mrb[0].mxu0
      %1424 = vmatprep.mubr.bf16.mxu0 0
      %1425 = vmatmul.mubr.bf16.gmra.mrb[0].mxu0 %v1317
      %v1426 = vpop.f32.mrb[0].mxu0
      %v1427 = vadd.f32 %v1211, %v1426
      %v1428 = vpop.f32.mrb[0].mxu0
      %v1429 = vpop.f32.mrb[0].mxu0
      %v1430 = vadd.f32 %v1214, %v1429
      %v1431 = vpop.f32.mrb[0].mxu0
      %1432 = vmatprep.mubr.bf16.mxu0 0
      %1433 = vmatmul.mubr.bf16.gmra.mrb[0].mxu0 %v1319
      %v1434 = vpop.f32.mrb[0].mxu0
      %v1435 = vadd.f32 %v1219, %v1434
      %v1436 = vpop.f32.mrb[0].mxu0
      %v1437 = vpop.f32.mrb[0].mxu0
      %v1438 = vadd.f32 %v1222, %v1437
      %v1439 = vpop.f32.mrb[0].mxu0
      %1440 = vmatprep.mubr.bf16.mxu0 0
      %1441 = vmatmul.mubr.bf16.gmra.mrb[0].mxu0 %v1321
      %v1442 = vpop.f32.mrb[0].mxu0
      %v1443 = vadd.f32 %v1227, %v1442
      %v1444 = vpop.f32.mrb[0].mxu0
      %v1445 = vpop.f32.mrb[0].mxu0
      %v1446 = vadd.f32 %v1230, %v1445
      %v1447 = vpop.f32.mrb[0].mxu0
      %1448 = vmatprep.mubr.bf16.mxu0 0
      %1449 = vmatmul.mubr.bf16.gmra.mrb[0].mxu0 %v1323
      %v1450 = vpop.f32.mrb[0].mxu0
      %v1451 = vadd.f32 %v1235, %v1450
      %v1452 = vpop.f32.mrb[0].mxu0
      %v1453 = vpop.f32.mrb[0].mxu0
      %v1454 = vadd.f32 %v1238, %v1453
      %v1455 = vpop.f32.mrb[0].mxu0
      %1456 = vmatprep.mubr.bf16.mxu0 0
      %1457 = vmatmul.mubr.bf16.gmra.mrb[0].mxu0 %v1325
      %v1458 = vpop.f32.mrb[0].mxu0
      %v1459 = vadd.f32 %v1243, %v1458
      %v1460 = vpop.f32.mrb[0].mxu0
      %v1461 = vpop.f32.mrb[0].mxu0
      %v1462 = vadd.f32 %v1246, %v1461
      %v1463 = vpop.f32.mrb[0].mxu0
      %1464 = vmatprep.mubr.bf16.mxu0 0
      %1465 = vmatmul.mubr.bf16.gmra.mrb[0].mxu0 %v1327
      %v1466 = vpop.f32.mrb[0].mxu0
      %v1467 = vadd.f32 %v1251, %v1466
      %v1468 = vpop.f32.mrb[0].mxu0
      %v1469 = vpop.f32.mrb[0].mxu0
      %v1470 = vadd.f32 %v1254, %v1469
      %v1471 = vpop.f32.mrb[0].mxu0
      %1472 = vmatprep.mubr.bf16.mxu0 0
      %1473 = vmatmul.mubr.bf16.gmra.mrb[0].mxu0 %v1329
      %v1474 = vpop.f32.mrb[0].mxu0
      %v1475 = vadd.f32 %v1259, %v1474
      %v1476 = vpop.f32.mrb[0].mxu0
      %v1477 = vpop.f32.mrb[0].mxu0
      %v1478 = vadd.f32 %v1262, %v1477
      %v1479 = vpop.f32.mrb[0].mxu0
      %1480 = vmatprep.mubr.bf16.mxu0 0
      %1481 = vmatmul.mubr.bf16.gmra.mrb[0].mxu0 %v1331
      %v1482 = vpop.f32.mrb[0].mxu0
      %v1483 = vadd.f32 %v1267, %v1482
      %v1484 = vpop.f32.mrb[0].mxu0
      %v1485 = vpop.f32.mrb[0].mxu0
      %v1486 = vadd.f32 %v1270, %v1485
      %v1487 = vpop.f32.mrb[0].mxu0
      %1488 = vmatprep.mubr.bf16.mxu0 0
      %1489 = vmatmul.mubr.bf16.gmra.mrb[0].mxu0 %v1333
      %v1490 = vpop.f32.mrb[0].mxu0
      %v1491 = vadd.f32 %v1275, %v1490
      %v1492 = vpop.f32.mrb[0].mxu0
      %v1493 = vpop.f32.mrb[0].mxu0
      %v1494 = vadd.f32 %v1278, %v1493
      %v1495 = vpop.f32.mrb[0].mxu0
      %1496 = vmatprep.mubr.bf16.mxu0 0
      %1497 = vmatmul.mubr.bf16.gmra.mrb[0].mxu0 %v1335
      %v1498 = vpop.f32.mrb[0].mxu0
      %v1499 = vadd.f32 %v1283, %v1498
      %v1500 = vpop.f32.mrb[0].mxu0
      %v1501 = vpop.f32.mrb[0].mxu0
      %v1502 = vadd.f32 %v1286, %v1501
      %v1503 = vpop.f32.mrb[0].mxu0
      %1504 = vmatprep.mubr.bf16.mxu0 0
      %1505 = vmatmul.mubr.bf16.gmra.mrb[0].mxu0 %v1337
      %v1506 = vpop.f32.mrb[0].mxu0
      %v1507 = vadd.f32 %v1291, %v1506
      %v1508 = vpop.f32.mrb[0].mxu0
      %v1509 = vpop.f32.mrb[0].mxu0
      %v1510 = vadd.f32 %v1294, %v1509
      %v1511 = vpop.f32.mrb[0].mxu0
      %1512 = vmatprep.mubr.bf16.mxu0 0
      %1513 = vmatmul.mubr.bf16.gmra.mrb[0].mxu0 %v1339
      %v1514 = vpop.f32.mrb[0].mxu0
      %v1515 = vadd.f32 %v1299, %v1514
      %v1516 = vpop.f32.mrb[0].mxu0
      %v1517 = vpop.f32.mrb[0].mxu0
      %v1518 = vadd.f32 %v1302, %v1517
      %v1519 = vpop.f32.mrb[0].mxu0
      %1520 = vdwg.mxu0
      %v1521 = vld [vmem:[#allocation2] sm:$0xe]
      %s1522 = scalar_lea.vmem %s210, 8
      %v1523 = vld [vmem:[%s1522] sm:$0xf]
      %v1525 = vunpack.c.l.b16 %v1521
      %v1526 = vpack.c.b16 %v865, %v1525
      %vm1527 = vcmask 1046528
      %v1528 = vrot.slane %v1526, 1
      %v1529 = vrot.slane %v902, 1
      %v1530 = vsel %vm1527, %v1528, %v1529
      %v1531 = vrot.slane %v903, 1
      %v1532 = vsel %vm1527, %v1529, %v1531
      %v1533 = vrot.slane %v904, 1
      %v1534 = vsel %vm1527, %v1531, %v1533
      %v1535 = vrot.slane %v905, 1
      %v1536 = vsel %vm1527, %v1533, %v1535
      %v1537 = vrot.slane %v906, 1
      %v1538 = vsel %vm1527, %v1535, %v1537
      %v1539 = vrot.slane %v907, 1
      %v1540 = vsel %vm1527, %v1537, %v1539
      %v1541 = vrot.slane %v908, 1
      %v1542 = vsel %vm1527, %v1539, %v1541
      %v1543 = vrot.slane %v909, 1
      %v1544 = vsel %vm1527, %v1541, %v1543
      %v1545 = vrot.slane %v910, 1
      %v1546 = vsel %vm1527, %v1543, %v1545
      %v1547 = vrot.slane %v911, 1
      %v1548 = vsel %vm1527, %v1545, %v1547
      %v1549 = vrot.slane %v912, 1
      %v1550 = vsel %vm1527, %v1547, %v1549
      %v1551 = vrot.slane %v913, 1
      %v1552 = vsel %vm1527, %v1549, %v1551
      %v1553 = vrot.slane %v914, 1
      %v1554 = vsel %vm1527, %v1551, %v1553
      %v1555 = vrot.slane %v915, 1
      %v1556 = vsel %vm1527, %v1553, %v1555
      %v1557 = vrot.slane %v916, 1
      %v1558 = vsel %vm1527, %v1555, %v1557
      %v1559 = vrot.slane %v917, 1
      %v1560 = vsel %vm1527, %v1557, %v1559
      %v1561 = vrot.slane %v918, 1
      %v1562 = vsel %vm1527, %v1559, %v1561
      %v1563 = vrot.slane %v919, 1
      %v1564 = vsel %vm1527, %v1561, %v1563
      %v1566 = vsel %vm1069, %v1530, 0
      %v1569 = vsel %vm1069, %v1532, 0
      %v1572 = vsel %vm1069, %v1534, 0
      %v1575 = vsel %vm1069, %v1536, 0
      %v1578 = vsel %vm1069, %v1538, 0
      %v1581 = vsel %vm1069, %v1540, 0
      %v1584 = vsel %vm1069, %v1542, 0
      %v1587 = vsel %vm1069, %v1544, 0
      %v1590 = vsel %vm1069, %v1546, 0
      %v1593 = vsel %vm1069, %v1548, 0
      %v1596 = vsel %vm1069, %v1550, 0
      %v1599 = vsel %vm1069, %v1552, 0
      %v1602 = vsel %vm1069, %v1554, 0
      %v1605 = vsel %vm1069, %v1556, 0
      %v1608 = vsel %vm1069, %v1558, 0
      %v1611 = vsel %vm1069, %v1560, 0
      %v1614 = vsel %vm1069, %v1562, 0
      %v1617 = vsel %vm1069, %v1564, 0
      %v1620 = vsel %vm1124, %v1523, 0
      %1622 = vmatprep.subr.bf16.mxu0 0
      %1623 = vmatpush1.bf16.msra.mxu0 %v1620
      %1624 = vmatprep.subr.bf16.mxu0 0
      %1625 = vmatpush1.bf16.msra.mxu0 0
      %1626 = vmatprep.subr.bf16.mxu0 0
      %1627 = vmatpush1.bf16.msra.mxu0 0
      %1628 = vmatprep.subr.bf16.mxu0 0
      %1629 = vmatpush1.bf16.msra.mxu0 0
      %1630 = vmatprep.subr.bf16.mxu0 0
      %1631 = vmatpush1.bf16.msra.mxu0 0
      %1632 = vmatprep.subr.bf16.mxu0 0
      %1633 = vmatpush1.bf16.msra.mxu0 0
      %1634 = vmatprep.subr.bf16.mxu0 0
      %1635 = vmatpush1.bf16.msra.mxu0 0
      %1636 = vmatprep.subr.bf16.mxu0 0
      %1637 = vmatpush1.bf16.msra.mxu0 0
      %1638 = vmatprep.subr.bf16.mxu0 0
      %1639 = vmatpush1.bf16.msra.mxu0 0
      %1640 = vmatprep.subr.bf16.mxu0 0
      %1641 = vmatpush1.bf16.msra.mxu0 0
      %1642 = vmatprep.subr.bf16.mxu0 0
      %1643 = vmatpush1.bf16.msra.mxu0 0
      %1644 = vmatprep.subr.bf16.mxu0 0
      %1645 = vmatpush1.bf16.msra.mxu0 0
      %1646 = vmatprep.subr.bf16.mxu0 0
      %1647 = vmatpush1.bf16.msra.mxu0 0
      %1648 = vmatprep.subr.bf16.mxu0 0
      %1649 = vmatpush1.bf16.msra.mxu0 0
      %1650 = vmatprep.subr.bf16.mxu0 0
      %1651 = vmatpush1.bf16.msra.mxu0 0
      %1652 = vmatprep.subr.bf16.mxu0 0
      %1653 = vmatpush1.bf16.msra.mxu0 0
      %1654 = vmatprep.mubr.bf16.mxu0 0
      %1655 = vmatmul.mubr.bf16.gmra.mrb[0].mxu0 %v1566
      %v1656 = vpop.f32.mrb[0].mxu0
      %v1657 = vadd.f32 0.0, %v1656
      %v1658 = vpop.f32.mrb[0].mxu0
      %v1659 = vpop.f32.mrb[0].mxu0
      %v1660 = vadd.f32 0.0, %v1659
      %v1661 = vpop.f32.mrb[0].mxu0
      %1662 = vmatprep.mubr.bf16.mxu0 0
      %1663 = vmatmul.mubr.bf16.gmra.mrb[0].mxu0 %v1569
      %v1664 = vpop.f32.mrb[0].mxu0
      %v1665 = vadd.f32 0.0, %v1664
      %v1666 = vpop.f32.mrb[0].mxu0
      %v1667 = vpop.f32.mrb[0].mxu0
      %v1668 = vadd.f32 0.0, %v1667
      %v1669 = vpop.f32.mrb[0].mxu0
      %1670 = vmatprep.mubr.bf16.mxu0 0
      %1671 = vmatmul.mubr.bf16.gmra.mrb[0].mxu0 %v1572
      %v1672 = vpop.f32.mrb[0].mxu0
      %v1673 = vadd.f32 0.0, %v1672
      %v1674 = vpop.f32.mrb[0].mxu0
      %v1675 = vpop.f32.mrb[0].mxu0
      %v1676 = vadd.f32 0.0, %v1675
      %v1677 = vpop.f32.mrb[0].mxu0
      %1678 = vmatprep.mubr.bf16.mxu0 0
      %1679 = vmatmul.mubr.bf16.gmra.mrb[0].mxu0 %v1575
      %v1680 = vpop.f32.mrb[0].mxu0
      %v1681 = vadd.f32 0.0, %v1680
      %v1682 = vpop.f32.mrb[0].mxu0
      %v1683 = vpop.f32.mrb[0].mxu0
      %v1684 = vadd.f32 0.0, %v1683
      %v1685 = vpop.f32.mrb[0].mxu0
      %1686 = vmatprep.mubr.bf16.mxu0 0
      %1687 = vmatmul.mubr.bf16.gmra.mrb[0].mxu0 %v1578
      %v1688 = vpop.f32.mrb[0].mxu0
      %v1689 = vadd.f32 0.0, %v1688
      %v1690 = vpop.f32.mrb[0].mxu0
      %v1691 = vpop.f32.mrb[0].mxu0
      %v1692 = vadd.f32 0.0, %v1691
      %v1693 = vpop.f32.mrb[0].mxu0
      %1694 = vmatprep.mubr.bf16.mxu0 0
      %1695 = vmatmul.mubr.bf16.gmra.mrb[0].mxu0 %v1581
      %v1696 = vpop.f32.mrb[0].mxu0
      %v1697 = vadd.f32 0.0, %v1696
      %v1698 = vpop.f32.mrb[0].mxu0
      %v1699 = vpop.f32.mrb[0].mxu0
      %v1700 = vadd.f32 0.0, %v1699
      %v1701 = vpop.f32.mrb[0].mxu0
      %1702 = vmatprep.mubr.bf16.mxu0 0
      %1703 = vmatmul.mubr.bf16.gmra.mrb[0].mxu0 %v1584
      %v1704 = vpop.f32.mrb[0].mxu0
      %v1705 = vadd.f32 0.0, %v1704
      %v1706 = vpop.f32.mrb[0].mxu0
      %v1707 = vpop.f32.mrb[0].mxu0
      %v1708 = vadd.f32 0.0, %v1707
      %v1709 = vpop.f32.mrb[0].mxu0
      %1710 = vmatprep.mubr.bf16.mxu0 0
      %1711 = vmatmul.mubr.bf16.gmra.mrb[0].mxu0 %v1587
      %v1712 = vpop.f32.mrb[0].mxu0
      %v1713 = vadd.f32 0.0, %v1712
      %v1714 = vpop.f32.mrb[0].mxu0
      %v1715 = vpop.f32.mrb[0].mxu0
      %v1716 = vadd.f32 0.0, %v1715
      %v1717 = vpop.f32.mrb[0].mxu0
      %1718 = vmatprep.mubr.bf16.mxu0 0
      %1719 = vmatmul.mubr.bf16.gmra.mrb[0].mxu0 %v1590
      %v1720 = vpop.f32.mrb[0].mxu0
      %v1721 = vadd.f32 0.0, %v1720
      %v1722 = vpop.f32.mrb[0].mxu0
      %v1723 = vpop.f32.mrb[0].mxu0
      %v1724 = vadd.f32 0.0, %v1723
      %v1725 = vpop.f32.mrb[0].mxu0
      %1726 = vmatprep.mubr.bf16.mxu0 0
      %1727 = vmatmul.mubr.bf16.gmra.mrb[0].mxu0 %v1593
      %v1728 = vpop.f32.mrb[0].mxu0
      %v1729 = vadd.f32 0.0, %v1728
      %v1730 = vpop.f32.mrb[0].mxu0
      %v1731 = vpop.f32.mrb[0].mxu0
      %v1732 = vadd.f32 0.0, %v1731
      %v1733 = vpop.f32.mrb[0].mxu0
      %1734 = vmatprep.mubr.bf16.mxu0 0
      %1735 = vmatmul.mubr.bf16.gmra.mrb[0].mxu0 %v1596
      %v1736 = vpop.f32.mrb[0].mxu0
      %v1737 = vadd.f32 0.0, %v1736
      %v1738 = vpop.f32.mrb[0].mxu0
      %v1739 = vpop.f32.mrb[0].mxu0
      %v1740 = vadd.f32 0.0, %v1739
      %v1741 = vpop.f32.mrb[0].mxu0
      %1742 = vmatprep.mubr.bf16.mxu0 0
      %1743 = vmatmul.mubr.bf16.gmra.mrb[0].mxu0 %v1599
      %v1744 = vpop.f32.mrb[0].mxu0
      %v1745 = vadd.f32 0.0, %v1744
      %v1746 = vpop.f32.mrb[0].mxu0
      %v1747 = vpop.f32.mrb[0].mxu0
      %v1748 = vadd.f32 0.0, %v1747
      %v1749 = vpop.f32.mrb[0].mxu0
      %1750 = vmatprep.mubr.bf16.mxu0 0
      %1751 = vmatmul.mubr.bf16.gmra.mrb[0].mxu0 %v1602
      %v1752 = vpop.f32.mrb[0].mxu0
      %v1753 = vadd.f32 0.0, %v1752
      %v1754 = vpop.f32.mrb[0].mxu0
      %v1755 = vpop.f32.mrb[0].mxu0
      %v1756 = vadd.f32 0.0, %v1755
      %v1757 = vpop.f32.mrb[0].mxu0
      %1758 = vmatprep.mubr.bf16.mxu0 0
      %1759 = vmatmul.mubr.bf16.gmra.mrb[0].mxu0 %v1605
      %v1760 = vpop.f32.mrb[0].mxu0
      %v1761 = vadd.f32 0.0, %v1760
      %v1762 = vpop.f32.mrb[0].mxu0
      %v1763 = vpop.f32.mrb[0].mxu0
      %v1764 = vadd.f32 0.0, %v1763
      %v1765 = vpop.f32.mrb[0].mxu0
      %1766 = vmatprep.mubr.bf16.mxu0 0
      %1767 = vmatmul.mubr.bf16.gmra.mrb[0].mxu0 %v1608
      %v1768 = vpop.f32.mrb[0].mxu0
      %v1769 = vadd.f32 0.0, %v1768
      %v1770 = vpop.f32.mrb[0].mxu0
      %v1771 = vpop.f32.mrb[0].mxu0
      %v1772 = vadd.f32 0.0, %v1771
      %v1773 = vpop.f32.mrb[0].mxu0
      %1774 = vmatprep.mubr.bf16.mxu0 0
      %1775 = vmatmul.mubr.bf16.gmra.mrb[0].mxu0 %v1611
      %v1776 = vpop.f32.mrb[0].mxu0
      %v1777 = vadd.f32 0.0, %v1776
      %v1778 = vpop.f32.mrb[0].mxu0
      %v1779 = vpop.f32.mrb[0].mxu0
      %v1780 = vadd.f32 0.0, %v1779
      %v1781 = vpop.f32.mrb[0].mxu0
      %1782 = vmatprep.mubr.bf16.mxu0 0
      %1783 = vmatmul.mubr.bf16.gmra.mrb[0].mxu0 %v1614
      %v1784 = vpop.f32.mrb[0].mxu0
      %v1785 = vadd.f32 0.0, %v1784
      %v1786 = vpop.f32.mrb[0].mxu0
      %v1787 = vpop.f32.mrb[0].mxu0
      %v1788 = vadd.f32 0.0, %v1787
      %v1789 = vpop.f32.mrb[0].mxu0
      %1790 = vmatprep.mubr.bf16.mxu0 0
      %1791 = vmatmul.mubr.bf16.gmra.mrb[0].mxu0 %v1617
      %v1792 = vpop.f32.mrb[0].mxu0
      %v1793 = vadd.f32 0.0, %v1792
      %v1794 = vpop.f32.mrb[0].mxu0
      %v1795 = vpop.f32.mrb[0].mxu0
      %v1796 = vadd.f32 0.0, %v1795
      %v1797 = vpop.f32.mrb[0].mxu0
      %1798 = vdwg.mxu0
      %v1799 = vadd.f32 %v1379, %v1657
      %v1800 = vadd.f32 %v1382, %v1660
      %v1801 = vadd.f32 %v1387, %v1665
      %v1802 = vadd.f32 %v1390, %v1668
      %v1803 = vadd.f32 %v1395, %v1673
      %v1804 = vadd.f32 %v1398, %v1676
      %v1805 = vadd.f32 %v1403, %v1681
      %v1806 = vadd.f32 %v1406, %v1684
      %v1807 = vadd.f32 %v1411, %v1689
      %v1808 = vadd.f32 %v1414, %v1692
      %v1809 = vadd.f32 %v1419, %v1697
      %v1810 = vadd.f32 %v1422, %v1700
      %v1811 = vadd.f32 %v1427, %v1705
      %v1812 = vadd.f32 %v1430, %v1708
      %v1813 = vadd.f32 %v1435, %v1713
      %v1814 = vadd.f32 %v1438, %v1716
      %v1815 = vadd.f32 %v1443, %v1721
      %v1816 = vadd.f32 %v1446, %v1724
      %v1817 = vadd.f32 %v1451, %v1729
      %v1818 = vadd.f32 %v1454, %v1732
      %v1819 = vadd.f32 %v1459, %v1737
      %v1820 = vadd.f32 %v1462, %v1740
      %v1821 = vadd.f32 %v1467, %v1745
      %v1822 = vadd.f32 %v1470, %v1748
      %v1823 = vadd.f32 %v1475, %v1753
      %v1824 = vadd.f32 %v1478, %v1756
      %v1825 = vadd.f32 %v1483, %v1761
      %v1826 = vadd.f32 %v1486, %v1764
      %v1827 = vadd.f32 %v1491, %v1769
      %v1828 = vadd.f32 %v1494, %v1772
      %v1829 = vadd.f32 %v1499, %v1777
      %v1830 = vadd.f32 %v1502, %v1780
      %v1831 = vadd.f32 %v1507, %v1785
      %v1832 = vadd.f32 %v1510, %v1788
      %v1833 = vadd.f32 %v1515, %v1793
      %v1834 = vadd.f32 %v1518, %v1796
      %v1835 = vld [vmem:[#allocation2 + $0x8] sm:$0xe]
      %v1836 = vld [vmem:[#allocation2 + $0xc] sm:$0xf]
      %v1837 = vld [vmem:[#allocation2 + $0x10] sm:$0xf]
      %v1838 = vld [vmem:[#allocation2 + $0x14] sm:$0xf]
      %v1839 = vld [vmem:[#allocation2 + $0x18] sm:$0xf]
      %v1840 = vld [vmem:[#allocation2 + $0x1c] sm:$0xf]
      %v1841 = vld [vmem:[#allocation2 + $0x20] sm:$0xf]
      %v1842 = vld [vmem:[#allocation2 + $0x24] sm:$0xf]
      %v1843 = vld [vmem:[#allocation2 + $0x28] sm:$0xf]
      %v1844 = vld [vmem:[#allocation2 + $0x2c] sm:$0xf]
      %v1845 = vld [vmem:[#allocation2 + $0x30] sm:$0xf]
      %v1846 = vld [vmem:[#allocation2 + $0x34] sm:$0xf]
      %v1847 = vld [vmem:[#allocation2 + $0x38] sm:$0xf]
      %v1848 = vld [vmem:[#allocation2 + $0x3c] sm:$0xf]
      %v1849 = vld [vmem:[#allocation2 + $0x40] sm:$0xf]
      %v1850 = vld [vmem:[#allocation2 + $0x44] sm:$0xf]
      %v1851 = vld [vmem:[#allocation2 + $0x48] sm:$0xf]
      %v1852 = vld [vmem:[#allocation2 + $0x4c] sm:$0xf]
      %v1853 = vld [vmem:[#allocation2 + $0x50] sm:$0xf]
      %v1854 = vld [vmem:[#allocation2 + $0x54] sm:$0xf]
      %v1855 = vld [vmem:[#allocation2 + $0x58] sm:$0xf]
      %v1856 = vld [vmem:[#allocation2 + $0x5c] sm:$0xf]
      %v1857 = vld [vmem:[#allocation2 + $0x60] sm:$0xf]
      %v1858 = vld [vmem:[#allocation2 + $0x64] sm:$0xf]
      %v1859 = vld [vmem:[#allocation2 + $0x68] sm:$0xf]
      %v1860 = vld [vmem:[#allocation2 + $0x6c] sm:$0xf]
      %v1861 = vld [vmem:[#allocation2 + $0x70] sm:$0xf]
      %v1862 = vld [vmem:[#allocation2 + $0x74] sm:$0xf]
      %v1863 = vld [vmem:[#allocation2 + $0x78] sm:$0xf]
      %v1864 = vld [vmem:[#allocation2 + $0x7c] sm:$0xf]
      %v1865 = vld [vmem:[#allocation2 + $0x80] sm:$0xf]
      %v1866 = vld [vmem:[#allocation2 + $0x84] sm:$0xf]
      %v1867 = vld [vmem:[#allocation2 + $0x88] sm:$0xf]
      %v1868 = vld [vmem:[#allocation2 + $0x8c] sm:$0xf]
      %v1869 = vld [vmem:[#allocation2 + $0x90] sm:$0xf]
      %v1870 = vld [vmem:[#allocation2 + $0x94] sm:$0xf]
      %v1871 = vld [vmem:[#allocation2 + $0x98] sm:$0x1]
      %s1872 = scalar_lea.vmem %s210, 12
      %v1873 = vld [vmem:[%s1872] sm:$0xf]
      %v1911 = vunpack.c.l.b16 %v1835
      %v1912 = vunpack.c.l.b16 %v1836
      %v1913 = vunpack.c.l.b16 %v1837
      %v1914 = vunpack.c.l.b16 %v1838
      %v1915 = vunpack.c.l.b16 %v1839
      %v1916 = vunpack.c.l.b16 %v1840
      %v1917 = vunpack.c.l.b16 %v1841
      %v1918 = vunpack.c.l.b16 %v1842
      %v1919 = vunpack.c.l.b16 %v1843
      %v1920 = vunpack.c.l.b16 %v1844
      %v1921 = vunpack.c.l.b16 %v1845
      %v1922 = vunpack.c.l.b16 %v1846
      %v1923 = vunpack.c.l.b16 %v1847
      %v1924 = vunpack.c.l.b16 %v1848
      %v1925 = vunpack.c.l.b16 %v1849
      %v1926 = vunpack.c.l.b16 %v1850
      %v1927 = vunpack.c.l.b16 %v1851
      %v1928 = vunpack.c.l.b16 %v1852
      %v1929 = vunpack.c.l.b16 %v1853
      %v1930 = vunpack.c.l.b16 %v1854
      %v1931 = vunpack.c.l.b16 %v1855
      %v1932 = vunpack.c.l.b16 %v1856
      %v1933 = vunpack.c.l.b16 %v1857
      %v1934 = vunpack.c.l.b16 %v1858
      %v1935 = vunpack.c.l.b16 %v1859
      %v1936 = vunpack.c.l.b16 %v1860
      %v1937 = vunpack.c.l.b16 %v1861
      %v1938 = vunpack.c.l.b16 %v1862
      %v1939 = vunpack.c.l.b16 %v1863
      %v1940 = vunpack.c.l.b16 %v1864
      %v1941 = vunpack.c.l.b16 %v1865
      %v1942 = vunpack.c.l.b16 %v1866
      %v1943 = vunpack.c.l.b16 %v1867
      %v1944 = vunpack.c.l.b16 %v1868
      %v1945 = vunpack.c.l.b16 %v1869
      %v1946 = vunpack.c.l.b16 %v1870
      %v1947 = vunpack.c.l.b16 %v1871
      %v1948 = vpack.c.b16 %v1912, %v1911
      %v1949 = vpack.c.b16 %v1914, %v1913
      %v1950 = vpack.c.b16 %v1916, %v1915
      %v1951 = vpack.c.b16 %v1918, %v1917
      %v1952 = vpack.c.b16 %v1920, %v1919
      %v1953 = vpack.c.b16 %v1922, %v1921
      %v1954 = vpack.c.b16 %v1924, %v1923
      %v1955 = vpack.c.b16 %v1926, %v1925
      %v1956 = vpack.c.b16 %v1928, %v1927
      %v1957 = vpack.c.b16 %v1930, %v1929
      %v1958 = vpack.c.b16 %v1932, %v1931
      %v1959 = vpack.c.b16 %v1934, %v1933
      %v1960 = vpack.c.b16 %v1936, %v1935
      %v1961 = vpack.c.b16 %v1938, %v1937
      %v1962 = vpack.c.b16 %v1940, %v1939
      %v1963 = vpack.c.b16 %v1942, %v1941
      %v1964 = vpack.c.b16 %v1944, %v1943
      %v1965 = vpack.c.b16 %v1946, %v1945
      %v1966 = vpack.c.b16 %v1947, %v1947
      %v1967 = vrot.slane %v1948, 1
      %v1968 = vrot.slane %v1949, 1
      %v1969 = vsel %vm1527, %v1967, %v1968
      %v1970 = vrot.slane %v1950, 1
      %v1971 = vsel %vm1527, %v1968, %v1970
      %v1972 = vrot.slane %v1951, 1
      %v1973 = vsel %vm1527, %v1970, %v1972
      %v1974 = vrot.slane %v1952, 1
      %v1975 = vsel %vm1527, %v1972, %v1974
      %v1976 = vrot.slane %v1953, 1
      %v1977 = vsel %vm1527, %v1974, %v1976
      %v1978 = vrot.slane %v1954, 1
      %v1979 = vsel %vm1527, %v1976, %v1978
      %v1980 = vrot.slane %v1955, 1
      %v1981 = vsel %vm1527, %v1978, %v1980
      %v1982 = vrot.slane %v1956, 1
      %v1983 = vsel %vm1527, %v1980, %v1982
      %v1984 = vrot.slane %v1957, 1
      %v1985 = vsel %vm1527, %v1982, %v1984
      %v1986 = vrot.slane %v1958, 1
      %v1987 = vsel %vm1527, %v1984, %v1986
      %v1988 = vrot.slane %v1959, 1
      %v1989 = vsel %vm1527, %v1986, %v1988
      %v1990 = vrot.slane %v1960, 1
      %v1991 = vsel %vm1527, %v1988, %v1990
      %v1992 = vrot.slane %v1961, 1
      %v1993 = vsel %vm1527, %v1990, %v1992
      %v1994 = vrot.slane %v1962, 1
      %v1995 = vsel %vm1527, %v1992, %v1994
      %v1996 = vrot.slane %v1963, 1
      %v1997 = vsel %vm1527, %v1994, %v1996
      %v1998 = vrot.slane %v1964, 1
      %v1999 = vsel %vm1527, %v1996, %v1998
      %v2000 = vrot.slane %v1965, 1
      %v2001 = vsel %vm1527, %v1998, %v2000
      %v2002 = vrot.slane %v1966, 1
      %v2003 = vsel %vm1527, %v2000, %v2002
      %v2005 = vsel %vm1069, %v1969, 0
      %v2008 = vsel %vm1069, %v1971, 0
      %v2011 = vsel %vm1069, %v1973, 0
      %v2014 = vsel %vm1069, %v1975, 0
      %v2017 = vsel %vm1069, %v1977, 0
      %v2020 = vsel %vm1069, %v1979, 0
      %v2023 = vsel %vm1069, %v1981, 0
      %v2026 = vsel %vm1069, %v1983, 0
      %v2029 = vsel %vm1069, %v1985, 0
      %v2032 = vsel %vm1069, %v1987, 0
      %v2035 = vsel %vm1069, %v1989, 0
      %v2038 = vsel %vm1069, %v1991, 0
      %v2041 = vsel %vm1069, %v1993, 0
      %v2044 = vsel %vm1069, %v1995, 0
      %v2047 = vsel %vm1069, %v1997, 0
      %v2050 = vsel %vm1069, %v1999, 0
      %v2053 = vsel %vm1069, %v2001, 0
      %v2056 = vsel %vm1069, %v2003, 0
      %v2059 = vsel %vm1124, %v1873, 0
      %2061 = vmatprep.subr.bf16.mxu0 0
      %2062 = vmatpush1.bf16.msra.mxu0 %v2059
      %2063 = vmatprep.subr.bf16.mxu0 0
      %2064 = vmatpush1.bf16.msra.mxu0 0
      %2065 = vmatprep.subr.bf16.mxu0 0
      %2066 = vmatpush1.bf16.msra.mxu0 0
      %2067 = vmatprep.subr.bf16.mxu0 0
      %2068 = vmatpush1.bf16.msra.mxu0 0
      %2069 = vmatprep.subr.bf16.mxu0 0
      %2070 = vmatpush1.bf16.msra.mxu0 0
      %2071 = vmatprep.subr.bf16.mxu0 0
      %2072 = vmatpush1.bf16.msra.mxu0 0
      %2073 = vmatprep.subr.bf16.mxu0 0
      %2074 = vmatpush1.bf16.msra.mxu0 0
      %2075 = vmatprep.subr.bf16.mxu0 0
      %2076 = vmatpush1.bf16.msra.mxu0 0
      %2077 = vmatprep.subr.bf16.mxu0 0
      %2078 = vmatpush1.bf16.msra.mxu0 0
      %2079 = vmatprep.subr.bf16.mxu0 0
      %2080 = vmatpush1.bf16.msra.mxu0 0
      %2081 = vmatprep.subr.bf16.mxu0 0
      %2082 = vmatpush1.bf16.msra.mxu0 0
      %2083 = vmatprep.subr.bf16.mxu0 0
      %2084 = vmatpush1.bf16.msra.mxu0 0
      %2085 = vmatprep.subr.bf16.mxu0 0
      %2086 = vmatpush1.bf16.msra.mxu0 0
      %2087 = vmatprep.subr.bf16.mxu0 0
      %2088 = vmatpush1.bf16.msra.mxu0 0
      %2089 = vmatprep.subr.bf16.mxu0 0
      %2090 = vmatpush1.bf16.msra.mxu0 0
      %2091 = vmatprep.subr.bf16.mxu0 0
      %2092 = vmatpush1.bf16.msra.mxu0 0
      %2093 = vmatprep.mubr.bf16.mxu0 0
      %2094 = vmatmul.mubr.bf16.gmra.mrb[0].mxu0 %v2005
      %v2095 = vpop.f32.mrb[0].mxu0
      %v2096 = vadd.f32 0.0, %v2095
      %v2097 = vpop.f32.mrb[0].mxu0
      %v2098 = vpop.f32.mrb[0].mxu0
      %v2099 = vadd.f32 0.0, %v2098
      %v2100 = vpop.f32.mrb[0].mxu0
      %2101 = vmatprep.mubr.bf16.mxu0 0
      %2102 = vmatmul.mubr.bf16.gmra.mrb[0].mxu0 %v2008
      %v2103 = vpop.f32.mrb[0].mxu0
      %v2104 = vadd.f32 0.0, %v2103
      %v2105 = vpop.f32.mrb[0].mxu0
      %v2106 = vpop.f32.mrb[0].mxu0
      %v2107 = vadd.f32 0.0, %v2106
      %v2108 = vpop.f32.mrb[0].mxu0
      %2109 = vmatprep.mubr.bf16.mxu0 0
      %2110 = vmatmul.mubr.bf16.gmra.mrb[0].mxu0 %v2011
      %v2111 = vpop.f32.mrb[0].mxu0
      %v2112 = vadd.f32 0.0, %v2111
      %v2113 = vpop.f32.mrb[0].mxu0
      %v2114 = vpop.f32.mrb[0].mxu0
      %v2115 = vadd.f32 0.0, %v2114
      %v2116 = vpop.f32.mrb[0].mxu0
      %2117 = vmatprep.mubr.bf16.mxu0 0
      %2118 = vmatmul.mubr.bf16.gmra.mrb[0].mxu0 %v2014
      %v2119 = vpop.f32.mrb[0].mxu0
      %v2120 = vadd.f32 0.0, %v2119
      %v2121 = vpop.f32.mrb[0].mxu0
      %v2122 = vpop.f32.mrb[0].mxu0
      %v2123 = vadd.f32 0.0, %v2122
      %v2124 = vpop.f32.mrb[0].mxu0
      %2125 = vmatprep.mubr.bf16.mxu0 0
      %2126 = vmatmul.mubr.bf16.gmra.mrb[0].mxu0 %v2017
      %v2127 = vpop.f32.mrb[0].mxu0
      %v2128 = vadd.f32 0.0, %v2127
      %v2129 = vpop.f32.mrb[0].mxu0
      %v2130 = vpop.f32.mrb[0].mxu0
      %v2131 = vadd.f32 0.0, %v2130
      %v2132 = vpop.f32.mrb[0].mxu0
      %2133 = vmatprep.mubr.bf16.mxu0 0
      %2134 = vmatmul.mubr.bf16.gmra.mrb[0].mxu0 %v2020
      %v2135 = vpop.f32.mrb[0].mxu0
      %v2136 = vadd.f32 0.0, %v2135
      %v2137 = vpop.f32.mrb[0].mxu0
      %v2138 = vpop.f32.mrb[0].mxu0
      %v2139 = vadd.f32 0.0, %v2138
      %v2140 = vpop.f32.mrb[0].mxu0
      %2141 = vmatprep.mubr.bf16.mxu0 0
      %2142 = vmatmul.mubr.bf16.gmra.mrb[0].mxu0 %v2023
      %v2143 = vpop.f32.mrb[0].mxu0
      %v2144 = vadd.f32 0.0, %v2143
      %v2145 = vpop.f32.mrb[0].mxu0
      %v2146 = vpop.f32.mrb[0].mxu0
      %v2147 = vadd.f32 0.0, %v2146
      %v2148 = vpop.f32.mrb[0].mxu0
      %2149 = vmatprep.mubr.bf16.mxu0 0
      %2150 = vmatmul.mubr.bf16.gmra.mrb[0].mxu0 %v2026
      %v2151 = vpop.f32.mrb[0].mxu0
      %v2152 = vadd.f32 0.0, %v2151
      %v2153 = vpop.f32.mrb[0].mxu0
      %v2154 = vpop.f32.mrb[0].mxu0
      %v2155 = vadd.f32 0.0, %v2154
      %v2156 = vpop.f32.mrb[0].mxu0
      %2157 = vmatprep.mubr.bf16.mxu0 0
      %2158 = vmatmul.mubr.bf16.gmra.mrb[0].mxu0 %v2029
      %v2159 = vpop.f32.mrb[0].mxu0
      %v2160 = vadd.f32 0.0, %v2159
      %v2161 = vpop.f32.mrb[0].mxu0
      %v2162 = vpop.f32.mrb[0].mxu0
      %v2163 = vadd.f32 0.0, %v2162
      %v2164 = vpop.f32.mrb[0].mxu0
      %2165 = vmatprep.mubr.bf16.mxu0 0
      %2166 = vmatmul.mubr.bf16.gmra.mrb[0].mxu0 %v2032
      %v2167 = vpop.f32.mrb[0].mxu0
      %v2168 = vadd.f32 0.0, %v2167
      %v2169 = vpop.f32.mrb[0].mxu0
      %v2170 = vpop.f32.mrb[0].mxu0
      %v2171 = vadd.f32 0.0, %v2170
      %v2172 = vpop.f32.mrb[0].mxu0
      %2173 = vmatprep.mubr.bf16.mxu0 0
      %2174 = vmatmul.mubr.bf16.gmra.mrb[0].mxu0 %v2035
      %v2175 = vpop.f32.mrb[0].mxu0
      %v2176 = vadd.f32 0.0, %v2175
      %v2177 = vpop.f32.mrb[0].mxu0
      %v2178 = vpop.f32.mrb[0].mxu0
      %v2179 = vadd.f32 0.0, %v2178
      %v2180 = vpop.f32.mrb[0].mxu0
      %2181 = vmatprep.mubr.bf16.mxu0 0
      %2182 = vmatmul.mubr.bf16.gmra.mrb[0].mxu0 %v2038
      %v2183 = vpop.f32.mrb[0].mxu0
      %v2184 = vadd.f32 0.0, %v2183
      %v2185 = vpop.f32.mrb[0].mxu0
      %v2186 = vpop.f32.mrb[0].mxu0
      %v2187 = vadd.f32 0.0, %v2186
      %v2188 = vpop.f32.mrb[0].mxu0
      %2189 = vmatprep.mubr.bf16.mxu0 0
      %2190 = vmatmul.mubr.bf16.gmra.mrb[0].mxu0 %v2041
      %v2191 = vpop.f32.mrb[0].mxu0
      %v2192 = vadd.f32 0.0, %v2191
      %v2193 = vpop.f32.mrb[0].mxu0
      %v2194 = vpop.f32.mrb[0].mxu0
      %v2195 = vadd.f32 0.0, %v2194
      %v2196 = vpop.f32.mrb[0].mxu0
      %2197 = vmatprep.mubr.bf16.mxu0 0
      %2198 = vmatmul.mubr.bf16.gmra.mrb[0].mxu0 %v2044
      %v2199 = vpop.f32.mrb[0].mxu0
      %v2200 = vadd.f32 0.0, %v2199
      %v2201 = vpop.f32.mrb[0].mxu0
      %v2202 = vpop.f32.mrb[0].mxu0
      %v2203 = vadd.f32 0.0, %v2202
      %v2204 = vpop.f32.mrb[0].mxu0
      %2205 = vmatprep.mubr.bf16.mxu0 0
      %2206 = vmatmul.mubr.bf16.gmra.mrb[0].mxu0 %v2047
      %v2207 = vpop.f32.mrb[0].mxu0
      %v2208 = vadd.f32 0.0, %v2207
      %v2209 = vpop.f32.mrb[0].mxu0
      %v2210 = vpop.f32.mrb[0].mxu0
      %v2211 = vadd.f32 0.0, %v2210
      %v2212 = vpop.f32.mrb[0].mxu0
      %2213 = vmatprep.mubr.bf16.mxu0 0
      %2214 = vmatmul.mubr.bf16.gmra.mrb[0].mxu0 %v2050
      %v2215 = vpop.f32.mrb[0].mxu0
      %v2216 = vadd.f32 0.0, %v2215
      %v2217 = vpop.f32.mrb[0].mxu0
      %v2218 = vpop.f32.mrb[0].mxu0
      %v2219 = vadd.f32 0.0, %v2218
      %v2220 = vpop.f32.mrb[0].mxu0
      %2221 = vmatprep.mubr.bf16.mxu0 0
      %2222 = vmatmul.mubr.bf16.gmra.mrb[0].mxu0 %v2053
      %v2223 = vpop.f32.mrb[0].mxu0
      %v2224 = vadd.f32 0.0, %v2223
      %v2225 = vpop.f32.mrb[0].mxu0
      %v2226 = vpop.f32.mrb[0].mxu0
      %v2227 = vadd.f32 0.0, %v2226
      %v2228 = vpop.f32.mrb[0].mxu0
      %2229 = vmatprep.mubr.bf16.mxu0 0
      %2230 = vmatmul.mubr.bf16.gmra.mrb[0].mxu0 %v2056
      %v2231 = vpop.f32.mrb[0].mxu0
      %v2232 = vadd.f32 0.0, %v2231
      %v2233 = vpop.f32.mrb[0].mxu0
      %v2234 = vpop.f32.mrb[0].mxu0
      %v2235 = vadd.f32 0.0, %v2234
      %v2236 = vpop.f32.mrb[0].mxu0
      %2237 = vdwg.mxu0
      %v2238 = vadd.f32 %v1799, %v2096
      %v2239 = vadd.f32 %v1800, %v2099
      %v2240 = vadd.f32 %v1801, %v2104
      %v2241 = vadd.f32 %v1802, %v2107
      %v2242 = vadd.f32 %v1803, %v2112
      %v2243 = vadd.f32 %v1804, %v2115
      %v2244 = vadd.f32 %v1805, %v2120
      %v2245 = vadd.f32 %v1806, %v2123
      %v2246 = vadd.f32 %v1807, %v2128
      %v2247 = vadd.f32 %v1808, %v2131
      %v2248 = vadd.f32 %v1809, %v2136
      %v2249 = vadd.f32 %v1810, %v2139
      %v2250 = vadd.f32 %v1811, %v2144
      %v2251 = vadd.f32 %v1812, %v2147
      %v2252 = vadd.f32 %v1813, %v2152
      %v2253 = vadd.f32 %v1814, %v2155
      %v2254 = vadd.f32 %v1815, %v2160
      %v2255 = vadd.f32 %v1816, %v2163
      %v2256 = vadd.f32 %v1817, %v2168
      %v2257 = vadd.f32 %v1818, %v2171
      %v2258 = vadd.f32 %v1819, %v2176
      %v2259 = vadd.f32 %v1820, %v2179
      %v2260 = vadd.f32 %v1821, %v2184
      %v2261 = vadd.f32 %v1822, %v2187
      %v2262 = vadd.f32 %v1823, %v2192
      %v2263 = vadd.f32 %v1824, %v2195
      %v2264 = vadd.f32 %v1825, %v2200
      %v2265 = vadd.f32 %v1826, %v2203
      %v2266 = vadd.f32 %v1827, %v2208
      %v2267 = vadd.f32 %v1828, %v2211
      %v2268 = vadd.f32 %v1829, %v2216
      %v2269 = vadd.f32 %v1830, %v2219
      %v2270 = vadd.f32 %v1831, %v2224
      %v2271 = vadd.f32 %v1832, %v2227
      %v2272 = vadd.f32 %v1833, %v2232
      %v2273 = vadd.f32 %v1834, %v2235
      %v2274 = vld [vmem:[#allocation2 + $0x98] sm:$0x3]
      %s2275 = scalar_lea.vmem %s210, 16
      %v2276 = vld [vmem:[%s2275] sm:$0xf]
      %v2278 = vunpack.c.l.b16 %v2274
      %v2279 = vpack.c.b16 %v2278, %v2278
      %vm2280 = vsmask.f32 6400
      %v2282 = vshrl.u32 %v1948, 16
      %v2284 = vrot.slane %v2282, 1
      %v2285 = vshll.u32 %v1948, 16
      %v2287 = vrot.slane %v2285, 2
      %v2288 = vor.u32 %v2284, %v2287
      %v2290 = vshrl.u32 %v1949, 16
      %v2292 = vrot.slane %v2290, 1
      %v2293 = vshll.u32 %v1949, 16
      %v2295 = vrot.slane %v2293, 2
      %v2296 = vor.u32 %v2292, %v2295
      %v2297 = vsel %vm2280, %v2288, %v2296
      %v2299 = vshrl.u32 %v1950, 16
      %v2301 = vrot.slane %v2299, 1
      %v2302 = vshll.u32 %v1950, 16
      %v2304 = vrot.slane %v2302, 2
      %v2305 = vor.u32 %v2301, %v2304
      %v2306 = vsel %vm2280, %v2296, %v2305
      %v2308 = vshrl.u32 %v1951, 16
      %v2310 = vrot.slane %v2308, 1
      %v2311 = vshll.u32 %v1951, 16
      %v2313 = vrot.slane %v2311, 2
      %v2314 = vor.u32 %v2310, %v2313
      %v2315 = vsel %vm2280, %v2305, %v2314
      %v2317 = vshrl.u32 %v1952, 16
      %v2319 = vrot.slane %v2317, 1
      %v2320 = vshll.u32 %v1952, 16
      %v2322 = vrot.slane %v2320, 2
      %v2323 = vor.u32 %v2319, %v2322
      %v2324 = vsel %vm2280, %v2314, %v2323
      %v2326 = vshrl.u32 %v1953, 16
      %v2328 = vrot.slane %v2326, 1
      %v2329 = vshll.u32 %v1953, 16
      %v2331 = vrot.slane %v2329, 2
      %v2332 = vor.u32 %v2328, %v2331
      %v2333 = vsel %vm2280, %v2323, %v2332
      %v2335 = vshrl.u32 %v1954, 16
      %v2337 = vrot.slane %v2335, 1
      %v2338 = vshll.u32 %v1954, 16
      %v2340 = vrot.slane %v2338, 2
      %v2341 = vor.u32 %v2337, %v2340
      %v2342 = vsel %vm2280, %v2332, %v2341
      %v2344 = vshrl.u32 %v1955, 16
      %v2346 = vrot.slane %v2344, 1
      %v2347 = vshll.u32 %v1955, 16
      %v2349 = vrot.slane %v2347, 2
      %v2350 = vor.u32 %v2346, %v2349
      %v2351 = vsel %vm2280, %v2341, %v2350
      %v2353 = vshrl.u32 %v1956, 16
      %v2355 = vrot.slane %v2353, 1
      %v2356 = vshll.u32 %v1956, 16
      %v2358 = vrot.slane %v2356, 2
      %v2359 = vor.u32 %v2355, %v2358
      %v2360 = vsel %vm2280, %v2350, %v2359
      %v2362 = vshrl.u32 %v1957, 16
      %v2364 = vrot.slane %v2362, 1
      %v2365 = vshll.u32 %v1957, 16
      %v2367 = vrot.slane %v2365, 2
      %v2368 = vor.u32 %v2364, %v2367
      %v2369 = vsel %vm2280, %v2359, %v2368
      %v2371 = vshrl.u32 %v1958, 16
      %v2373 = vrot.slane %v2371, 1
      %v2374 = vshll.u32 %v1958, 16
      %v2376 = vrot.slane %v2374, 2
      %v2377 = vor.u32 %v2373, %v2376
      %v2378 = vsel %vm2280, %v2368, %v2377
      %v2380 = vshrl.u32 %v1959, 16
      %v2382 = vrot.slane %v2380, 1
      %v2383 = vshll.u32 %v1959, 16
      %v2385 = vrot.slane %v2383, 2
      %v2386 = vor.u32 %v2382, %v2385
      %v2387 = vsel %vm2280, %v2377, %v2386
      %v2389 = vshrl.u32 %v1960, 16
      %v2391 = vrot.slane %v2389, 1
      %v2392 = vshll.u32 %v1960, 16
      %v2394 = vrot.slane %v2392, 2
      %v2395 = vor.u32 %v2391, %v2394
      %v2396 = vsel %vm2280, %v2386, %v2395
      %v2398 = vshrl.u32 %v1961, 16
      %v2400 = vrot.slane %v2398, 1
      %v2401 = vshll.u32 %v1961, 16
      %v2403 = vrot.slane %v2401, 2
      %v2404 = vor.u32 %v2400, %v2403
      %v2405 = vsel %vm2280, %v2395, %v2404
      %v2407 = vshrl.u32 %v1962, 16
      %v2409 = vrot.slane %v2407, 1
      %v2410 = vshll.u32 %v1962, 16
      %v2412 = vrot.slane %v2410, 2
      %v2413 = vor.u32 %v2409, %v2412
      %v2414 = vsel %vm2280, %v2404, %v2413
      %v2416 = vshrl.u32 %v1963, 16
      %v2418 = vrot.slane %v2416, 1
      %v2419 = vshll.u32 %v1963, 16
      %v2421 = vrot.slane %v2419, 2
      %v2422 = vor.u32 %v2418, %v2421
      %v2423 = vsel %vm2280, %v2413, %v2422
      %v2425 = vshrl.u32 %v1964, 16
      %v2427 = vrot.slane %v2425, 1
      %v2428 = vshll.u32 %v1964, 16
      %v2430 = vrot.slane %v2428, 2
      %v2431 = vor.u32 %v2427, %v2430
      %v2432 = vsel %vm2280, %v2422, %v2431
      %v2434 = vshrl.u32 %v1965, 16
      %v2436 = vrot.slane %v2434, 1
      %v2437 = vshll.u32 %v1965, 16
      %v2439 = vrot.slane %v2437, 2
      %v2440 = vor.u32 %v2436, %v2439
      %v2441 = vsel %vm2280, %v2431, %v2440
      %v2443 = vshrl.u32 %v2279, 16
      %v2445 = vrot.slane %v2443, 1
      %v2446 = vshll.u32 %v2279, 16
      %v2448 = vrot.slane %v2446, 2
      %v2449 = vor.u32 %v2445, %v2448
      %v2450 = vsel %vm2280, %v2440, %v2449
      %v2452 = vsel %vm1069, %v2297, 0
      %v2455 = vsel %vm1069, %v2306, 0
      %v2458 = vsel %vm1069, %v2315, 0
      %v2461 = vsel %vm1069, %v2324, 0
      %v2464 = vsel %vm1069, %v2333, 0
      %v2467 = vsel %vm1069, %v2342, 0
      %v2470 = vsel %vm1069, %v2351, 0
      %v2473 = vsel %vm1069, %v2360, 0
      %v2476 = vsel %vm1069, %v2369, 0
      %v2479 = vsel %vm1069, %v2378, 0
      %v2482 = vsel %vm1069, %v2387, 0
      %v2485 = vsel %vm1069, %v2396, 0
      %v2488 = vsel %vm1069, %v2405, 0
      %v2491 = vsel %vm1069, %v2414, 0
      %v2494 = vsel %vm1069, %v2423, 0
      %v2497 = vsel %vm1069, %v2432, 0
      %v2500 = vsel %vm1069, %v2441, 0
      %v2503 = vsel %vm1069, %v2450, 0
      %v2506 = vsel %vm1124, %v2276, 0
      %2508 = vmatprep.subr.bf16.mxu0 0
      %2509 = vmatpush1.bf16.msra.mxu0 %v2506
      %2510 = vmatprep.subr.bf16.mxu0 0
      %2511 = vmatpush1.bf16.msra.mxu0 0
      %2512 = vmatprep.subr.bf16.mxu0 0
      %2513 = vmatpush1.bf16.msra.mxu0 0
      %2514 = vmatprep.subr.bf16.mxu0 0
      %2515 = vmatpush1.bf16.msra.mxu0 0
      %2516 = vmatprep.subr.bf16.mxu0 0
      %2517 = vmatpush1.bf16.msra.mxu0 0
      %2518 = vmatprep.subr.bf16.mxu0 0
      %2519 = vmatpush1.bf16.msra.mxu0 0
      %2520 = vmatprep.subr.bf16.mxu0 0
      %2521 = vmatpush1.bf16.msra.mxu0 0
      %2522 = vmatprep.subr.bf16.mxu0 0
      %2523 = vmatpush1.bf16.msra.mxu0 0
      %2524 = vmatprep.subr.bf16.mxu0 0
      %2525 = vmatpush1.bf16.msra.mxu0 0
      %2526 = vmatprep.subr.bf16.mxu0 0
      %2527 = vmatpush1.bf16.msra.mxu0 0
      %2528 = vmatprep.subr.bf16.mxu0 0
      %2529 = vmatpush1.bf16.msra.mxu0 0
      %2530 = vmatprep.subr.bf16.mxu0 0
      %2531 = vmatpush1.bf16.msra.mxu0 0
      %2532 = vmatprep.subr.bf16.mxu0 0
      %2533 = vmatpush1.bf16.msra.mxu0 0
      %2534 = vmatprep.subr.bf16.mxu0 0
      %2535 = vmatpush1.bf16.msra.mxu0 0
      %2536 = vmatprep.subr.bf16.mxu0 0
      %2537 = vmatpush1.bf16.msra.mxu0 0
      %2538 = vmatprep.subr.bf16.mxu0 0
      %2539 = vmatpush1.bf16.msra.mxu0 0
      %2540 = vmatprep.mubr.bf16.mxu0 0
      %2541 = vmatmul.mubr.bf16.gmra.mrb[0].mxu0 %v2452
      %v2542 = vpop.f32.mrb[0].mxu0
      %v2543 = vadd.f32 0.0, %v2542
      %v2544 = vpop.f32.mrb[0].mxu0
      %v2545 = vpop.f32.mrb[0].mxu0
      %v2546 = vadd.f32 0.0, %v2545
      %v2547 = vpop.f32.mrb[0].mxu0
      %2548 = vmatprep.mubr.bf16.mxu0 0
      %2549 = vmatmul.mubr.bf16.gmra.mrb[0].mxu0 %v2455
      %v2550 = vpop.f32.mrb[0].mxu0
      %v2551 = vadd.f32 0.0, %v2550
      %v2552 = vpop.f32.mrb[0].mxu0
      %v2553 = vpop.f32.mrb[0].mxu0
      %v2554 = vadd.f32 0.0, %v2553
      %v2555 = vpop.f32.mrb[0].mxu0
      %2556 = vmatprep.mubr.bf16.mxu0 0
      %2557 = vmatmul.mubr.bf16.gmra.mrb[0].mxu0 %v2458
      %v2558 = vpop.f32.mrb[0].mxu0
      %v2559 = vadd.f32 0.0, %v2558
      %v2560 = vpop.f32.mrb[0].mxu0
      %v2561 = vpop.f32.mrb[0].mxu0
      %v2562 = vadd.f32 0.0, %v2561
      %v2563 = vpop.f32.mrb[0].mxu0
      %2564 = vmatprep.mubr.bf16.mxu0 0
      %2565 = vmatmul.mubr.bf16.gmra.mrb[0].mxu0 %v2461
      %v2566 = vpop.f32.mrb[0].mxu0
      %v2567 = vadd.f32 0.0, %v2566
      %v2568 = vpop.f32.mrb[0].mxu0
      %v2569 = vpop.f32.mrb[0].mxu0
      %v2570 = vadd.f32 0.0, %v2569
      %v2571 = vpop.f32.mrb[0].mxu0
      %2572 = vmatprep.mubr.bf16.mxu0 0
      %2573 = vmatmul.mubr.bf16.gmra.mrb[0].mxu0 %v2464
      %v2574 = vpop.f32.mrb[0].mxu0
      %v2575 = vadd.f32 0.0, %v2574
      %v2576 = vpop.f32.mrb[0].mxu0
      %v2577 = vpop.f32.mrb[0].mxu0
      %v2578 = vadd.f32 0.0, %v2577
      %v2579 = vpop.f32.mrb[0].mxu0
      %2580 = vmatprep.mubr.bf16.mxu0 0
      %2581 = vmatmul.mubr.bf16.gmra.mrb[0].mxu0 %v2467
      %v2582 = vpop.f32.mrb[0].mxu0
      %v2583 = vadd.f32 0.0, %v2582
      %v2584 = vpop.f32.mrb[0].mxu0
      %v2585 = vpop.f32.mrb[0].mxu0
      %v2586 = vadd.f32 0.0, %v2585
      %v2587 = vpop.f32.mrb[0].mxu0
      %2588 = vmatprep.mubr.bf16.mxu0 0
      %2589 = vmatmul.mubr.bf16.gmra.mrb[0].mxu0 %v2470
      %v2590 = vpop.f32.mrb[0].mxu0
      %v2591 = vadd.f32 0.0, %v2590
      %v2592 = vpop.f32.mrb[0].mxu0
      %v2593 = vpop.f32.mrb[0].mxu0
      %v2594 = vadd.f32 0.0, %v2593
      %v2595 = vpop.f32.mrb[0].mxu0
      %2596 = vmatprep.mubr.bf16.mxu0 0
      %2597 = vmatmul.mubr.bf16.gmra.mrb[0].mxu0 %v2473
      %v2598 = vpop.f32.mrb[0].mxu0
      %v2599 = vadd.f32 0.0, %v2598
      %v2600 = vpop.f32.mrb[0].mxu0
      %v2601 = vpop.f32.mrb[0].mxu0
      %v2602 = vadd.f32 0.0, %v2601
      %v2603 = vpop.f32.mrb[0].mxu0
      %2604 = vmatprep.mubr.bf16.mxu0 0
      %2605 = vmatmul.mubr.bf16.gmra.mrb[0].mxu0 %v2476
      %v2606 = vpop.f32.mrb[0].mxu0
      %v2607 = vadd.f32 0.0, %v2606
      %v2608 = vpop.f32.mrb[0].mxu0
      %v2609 = vpop.f32.mrb[0].mxu0
      %v2610 = vadd.f32 0.0, %v2609
      %v2611 = vpop.f32.mrb[0].mxu0
      %2612 = vmatprep.mubr.bf16.mxu0 0
      %2613 = vmatmul.mubr.bf16.gmra.mrb[0].mxu0 %v2479
      %v2614 = vpop.f32.mrb[0].mxu0
      %v2615 = vadd.f32 0.0, %v2614
      %v2616 = vpop.f32.mrb[0].mxu0
      %v2617 = vpop.f32.mrb[0].mxu0
      %v2618 = vadd.f32 0.0, %v2617
      %v2619 = vpop.f32.mrb[0].mxu0
      %2620 = vmatprep.mubr.bf16.mxu0 0
      %2621 = vmatmul.mubr.bf16.gmra.mrb[0].mxu0 %v2482
      %v2622 = vpop.f32.mrb[0].mxu0
      %v2623 = vadd.f32 0.0, %v2622
      %v2624 = vpop.f32.mrb[0].mxu0
      %v2625 = vpop.f32.mrb[0].mxu0
      %v2626 = vadd.f32 0.0, %v2625
      %v2627 = vpop.f32.mrb[0].mxu0
      %2628 = vmatprep.mubr.bf16.mxu0 0
      %2629 = vmatmul.mubr.bf16.gmra.mrb[0].mxu0 %v2485
      %v2630 = vpop.f32.mrb[0].mxu0
      %v2631 = vadd.f32 0.0, %v2630
      %v2632 = vpop.f32.mrb[0].mxu0
      %v2633 = vpop.f32.mrb[0].mxu0
      %v2634 = vadd.f32 0.0, %v2633
      %v2635 = vpop.f32.mrb[0].mxu0
      %2636 = vmatprep.mubr.bf16.mxu0 0
      %2637 = vmatmul.mubr.bf16.gmra.mrb[0].mxu0 %v2488
      %v2638 = vpop.f32.mrb[0].mxu0
      %v2639 = vadd.f32 0.0, %v2638
      %v2640 = vpop.f32.mrb[0].mxu0
      %v2641 = vpop.f32.mrb[0].mxu0
      %v2642 = vadd.f32 0.0, %v2641
      %v2643 = vpop.f32.mrb[0].mxu0
      %2644 = vmatprep.mubr.bf16.mxu0 0
      %2645 = vmatmul.mubr.bf16.gmra.mrb[0].mxu0 %v2491
      %v2646 = vpop.f32.mrb[0].mxu0
      %v2647 = vadd.f32 0.0, %v2646
      %v2648 = vpop.f32.mrb[0].mxu0
      %v2649 = vpop.f32.mrb[0].mxu0
      %v2650 = vadd.f32 0.0, %v2649
      %v2651 = vpop.f32.mrb[0].mxu0
      %2652 = vmatprep.mubr.bf16.mxu0 0
      %2653 = vmatmul.mubr.bf16.gmra.mrb[0].mxu0 %v2494
      %v2654 = vpop.f32.mrb[0].mxu0
      %v2655 = vadd.f32 0.0, %v2654
      %v2656 = vpop.f32.mrb[0].mxu0
      %v2657 = vpop.f32.mrb[0].mxu0
      %v2658 = vadd.f32 0.0, %v2657
      %v2659 = vpop.f32.mrb[0].mxu0
      %2660 = vmatprep.mubr.bf16.mxu0 0
      %2661 = vmatmul.mubr.bf16.gmra.mrb[0].mxu0 %v2497
      %v2662 = vpop.f32.mrb[0].mxu0
      %v2663 = vadd.f32 0.0, %v2662
      %v2664 = vpop.f32.mrb[0].mxu0
      %v2665 = vpop.f32.mrb[0].mxu0
      %v2666 = vadd.f32 0.0, %v2665
      %v2667 = vpop.f32.mrb[0].mxu0
      %2668 = vmatprep.mubr.bf16.mxu0 0
      %2669 = vmatmul.mubr.bf16.gmra.mrb[0].mxu0 %v2500
      %v2670 = vpop.f32.mrb[0].mxu0
      %v2671 = vadd.f32 0.0, %v2670
      %v2672 = vpop.f32.mrb[0].mxu0
      %v2673 = vpop.f32.mrb[0].mxu0
      %v2674 = vadd.f32 0.0, %v2673
      %v2675 = vpop.f32.mrb[0].mxu0
      %2676 = vmatprep.mubr.bf16.mxu0 0
      %2677 = vmatmul.mubr.bf16.gmra.mrb[0].mxu0 %v2503
      %v2678 = vpop.f32.mrb[0].mxu0
      %v2679 = vadd.f32 0.0, %v2678
      %v2680 = vpop.f32.mrb[0].mxu0
      %v2681 = vpop.f32.mrb[0].mxu0
      %v2682 = vadd.f32 0.0, %v2681
      %v2683 = vpop.f32.mrb[0].mxu0
      %2684 = vdwg.mxu0
      %v2685 = vadd.f32 %v2238, %v2543
      %v2686 = vadd.f32 %v2239, %v2546
      %v2687 = vadd.f32 %v2240, %v2551
      %v2688 = vadd.f32 %v2241, %v2554
      %v2689 = vadd.f32 %v2242, %v2559
      %v2690 = vadd.f32 %v2243, %v2562
      %v2691 = vadd.f32 %v2244, %v2567
      %v2692 = vadd.f32 %v2245, %v2570
      %v2693 = vadd.f32 %v2246, %v2575
      %v2694 = vadd.f32 %v2247, %v2578
      %v2695 = vadd.f32 %v2248, %v2583
      %v2696 = vadd.f32 %v2249, %v2586
      %v2697 = vadd.f32 %v2250, %v2591
      %v2698 = vadd.f32 %v2251, %v2594
      %v2699 = vadd.f32 %v2252, %v2599
      %v2700 = vadd.f32 %v2253, %v2602
      %v2701 = vadd.f32 %v2254, %v2607
      %v2702 = vadd.f32 %v2255, %v2610
      %v2703 = vadd.f32 %v2256, %v2615
      %v2704 = vadd.f32 %v2257, %v2618
      %v2705 = vadd.f32 %v2258, %v2623
      %v2706 = vadd.f32 %v2259, %v2626
      %v2707 = vadd.f32 %v2260, %v2631
      %v2708 = vadd.f32 %v2261, %v2634
      %v2709 = vadd.f32 %v2262, %v2639
      %v2710 = vadd.f32 %v2263, %v2642
      %v2711 = vadd.f32 %v2264, %v2647
      %v2712 = vadd.f32 %v2265, %v2650
      %v2713 = vadd.f32 %v2266, %v2655
      %v2714 = vadd.f32 %v2267, %v2658
      %v2715 = vadd.f32 %v2268, %v2663
      %v2716 = vadd.f32 %v2269, %v2666
      %v2717 = vadd.f32 %v2270, %v2671
      %v2718 = vadd.f32 %v2271, %v2674
      %v2719 = vadd.f32 %v2272, %v2679
      %v2720 = vadd.f32 %v2273, %v2682
      %v2721 = vld [vmem:[#allocation2 + $0x8] sm:$0xc]
      %s2722 = scalar_lea.vmem %s210, 20
      %v2723 = vld [vmem:[%s2722] sm:$0xf]
      %v2725 = vunpack.c.l.b16 %v2721
      %v2726 = vpack.c.b16 %v1912, %v2725
      %vm2727 = vcmask 1045504
      %v2728 = vrot.slane %v2726, 2
      %v2729 = vrot.slane %v1949, 2
      %v2730 = vsel %vm2727, %v2728, %v2729
      %v2731 = vrot.slane %v1950, 2
      %v2732 = vsel %vm2727, %v2729, %v2731
      %v2733 = vrot.slane %v1951, 2
      %v2734 = vsel %vm2727, %v2731, %v2733
      %v2735 = vrot.slane %v1952, 2
      %v2736 = vsel %vm2727, %v2733, %v2735
      %v2737 = vrot.slane %v1953, 2
      %v2738 = vsel %vm2727, %v2735, %v2737
      %v2739 = vrot.slane %v1954, 2
      %v2740 = vsel %vm2727, %v2737, %v2739
      %v2741 = vrot.slane %v1955, 2
      %v2742 = vsel %vm2727, %v2739, %v2741
      %v2743 = vrot.slane %v1956, 2
      %v2744 = vsel %vm2727, %v2741, %v2743
      %v2745 = vrot.slane %v1957, 2
      %v2746 = vsel %vm2727, %v2743, %v2745
      %v2747 = vrot.slane %v1958, 2
      %v2748 = vsel %vm2727, %v2745, %v2747
      %v2749 = vrot.slane %v1959, 2
      %v2750 = vsel %vm2727, %v2747, %v2749
      %v2751 = vrot.slane %v1960, 2
      %v2752 = vsel %vm2727, %v2749, %v2751
      %v2753 = vrot.slane %v1961, 2
      %v2754 = vsel %vm2727, %v2751, %v2753
      %v2755 = vrot.slane %v1962, 2
      %v2756 = vsel %vm2727, %v2753, %v2755
      %v2757 = vrot.slane %v1963, 2
      %v2758 = vsel %vm2727, %v2755, %v2757
      %v2759 = vrot.slane %v1964, 2
      %v2760 = vsel %vm2727, %v2757, %v2759
      %v2761 = vrot.slane %v1965, 2
      %v2762 = vsel %vm2727, %v2759, %v2761
      %v2763 = vrot.slane %v2279, 2
      %v2764 = vsel %vm2727, %v2761, %v2763
      %v2766 = vsel %vm1069, %v2730, 0
      %v2769 = vsel %vm1069, %v2732, 0
      %v2772 = vsel %vm1069, %v2734, 0
      %v2775 = vsel %vm1069, %v2736, 0
      %v2778 = vsel %vm1069, %v2738, 0
      %v2781 = vsel %vm1069, %v2740, 0
      %v2784 = vsel %vm1069, %v2742, 0
      %v2787 = vsel %vm1069, %v2744, 0
      %v2790 = vsel %vm1069, %v2746, 0
      %v2793 = vsel %vm1069, %v2748, 0
      %v2796 = vsel %vm1069, %v2750, 0
      %v2799 = vsel %vm1069, %v2752, 0
      %v2802 = vsel %vm1069, %v2754, 0
      %v2805 = vsel %vm1069, %v2756, 0
      %v2808 = vsel %vm1069, %v2758, 0
      %v2811 = vsel %vm1069, %v2760, 0
      %v2814 = vsel %vm1069, %v2762, 0
      %v2817 = vsel %vm1069, %v2764, 0
      %v2820 = vsel %vm1124, %v2723, 0
      %2822 = vmatprep.subr.bf16.mxu0 0
      %2823 = vmatpush1.bf16.msra.mxu0 %v2820
      %2824 = vmatprep.subr.bf16.mxu0 0
      %2825 = vmatpush1.bf16.msra.mxu0 0
      %2826 = vmatprep.subr.bf16.mxu0 0
      %2827 = vmatpush1.bf16.msra.mxu0 0
      %2828 = vmatprep.subr.bf16.mxu0 0
      %2829 = vmatpush1.bf16.msra.mxu0 0
      %2830 = vmatprep.subr.bf16.mxu0 0
      %2831 = vmatpush1.bf16.msra.mxu0 0
      %2832 = vmatprep.subr.bf16.mxu0 0
      %2833 = vmatpush1.bf16.msra.mxu0 0
      %2834 = vmatprep.subr.bf16.mxu0 0
      %2835 = vmatpush1.bf16.msra.mxu0 0
      %2836 = vmatprep.subr.bf16.mxu0 0
      %2837 = vmatpush1.bf16.msra.mxu0 0
      %2838 = vmatprep.subr.bf16.mxu0 0
      %2839 = vmatpush1.bf16.msra.mxu0 0
      %2840 = vmatprep.subr.bf16.mxu0 0
      %2841 = vmatpush1.bf16.msra.mxu0 0
      %2842 = vmatprep.subr.bf16.mxu0 0
      %2843 = vmatpush1.bf16.msra.mxu0 0
      %2844 = vmatprep.subr.bf16.mxu0 0
      %2845 = vmatpush1.bf16.msra.mxu0 0
      %2846 = vmatprep.subr.bf16.mxu0 0
      %2847 = vmatpush1.bf16.msra.mxu0 0
      %2848 = vmatprep.subr.bf16.mxu0 0
      %2849 = vmatpush1.bf16.msra.mxu0 0
      %2850 = vmatprep.subr.bf16.mxu0 0
      %2851 = vmatpush1.bf16.msra.mxu0 0
      %2852 = vmatprep.subr.bf16.mxu0 0
      %2853 = vmatpush1.bf16.msra.mxu0 0
      %2854 = vmatprep.mubr.bf16.mxu0 0
      %2855 = vmatmul.mubr.bf16.gmra.mrb[0].mxu0 %v2766
      %v2856 = vpop.f32.mrb[0].mxu0
      %v2857 = vadd.f32 0.0, %v2856
      %v2858 = vpop.f32.mrb[0].mxu0
      %v2859 = vpop.f32.mrb[0].mxu0
      %v2860 = vadd.f32 0.0, %v2859
      %v2861 = vpop.f32.mrb[0].mxu0
      %2862 = vmatprep.mubr.bf16.mxu0 0
      %2863 = vmatmul.mubr.bf16.gmra.mrb[0].mxu0 %v2769
      %v2864 = vpop.f32.mrb[0].mxu0
      %v2865 = vadd.f32 0.0, %v2864
      %v2866 = vpop.f32.mrb[0].mxu0
      %v2867 = vpop.f32.mrb[0].mxu0
      %v2868 = vadd.f32 0.0, %v2867
      %v2869 = vpop.f32.mrb[0].mxu0
      %2870 = vmatprep.mubr.bf16.mxu0 0
      %2871 = vmatmul.mubr.bf16.gmra.mrb[0].mxu0 %v2772
      %v2872 = vpop.f32.mrb[0].mxu0
      %v2873 = vadd.f32 0.0, %v2872
      %v2874 = vpop.f32.mrb[0].mxu0
      %v2875 = vpop.f32.mrb[0].mxu0
      %v2876 = vadd.f32 0.0, %v2875
      %v2877 = vpop.f32.mrb[0].mxu0
      %2878 = vmatprep.mubr.bf16.mxu0 0
      %2879 = vmatmul.mubr.bf16.gmra.mrb[0].mxu0 %v2775
      %v2880 = vpop.f32.mrb[0].mxu0
      %v2881 = vadd.f32 0.0, %v2880
      %v2882 = vpop.f32.mrb[0].mxu0
      %v2883 = vpop.f32.mrb[0].mxu0
      %v2884 = vadd.f32 0.0, %v2883
      %v2885 = vpop.f32.mrb[0].mxu0
      %2886 = vmatprep.mubr.bf16.mxu0 0
      %2887 = vmatmul.mubr.bf16.gmra.mrb[0].mxu0 %v2778
      %v2888 = vpop.f32.mrb[0].mxu0
      %v2889 = vadd.f32 0.0, %v2888
      %v2890 = vpop.f32.mrb[0].mxu0
      %v2891 = vpop.f32.mrb[0].mxu0
      %v2892 = vadd.f32 0.0, %v2891
      %v2893 = vpop.f32.mrb[0].mxu0
      %2894 = vmatprep.mubr.bf16.mxu0 0
      %2895 = vmatmul.mubr.bf16.gmra.mrb[0].mxu0 %v2781
      %v2896 = vpop.f32.mrb[0].mxu0
      %v2897 = vadd.f32 0.0, %v2896
      %v2898 = vpop.f32.mrb[0].mxu0
      %v2899 = vpop.f32.mrb[0].mxu0
      %v2900 = vadd.f32 0.0, %v2899
      %v2901 = vpop.f32.mrb[0].mxu0
      %2902 = vmatprep.mubr.bf16.mxu0 0
      %2903 = vmatmul.mubr.bf16.gmra.mrb[0].mxu0 %v2784
      %v2904 = vpop.f32.mrb[0].mxu0
      %v2905 = vadd.f32 0.0, %v2904
      %v2906 = vpop.f32.mrb[0].mxu0
      %v2907 = vpop.f32.mrb[0].mxu0
      %v2908 = vadd.f32 0.0, %v2907
      %v2909 = vpop.f32.mrb[0].mxu0
      %2910 = vmatprep.mubr.bf16.mxu0 0
      %2911 = vmatmul.mubr.bf16.gmra.mrb[0].mxu0 %v2787
      %v2912 = vpop.f32.mrb[0].mxu0
      %v2913 = vadd.f32 0.0, %v2912
      %v2914 = vpop.f32.mrb[0].mxu0
      %v2915 = vpop.f32.mrb[0].mxu0
      %v2916 = vadd.f32 0.0, %v2915
      %v2917 = vpop.f32.mrb[0].mxu0
      %2918 = vmatprep.mubr.bf16.mxu0 0
      %2919 = vmatmul.mubr.bf16.gmra.mrb[0].mxu0 %v2790
      %v2920 = vpop.f32.mrb[0].mxu0
      %v2921 = vadd.f32 0.0, %v2920
      %v2922 = vpop.f32.mrb[0].mxu0
      %v2923 = vpop.f32.mrb[0].mxu0
      %v2924 = vadd.f32 0.0, %v2923
      %v2925 = vpop.f32.mrb[0].mxu0
      %2926 = vmatprep.mubr.bf16.mxu0 0
      %2927 = vmatmul.mubr.bf16.gmra.mrb[0].mxu0 %v2793
      %v2928 = vpop.f32.mrb[0].mxu0
      %v2929 = vadd.f32 0.0, %v2928
      %v2930 = vpop.f32.mrb[0].mxu0
      %v2931 = vpop.f32.mrb[0].mxu0
      %v2932 = vadd.f32 0.0, %v2931
      %v2933 = vpop.f32.mrb[0].mxu0
      %2934 = vmatprep.mubr.bf16.mxu0 0
      %2935 = vmatmul.mubr.bf16.gmra.mrb[0].mxu0 %v2796
      %v2936 = vpop.f32.mrb[0].mxu0
      %v2937 = vadd.f32 0.0, %v2936
      %v2938 = vpop.f32.mrb[0].mxu0
      %v2939 = vpop.f32.mrb[0].mxu0
      %v2940 = vadd.f32 0.0, %v2939
      %v2941 = vpop.f32.mrb[0].mxu0
      %2942 = vmatprep.mubr.bf16.mxu0 0
      %2943 = vmatmul.mubr.bf16.gmra.mrb[0].mxu0 %v2799
      %v2944 = vpop.f32.mrb[0].mxu0
      %v2945 = vadd.f32 0.0, %v2944
      %v2946 = vpop.f32.mrb[0].mxu0
      %v2947 = vpop.f32.mrb[0].mxu0
      %v2948 = vadd.f32 0.0, %v2947
      %v2949 = vpop.f32.mrb[0].mxu0
      %2950 = vmatprep.mubr.bf16.mxu0 0
      %2951 = vmatmul.mubr.bf16.gmra.mrb[0].mxu0 %v2802
      %v2952 = vpop.f32.mrb[0].mxu0
      %v2953 = vadd.f32 0.0, %v2952
      %v2954 = vpop.f32.mrb[0].mxu0
      %v2955 = vpop.f32.mrb[0].mxu0
      %v2956 = vadd.f32 0.0, %v2955
      %v2957 = vpop.f32.mrb[0].mxu0
      %2958 = vmatprep.mubr.bf16.mxu0 0
      %2959 = vmatmul.mubr.bf16.gmra.mrb[0].mxu0 %v2805
      %v2960 = vpop.f32.mrb[0].mxu0
      %v2961 = vadd.f32 0.0, %v2960
      %v2962 = vpop.f32.mrb[0].mxu0
      %v2963 = vpop.f32.mrb[0].mxu0
      %v2964 = vadd.f32 0.0, %v2963
      %v2965 = vpop.f32.mrb[0].mxu0
      %2966 = vmatprep.mubr.bf16.mxu0 0
      %2967 = vmatmul.mubr.bf16.gmra.mrb[0].mxu0 %v2808
      %v2968 = vpop.f32.mrb[0].mxu0
      %v2969 = vadd.f32 0.0, %v2968
      %v2970 = vpop.f32.mrb[0].mxu0
      %v2971 = vpop.f32.mrb[0].mxu0
      %v2972 = vadd.f32 0.0, %v2971
      %v2973 = vpop.f32.mrb[0].mxu0
      %2974 = vmatprep.mubr.bf16.mxu0 0
      %2975 = vmatmul.mubr.bf16.gmra.mrb[0].mxu0 %v2811
      %v2976 = vpop.f32.mrb[0].mxu0
      %v2977 = vadd.f32 0.0, %v2976
      %v2978 = vpop.f32.mrb[0].mxu0
      %v2979 = vpop.f32.mrb[0].mxu0
      %v2980 = vadd.f32 0.0, %v2979
      %v2981 = vpop.f32.mrb[0].mxu0
      %2982 = vmatprep.mubr.bf16.mxu0 0
      %2983 = vmatmul.mubr.bf16.gmra.mrb[0].mxu0 %v2814
      %v2984 = vpop.f32.mrb[0].mxu0
      %v2985 = vadd.f32 0.0, %v2984
      %v2986 = vpop.f32.mrb[0].mxu0
      %v2987 = vpop.f32.mrb[0].mxu0
      %v2988 = vadd.f32 0.0, %v2987
      %v2989 = vpop.f32.mrb[0].mxu0
      %2990 = vmatprep.mubr.bf16.mxu0 0
      %2991 = vmatmul.mubr.bf16.gmra.mrb[0].mxu0 %v2817
      %v2992 = vpop.f32.mrb[0].mxu0
      %v2993 = vadd.f32 0.0, %v2992
      %v2994 = vpop.f32.mrb[0].mxu0
      %v2995 = vpop.f32.mrb[0].mxu0
      %v2996 = vadd.f32 0.0, %v2995
      %v2997 = vpop.f32.mrb[0].mxu0
      %2998 = vdwg.mxu0
      %v2999 = vadd.f32 %v2685, %v2857
      %v3000 = vadd.f32 %v2686, %v2860
      %v3001 = vadd.f32 %v2687, %v2865
      %v3002 = vadd.f32 %v2688, %v2868
      %v3003 = vadd.f32 %v2689, %v2873
      %v3004 = vadd.f32 %v2690, %v2876
      %v3005 = vadd.f32 %v2691, %v2881
      %v3006 = vadd.f32 %v2692, %v2884
      %v3007 = vadd.f32 %v2693, %v2889
      %v3008 = vadd.f32 %v2694, %v2892
      %v3009 = vadd.f32 %v2695, %v2897
      %v3010 = vadd.f32 %v2696, %v2900
      %v3011 = vadd.f32 %v2697, %v2905
      %v3012 = vadd.f32 %v2698, %v2908
      %v3013 = vadd.f32 %v2699, %v2913
      %v3014 = vadd.f32 %v2700, %v2916
      %v3015 = vadd.f32 %v2701, %v2921
      %v3016 = vadd.f32 %v2702, %v2924
      %v3017 = vadd.f32 %v2703, %v2929
      %v3018 = vadd.f32 %v2704, %v2932
      %v3019 = vadd.f32 %v2705, %v2937
      %v3020 = vadd.f32 %v2706, %v2940
      %v3021 = vadd.f32 %v2707, %v2945
      %v3022 = vadd.f32 %v2708, %v2948
      %v3023 = vadd.f32 %v2709, %v2953
      %v3024 = vadd.f32 %v2710, %v2956
      %v3025 = vadd.f32 %v2711, %v2961
      %v3026 = vadd.f32 %v2712, %v2964
      %v3027 = vadd.f32 %v2713, %v2969
      %v3028 = vadd.f32 %v2714, %v2972
      %v3029 = vadd.f32 %v2715, %v2977
      %v3030 = vadd.f32 %v2716, %v2980
      %v3031 = vadd.f32 %v2717, %v2985
      %v3032 = vadd.f32 %v2718, %v2988
      %v3033 = vadd.f32 %v2719, %v2993
      %v3034 = vadd.f32 %v2720, %v2996
      %v3035 = vld [vmem:[#allocation2 + $0x10] sm:$0xc]
      %v3036 = vld [vmem:[#allocation2 + $0x14] sm:$0xf]
      %v3037 = vld [vmem:[#allocation2 + $0x18] sm:$0xf]
      %v3038 = vld [vmem:[#allocation2 + $0x1c] sm:$0xf]
      %v3039 = vld [vmem:[#allocation2 + $0x20] sm:$0xf]
      %v3040 = vld [vmem:[#allocation2 + $0x24] sm:$0xf]
      %v3041 = vld [vmem:[#allocation2 + $0x28] sm:$0xf]
      %v3042 = vld [vmem:[#allocation2 + $0x2c] sm:$0xf]
      %v3043 = vld [vmem:[#allocation2 + $0x30] sm:$0xf]
      %v3044 = vld [vmem:[#allocation2 + $0x34] sm:$0xf]
      %v3045 = vld [vmem:[#allocation2 + $0x38] sm:$0xf]
      %v3046 = vld [vmem:[#allocation2 + $0x3c] sm:$0xf]
      %v3047 = vld [vmem:[#allocation2 + $0x40] sm:$0xf]
      %v3048 = vld [vmem:[#allocation2 + $0x44] sm:$0xf]
      %v3049 = vld [vmem:[#allocation2 + $0x48] sm:$0xf]
      %v3050 = vld [vmem:[#allocation2 + $0x4c] sm:$0xf]
      %v3051 = vld [vmem:[#allocation2 + $0x50] sm:$0xf]
      %v3052 = vld [vmem:[#allocation2 + $0x54] sm:$0xf]
      %v3053 = vld [vmem:[#allocation2 + $0x58] sm:$0xf]
      %v3054 = vld [vmem:[#allocation2 + $0x5c] sm:$0xf]
      %v3055 = vld [vmem:[#allocation2 + $0x60] sm:$0xf]
      %v3056 = vld [vmem:[#allocation2 + $0x64] sm:$0xf]
      %v3057 = vld [vmem:[#allocation2 + $0x68] sm:$0xf]
      %v3058 = vld [vmem:[#allocation2 + $0x6c] sm:$0xf]
      %v3059 = vld [vmem:[#allocation2 + $0x70] sm:$0xf]
      %v3060 = vld [vmem:[#allocation2 + $0x74] sm:$0xf]
      %v3061 = vld [vmem:[#allocation2 + $0x78] sm:$0xf]
      %v3062 = vld [vmem:[#allocation2 + $0x7c] sm:$0xf]
      %v3063 = vld [vmem:[#allocation2 + $0x80] sm:$0xf]
      %v3064 = vld [vmem:[#allocation2 + $0x84] sm:$0xf]
      %v3065 = vld [vmem:[#allocation2 + $0x88] sm:$0xf]
      %v3066 = vld [vmem:[#allocation2 + $0x8c] sm:$0xf]
      %v3067 = vld [vmem:[#allocation2 + $0x90] sm:$0xf]
      %v3068 = vld [vmem:[#allocation2 + $0x94] sm:$0xf]
      %v3069 = vld [vmem:[#allocation2 + $0x98] sm:$0xf]
      %v3070 = vld [vmem:[#allocation2 + $0x9c] sm:$0xf]
      %v3071 = vld [vmem:[#allocation2 + $0xa0] sm:$0x3]
      %s3072 = scalar_lea.vmem %s210, 24
      %v3073 = vld [vmem:[%s3072] sm:$0xf]
      %v3111 = vunpack.c.l.b16 %v3035
      %v3112 = vunpack.c.l.b16 %v3036
      %v3113 = vunpack.c.l.b16 %v3037
      %v3114 = vunpack.c.l.b16 %v3038
      %v3115 = vunpack.c.l.b16 %v3039
      %v3116 = vunpack.c.l.b16 %v3040
      %v3117 = vunpack.c.l.b16 %v3041
      %v3118 = vunpack.c.l.b16 %v3042
      %v3119 = vunpack.c.l.b16 %v3043
      %v3120 = vunpack.c.l.b16 %v3044
      %v3121 = vunpack.c.l.b16 %v3045
      %v3122 = vunpack.c.l.b16 %v3046
      %v3123 = vunpack.c.l.b16 %v3047
      %v3124 = vunpack.c.l.b16 %v3048
      %v3125 = vunpack.c.l.b16 %v3049
      %v3126 = vunpack.c.l.b16 %v3050
      %v3127 = vunpack.c.l.b16 %v3051
      %v3128 = vunpack.c.l.b16 %v3052
      %v3129 = vunpack.c.l.b16 %v3053
      %v3130 = vunpack.c.l.b16 %v3054
      %v3131 = vunpack.c.l.b16 %v3055
      %v3132 = vunpack.c.l.b16 %v3056
      %v3133 = vunpack.c.l.b16 %v3057
      %v3134 = vunpack.c.l.b16 %v3058
      %v3135 = vunpack.c.l.b16 %v3059
      %v3136 = vunpack.c.l.b16 %v3060
      %v3137 = vunpack.c.l.b16 %v3061
      %v3138 = vunpack.c.l.b16 %v3062
      %v3139 = vunpack.c.l.b16 %v3063
      %v3140 = vunpack.c.l.b16 %v3064
      %v3141 = vunpack.c.l.b16 %v3065
      %v3142 = vunpack.c.l.b16 %v3066
      %v3143 = vunpack.c.l.b16 %v3067
      %v3144 = vunpack.c.l.b16 %v3068
      %v3145 = vunpack.c.l.b16 %v3069
      %v3146 = vunpack.c.l.b16 %v3070
      %v3147 = vunpack.c.l.b16 %v3071
      %v3148 = vpack.c.b16 %v3112, %v3111
      %v3149 = vpack.c.b16 %v3114, %v3113
      %v3150 = vpack.c.b16 %v3116, %v3115
      %v3151 = vpack.c.b16 %v3118, %v3117
      %v3152 = vpack.c.b16 %v3120, %v3119
      %v3153 = vpack.c.b16 %v3122, %v3121
      %v3154 = vpack.c.b16 %v3124, %v3123
      %v3155 = vpack.c.b16 %v3126, %v3125
      %v3156 = vpack.c.b16 %v3128, %v3127
      %v3157 = vpack.c.b16 %v3130, %v3129
      %v3158 = vpack.c.b16 %v3132, %v3131
      %v3159 = vpack.c.b16 %v3134, %v3133
      %v3160 = vpack.c.b16 %v3136, %v3135
      %v3161 = vpack.c.b16 %v3138, %v3137
      %v3162 = vpack.c.b16 %v3140, %v3139
      %v3163 = vpack.c.b16 %v3142, %v3141
      %v3164 = vpack.c.b16 %v3144, %v3143
      %v3165 = vpack.c.b16 %v3146, %v3145
      %v3166 = vpack.c.b16 %v3147, %v3147
      %v3167 = vrot.slane %v3148, 2
      %v3168 = vrot.slane %v3149, 2
      %v3169 = vsel %vm2727, %v3167, %v3168
      %v3170 = vrot.slane %v3150, 2
      %v3171 = vsel %vm2727, %v3168, %v3170
      %v3172 = vrot.slane %v3151, 2
      %v3173 = vsel %vm2727, %v3170, %v3172
      %v3174 = vrot.slane %v3152, 2
      %v3175 = vsel %vm2727, %v3172, %v3174
      %v3176 = vrot.slane %v3153, 2
      %v3177 = vsel %vm2727, %v3174, %v3176
      %v3178 = vrot.slane %v3154, 2
      %v3179 = vsel %vm2727, %v3176, %v3178
      %v3180 = vrot.slane %v3155, 2
      %v3181 = vsel %vm2727, %v3178, %v3180
      %v3182 = vrot.slane %v3156, 2
      %v3183 = vsel %vm2727, %v3180, %v3182
      %v3184 = vrot.slane %v3157, 2
      %v3185 = vsel %vm2727, %v3182, %v3184
      %v3186 = vrot.slane %v3158, 2
      %v3187 = vsel %vm2727, %v3184, %v3186
      %v3188 = vrot.slane %v3159, 2
      %v3189 = vsel %vm2727, %v3186, %v3188
      %v3190 = vrot.slane %v3160, 2
      %v3191 = vsel %vm2727, %v3188, %v3190
      %v3192 = vrot.slane %v3161, 2
      %v3193 = vsel %vm2727, %v3190, %v3192
      %v3194 = vrot.slane %v3162, 2
      %v3195 = vsel %vm2727, %v3192, %v3194
      %v3196 = vrot.slane %v3163, 2
      %v3197 = vsel %vm2727, %v3194, %v3196
      %v3198 = vrot.slane %v3164, 2
      %v3199 = vsel %vm2727, %v3196, %v3198
      %v3200 = vrot.slane %v3165, 2
      %v3201 = vsel %vm2727, %v3198, %v3200
      %v3202 = vrot.slane %v3166, 2
      %v3203 = vsel %vm2727, %v3200, %v3202
      %v3205 = vsel %vm1069, %v3169, 0
      %v3208 = vsel %vm1069, %v3171, 0
      %v3211 = vsel %vm1069, %v3173, 0
      %v3214 = vsel %vm1069, %v3175, 0
      %v3217 = vsel %vm1069, %v3177, 0
      %v3220 = vsel %vm1069, %v3179, 0
      %v3223 = vsel %vm1069, %v3181, 0
      %v3226 = vsel %vm1069, %v3183, 0
      %v3229 = vsel %vm1069, %v3185, 0
      %v3232 = vsel %vm1069, %v3187, 0
      %v3235 = vsel %vm1069, %v3189, 0
      %v3238 = vsel %vm1069, %v3191, 0
      %v3241 = vsel %vm1069, %v3193, 0
      %v3244 = vsel %vm1069, %v3195, 0
      %v3247 = vsel %vm1069, %v3197, 0
      %v3250 = vsel %vm1069, %v3199, 0
      %v3253 = vsel %vm1069, %v3201, 0
      %v3256 = vsel %vm1069, %v3203, 0
      %v3259 = vsel %vm1124, %v3073, 0
      %3261 = vmatprep.subr.bf16.mxu0 0
      %3262 = vmatpush1.bf16.msra.mxu0 %v3259
      %3263 = vmatprep.subr.bf16.mxu0 0
      %3264 = vmatpush1.bf16.msra.mxu0 0
      %3265 = vmatprep.subr.bf16.mxu0 0
      %3266 = vmatpush1.bf16.msra.mxu0 0
      %3267 = vmatprep.subr.bf16.mxu0 0
      %3268 = vmatpush1.bf16.msra.mxu0 0
      %3269 = vmatprep.subr.bf16.mxu0 0
      %3270 = vmatpush1.bf16.msra.mxu0 0
      %3271 = vmatprep.subr.bf16.mxu0 0
      %3272 = vmatpush1.bf16.msra.mxu0 0
      %3273 = vmatprep.subr.bf16.mxu0 0
      %3274 = vmatpush1.bf16.msra.mxu0 0
      %3275 = vmatprep.subr.bf16.mxu0 0
      %3276 = vmatpush1.bf16.msra.mxu0 0
      %3277 = vmatprep.subr.bf16.mxu0 0
      %3278 = vmatpush1.bf16.msra.mxu0 0
      %3279 = vmatprep.subr.bf16.mxu0 0
      %3280 = vmatpush1.bf16.msra.mxu0 0
      %3281 = vmatprep.subr.bf16.mxu0 0
      %3282 = vmatpush1.bf16.msra.mxu0 0
      %3283 = vmatprep.subr.bf16.mxu0 0
      %3284 = vmatpush1.bf16.msra.mxu0 0
      %3285 = vmatprep.subr.bf16.mxu0 0
      %3286 = vmatpush1.bf16.msra.mxu0 0
      %3287 = vmatprep.subr.bf16.mxu0 0
      %3288 = vmatpush1.bf16.msra.mxu0 0
      %3289 = vmatprep.subr.bf16.mxu0 0
      %3290 = vmatpush1.bf16.msra.mxu0 0
      %3291 = vmatprep.subr.bf16.mxu0 0
      %3292 = vmatpush1.bf16.msra.mxu0 0
      %3293 = vmatprep.mubr.bf16.mxu0 0
      %3294 = vmatmul.mubr.bf16.gmra.mrb[0].mxu0 %v3205
      %v3295 = vpop.f32.mrb[0].mxu0
      %v3296 = vadd.f32 0.0, %v3295
      %v3297 = vpop.f32.mrb[0].mxu0
      %v3298 = vpop.f32.mrb[0].mxu0
      %v3299 = vadd.f32 0.0, %v3298
      %v3300 = vpop.f32.mrb[0].mxu0
      %3301 = vmatprep.mubr.bf16.mxu0 0
      %3302 = vmatmul.mubr.bf16.gmra.mrb[0].mxu0 %v3208
      %v3303 = vpop.f32.mrb[0].mxu0
      %v3304 = vadd.f32 0.0, %v3303
      %v3305 = vpop.f32.mrb[0].mxu0
      %v3306 = vpop.f32.mrb[0].mxu0
      %v3307 = vadd.f32 0.0, %v3306
      %v3308 = vpop.f32.mrb[0].mxu0
      %3309 = vmatprep.mubr.bf16.mxu0 0
      %3310 = vmatmul.mubr.bf16.gmra.mrb[0].mxu0 %v3211
      %v3311 = vpop.f32.mrb[0].mxu0
      %v3312 = vadd.f32 0.0, %v3311
      %v3313 = vpop.f32.mrb[0].mxu0
      %v3314 = vpop.f32.mrb[0].mxu0
      %v3315 = vadd.f32 0.0, %v3314
      %v3316 = vpop.f32.mrb[0].mxu0
      %3317 = vmatprep.mubr.bf16.mxu0 0
      %3318 = vmatmul.mubr.bf16.gmra.mrb[0].mxu0 %v3214
      %v3319 = vpop.f32.mrb[0].mxu0
      %v3320 = vadd.f32 0.0, %v3319
      %v3321 = vpop.f32.mrb[0].mxu0
      %v3322 = vpop.f32.mrb[0].mxu0
      %v3323 = vadd.f32 0.0, %v3322
      %v3324 = vpop.f32.mrb[0].mxu0
      %3325 = vmatprep.mubr.bf16.mxu0 0
      %3326 = vmatmul.mubr.bf16.gmra.mrb[0].mxu0 %v3217
      %v3327 = vpop.f32.mrb[0].mxu0
      %v3328 = vadd.f32 0.0, %v3327
      %v3329 = vpop.f32.mrb[0].mxu0
      %v3330 = vpop.f32.mrb[0].mxu0
      %v3331 = vadd.f32 0.0, %v3330
      %v3332 = vpop.f32.mrb[0].mxu0
      %3333 = vmatprep.mubr.bf16.mxu0 0
      %3334 = vmatmul.mubr.bf16.gmra.mrb[0].mxu0 %v3220
      %v3335 = vpop.f32.mrb[0].mxu0
      %v3336 = vadd.f32 0.0, %v3335
      %v3337 = vpop.f32.mrb[0].mxu0
      %v3338 = vpop.f32.mrb[0].mxu0
      %v3339 = vadd.f32 0.0, %v3338
      %v3340 = vpop.f32.mrb[0].mxu0
      %3341 = vmatprep.mubr.bf16.mxu0 0
      %3342 = vmatmul.mubr.bf16.gmra.mrb[0].mxu0 %v3223
      %v3343 = vpop.f32.mrb[0].mxu0
      %v3344 = vadd.f32 0.0, %v3343
      %v3345 = vpop.f32.mrb[0].mxu0
      %v3346 = vpop.f32.mrb[0].mxu0
      %v3347 = vadd.f32 0.0, %v3346
      %v3348 = vpop.f32.mrb[0].mxu0
      %3349 = vmatprep.mubr.bf16.mxu0 0
      %3350 = vmatmul.mubr.bf16.gmra.mrb[0].mxu0 %v3226
      %v3351 = vpop.f32.mrb[0].mxu0
      %v3352 = vadd.f32 0.0, %v3351
      %v3353 = vpop.f32.mrb[0].mxu0
      %v3354 = vpop.f32.mrb[0].mxu0
      %v3355 = vadd.f32 0.0, %v3354
      %v3356 = vpop.f32.mrb[0].mxu0
      %3357 = vmatprep.mubr.bf16.mxu0 0
      %3358 = vmatmul.mubr.bf16.gmra.mrb[0].mxu0 %v3229
      %v3359 = vpop.f32.mrb[0].mxu0
      %v3360 = vadd.f32 0.0, %v3359
      %v3361 = vpop.f32.mrb[0].mxu0
      %v3362 = vpop.f32.mrb[0].mxu0
      %v3363 = vadd.f32 0.0, %v3362
      %v3364 = vpop.f32.mrb[0].mxu0
      %3365 = vmatprep.mubr.bf16.mxu0 0
      %3366 = vmatmul.mubr.bf16.gmra.mrb[0].mxu0 %v3232
      %v3367 = vpop.f32.mrb[0].mxu0
      %v3368 = vadd.f32 0.0, %v3367
      %v3369 = vpop.f32.mrb[0].mxu0
      %v3370 = vpop.f32.mrb[0].mxu0
      %v3371 = vadd.f32 0.0, %v3370
      %v3372 = vpop.f32.mrb[0].mxu0
      %3373 = vmatprep.mubr.bf16.mxu0 0
      %3374 = vmatmul.mubr.bf16.gmra.mrb[0].mxu0 %v3235
      %v3375 = vpop.f32.mrb[0].mxu0
      %v3376 = vadd.f32 0.0, %v3375
      %v3377 = vpop.f32.mrb[0].mxu0
      %v3378 = vpop.f32.mrb[0].mxu0
      %v3379 = vadd.f32 0.0, %v3378
      %v3380 = vpop.f32.mrb[0].mxu0
      %3381 = vmatprep.mubr.bf16.mxu0 0
      %3382 = vmatmul.mubr.bf16.gmra.mrb[0].mxu0 %v3238
      %v3383 = vpop.f32.mrb[0].mxu0
      %v3384 = vadd.f32 0.0, %v3383
      %v3385 = vpop.f32.mrb[0].mxu0
      %v3386 = vpop.f32.mrb[0].mxu0
      %v3387 = vadd.f32 0.0, %v3386
      %v3388 = vpop.f32.mrb[0].mxu0
      %3389 = vmatprep.mubr.bf16.mxu0 0
      %3390 = vmatmul.mubr.bf16.gmra.mrb[0].mxu0 %v3241
      %v3391 = vpop.f32.mrb[0].mxu0
      %v3392 = vadd.f32 0.0, %v3391
      %v3393 = vpop.f32.mrb[0].mxu0
      %v3394 = vpop.f32.mrb[0].mxu0
      %v3395 = vadd.f32 0.0, %v3394
      %v3396 = vpop.f32.mrb[0].mxu0
      %3397 = vmatprep.mubr.bf16.mxu0 0
      %3398 = vmatmul.mubr.bf16.gmra.mrb[0].mxu0 %v3244
      %v3399 = vpop.f32.mrb[0].mxu0
      %v3400 = vadd.f32 0.0, %v3399
      %v3401 = vpop.f32.mrb[0].mxu0
      %v3402 = vpop.f32.mrb[0].mxu0
      %v3403 = vadd.f32 0.0, %v3402
      %v3404 = vpop.f32.mrb[0].mxu0
      %3405 = vmatprep.mubr.bf16.mxu0 0
      %3406 = vmatmul.mubr.bf16.gmra.mrb[0].mxu0 %v3247
      %v3407 = vpop.f32.mrb[0].mxu0
      %v3408 = vadd.f32 0.0, %v3407
      %v3409 = vpop.f32.mrb[0].mxu0
      %v3410 = vpop.f32.mrb[0].mxu0
      %v3411 = vadd.f32 0.0, %v3410
      %v3412 = vpop.f32.mrb[0].mxu0
      %3413 = vmatprep.mubr.bf16.mxu0 0
      %3414 = vmatmul.mubr.bf16.gmra.mrb[0].mxu0 %v3250
      %v3415 = vpop.f32.mrb[0].mxu0
      %v3416 = vadd.f32 0.0, %v3415
      %v3417 = vpop.f32.mrb[0].mxu0
      %v3418 = vpop.f32.mrb[0].mxu0
      %v3419 = vadd.f32 0.0, %v3418
      %v3420 = vpop.f32.mrb[0].mxu0
      %3421 = vmatprep.mubr.bf16.mxu0 0
      %3422 = vmatmul.mubr.bf16.gmra.mrb[0].mxu0 %v3253
      %v3423 = vpop.f32.mrb[0].mxu0
      %v3424 = vadd.f32 0.0, %v3423
      %v3425 = vpop.f32.mrb[0].mxu0
      %v3426 = vpop.f32.mrb[0].mxu0
      %v3427 = vadd.f32 0.0, %v3426
      %v3428 = vpop.f32.mrb[0].mxu0
      %3429 = vmatprep.mubr.bf16.mxu0 0
      %3430 = vmatmul.mubr.bf16.gmra.mrb[0].mxu0 %v3256
      %v3431 = vpop.f32.mrb[0].mxu0
      %v3432 = vadd.f32 0.0, %v3431
      %v3433 = vpop.f32.mrb[0].mxu0
      %v3434 = vpop.f32.mrb[0].mxu0
      %v3435 = vadd.f32 0.0, %v3434
      %v3436 = vpop.f32.mrb[0].mxu0
      %3437 = vdwg.mxu0
      %v3438 = vadd.f32 %v2999, %v3296
      %v3439 = vadd.f32 %v3000, %v3299
      %v3440 = vadd.f32 %v3001, %v3304
      %v3441 = vadd.f32 %v3002, %v3307
      %v3442 = vadd.f32 %v3003, %v3312
      %v3443 = vadd.f32 %v3004, %v3315
      %v3444 = vadd.f32 %v3005, %v3320
      %v3445 = vadd.f32 %v3006, %v3323
      %v3446 = vadd.f32 %v3007, %v3328
      %v3447 = vadd.f32 %v3008, %v3331
      %v3448 = vadd.f32 %v3009, %v3336
      %v3449 = vadd.f32 %v3010, %v3339
      %v3450 = vadd.f32 %v3011, %v3344
      %v3451 = vadd.f32 %v3012, %v3347
      %v3452 = vadd.f32 %v3013, %v3352
      %v3453 = vadd.f32 %v3014, %v3355
      %v3454 = vadd.f32 %v3015, %v3360
      %v3455 = vadd.f32 %v3016, %v3363
      %v3456 = vadd.f32 %v3017, %v3368
      %v3457 = vadd.f32 %v3018, %v3371
      %v3458 = vadd.f32 %v3019, %v3376
      %v3459 = vadd.f32 %v3020, %v3379
      %v3460 = vadd.f32 %v3021, %v3384
      %v3461 = vadd.f32 %v3022, %v3387
      %v3462 = vadd.f32 %v3023, %v3392
      %v3463 = vadd.f32 %v3024, %v3395
      %v3464 = vadd.f32 %v3025, %v3400
      %v3465 = vadd.f32 %v3026, %v3403
      %v3466 = vadd.f32 %v3027, %v3408
      %v3467 = vadd.f32 %v3028, %v3411
      %v3468 = vadd.f32 %v3029, %v3416
      %v3469 = vadd.f32 %v3030, %v3419
      %v3470 = vadd.f32 %v3031, %v3424
      %v3471 = vadd.f32 %v3032, %v3427
      %v3472 = vadd.f32 %v3033, %v3432
      %v3473 = vadd.f32 %v3034, %v3435
      %v3474 = vld [vmem:[#allocation2 + $0xa0] sm:$0x7]
      %s3475 = scalar_lea.vmem %s210, 28
      %v3476 = vld [vmem:[%s3475] sm:$0xf]
      %v3478 = vunpack.c.l.b16 %v3474
      %v3479 = vpack.c.b16 %v3478, %v3478
      %vm3480 = vsmask.f32 5376
      %v3482 = vshrl.u32 %v3148, 16
      %v3484 = vrot.slane %v3482, 2
      %v3485 = vshll.u32 %v3148, 16
      %v3487 = vrot.slane %v3485, 3
      %v3488 = vor.u32 %v3484, %v3487
      %v3490 = vshrl.u32 %v3149, 16
      %v3492 = vrot.slane %v3490, 2
      %v3493 = vshll.u32 %v3149, 16
      %v3495 = vrot.slane %v3493, 3
      %v3496 = vor.u32 %v3492, %v3495
      %v3497 = vsel %vm3480, %v3488, %v3496
      %v3499 = vshrl.u32 %v3150, 16
      %v3501 = vrot.slane %v3499, 2
      %v3502 = vshll.u32 %v3150, 16
      %v3504 = vrot.slane %v3502, 3
      %v3505 = vor.u32 %v3501, %v3504
      %v3506 = vsel %vm3480, %v3496, %v3505
      %v3508 = vshrl.u32 %v3151, 16
      %v3510 = vrot.slane %v3508, 2
      %v3511 = vshll.u32 %v3151, 16
      %v3513 = vrot.slane %v3511, 3
      %v3514 = vor.u32 %v3510, %v3513
      %v3515 = vsel %vm3480, %v3505, %v3514
      %v3517 = vshrl.u32 %v3152, 16
      %v3519 = vrot.slane %v3517, 2
      %v3520 = vshll.u32 %v3152, 16
      %v3522 = vrot.slane %v3520, 3
      %v3523 = vor.u32 %v3519, %v3522
      %v3524 = vsel %vm3480, %v3514, %v3523
      %v3526 = vshrl.u32 %v3153, 16
      %v3528 = vrot.slane %v3526, 2
      %v3529 = vshll.u32 %v3153, 16
      %v3531 = vrot.slane %v3529, 3
      %v3532 = vor.u32 %v3528, %v3531
      %v3533 = vsel %vm3480, %v3523, %v3532
      %v3535 = vshrl.u32 %v3154, 16
      %v3537 = vrot.slane %v3535, 2
      %v3538 = vshll.u32 %v3154, 16
      %v3540 = vrot.slane %v3538, 3
      %v3541 = vor.u32 %v3537, %v3540
      %v3542 = vsel %vm3480, %v3532, %v3541
      %v3544 = vshrl.u32 %v3155, 16
      %v3546 = vrot.slane %v3544, 2
      %v3547 = vshll.u32 %v3155, 16
      %v3549 = vrot.slane %v3547, 3
      %v3550 = vor.u32 %v3546, %v3549
      %v3551 = vsel %vm3480, %v3541, %v3550
      %v3553 = vshrl.u32 %v3156, 16
      %v3555 = vrot.slane %v3553, 2
      %v3556 = vshll.u32 %v3156, 16
      %v3558 = vrot.slane %v3556, 3
      %v3559 = vor.u32 %v3555, %v3558
      %v3560 = vsel %vm3480, %v3550, %v3559
      %v3562 = vshrl.u32 %v3157, 16
      %v3564 = vrot.slane %v3562, 2
      %v3565 = vshll.u32 %v3157, 16
      %v3567 = vrot.slane %v3565, 3
      %v3568 = vor.u32 %v3564, %v3567
      %v3569 = vsel %vm3480, %v3559, %v3568
      %v3571 = vshrl.u32 %v3158, 16
      %v3573 = vrot.slane %v3571, 2
      %v3574 = vshll.u32 %v3158, 16
      %v3576 = vrot.slane %v3574, 3
      %v3577 = vor.u32 %v3573, %v3576
      %v3578 = vsel %vm3480, %v3568, %v3577
      %v3580 = vshrl.u32 %v3159, 16
      %v3582 = vrot.slane %v3580, 2
      %v3583 = vshll.u32 %v3159, 16
      %v3585 = vrot.slane %v3583, 3
      %v3586 = vor.u32 %v3582, %v3585
      %v3587 = vsel %vm3480, %v3577, %v3586
      %v3589 = vshrl.u32 %v3160, 16
      %v3591 = vrot.slane %v3589, 2
      %v3592 = vshll.u32 %v3160, 16
      %v3594 = vrot.slane %v3592, 3
      %v3595 = vor.u32 %v3591, %v3594
      %v3596 = vsel %vm3480, %v3586, %v3595
      %v3598 = vshrl.u32 %v3161, 16
      %v3600 = vrot.slane %v3598, 2
      %v3601 = vshll.u32 %v3161, 16
      %v3603 = vrot.slane %v3601, 3
      %v3604 = vor.u32 %v3600, %v3603
      %v3605 = vsel %vm3480, %v3595, %v3604
      %v3607 = vshrl.u32 %v3162, 16
      %v3609 = vrot.slane %v3607, 2
      %v3610 = vshll.u32 %v3162, 16
      %v3612 = vrot.slane %v3610, 3
      %v3613 = vor.u32 %v3609, %v3612
      %v3614 = vsel %vm3480, %v3604, %v3613
      %v3616 = vshrl.u32 %v3163, 16
      %v3618 = vrot.slane %v3616, 2
      %v3619 = vshll.u32 %v3163, 16
      %v3621 = vrot.slane %v3619, 3
      %v3622 = vor.u32 %v3618, %v3621
      %v3623 = vsel %vm3480, %v3613, %v3622
      %v3625 = vshrl.u32 %v3164, 16
      %v3627 = vrot.slane %v3625, 2
      %v3628 = vshll.u32 %v3164, 16
      %v3630 = vrot.slane %v3628, 3
      %v3631 = vor.u32 %v3627, %v3630
      %v3632 = vsel %vm3480, %v3622, %v3631
      %v3634 = vshrl.u32 %v3165, 16
      %v3636 = vrot.slane %v3634, 2
      %v3637 = vshll.u32 %v3165, 16
      %v3639 = vrot.slane %v3637, 3
      %v3640 = vor.u32 %v3636, %v3639
      %v3641 = vsel %vm3480, %v3631, %v3640
      %v3643 = vshrl.u32 %v3479, 16
      %v3645 = vrot.slane %v3643, 2
      %v3646 = vshll.u32 %v3479, 16
      %v3648 = vrot.slane %v3646, 3
      %v3649 = vor.u32 %v3645, %v3648
      %v3650 = vsel %vm3480, %v3640, %v3649
      %v3652 = vsel %vm1069, %v3497, 0
      %v3655 = vsel %vm1069, %v3506, 0
      %v3658 = vsel %vm1069, %v3515, 0
      %v3661 = vsel %vm1069, %v3524, 0
      %v3664 = vsel %vm1069, %v3533, 0
      %v3667 = vsel %vm1069, %v3542, 0
      %v3670 = vsel %vm1069, %v3551, 0
      %v3673 = vsel %vm1069, %v3560, 0
      %v3676 = vsel %vm1069, %v3569, 0
      %v3679 = vsel %vm1069, %v3578, 0
      %v3682 = vsel %vm1069, %v3587, 0
      %v3685 = vsel %vm1069, %v3596, 0
      %v3688 = vsel %vm1069, %v3605, 0
      %v3691 = vsel %vm1069, %v3614, 0
      %v3694 = vsel %vm1069, %v3623, 0
      %v3697 = vsel %vm1069, %v3632, 0
      %v3700 = vsel %vm1069, %v3641, 0
      %v3703 = vsel %vm1069, %v3650, 0
      %v3706 = vsel %vm1124, %v3476, 0
      %3708 = vmatprep.subr.bf16.mxu0 0
      %3709 = vmatpush1.bf16.msra.mxu0 %v3706
      %3710 = vmatprep.subr.bf16.mxu0 0
      %3711 = vmatpush1.bf16.msra.mxu0 0
      %3712 = vmatprep.subr.bf16.mxu0 0
      %3713 = vmatpush1.bf16.msra.mxu0 0
      %3714 = vmatprep.subr.bf16.mxu0 0
      %3715 = vmatpush1.bf16.msra.mxu0 0
      %3716 = vmatprep.subr.bf16.mxu0 0
      %3717 = vmatpush1.bf16.msra.mxu0 0
      %3718 = vmatprep.subr.bf16.mxu0 0
      %3719 = vmatpush1.bf16.msra.mxu0 0
      %3720 = vmatprep.subr.bf16.mxu0 0
      %3721 = vmatpush1.bf16.msra.mxu0 0
      %3722 = vmatprep.subr.bf16.mxu0 0
      %3723 = vmatpush1.bf16.msra.mxu0 0
      %3724 = vmatprep.subr.bf16.mxu0 0
      %3725 = vmatpush1.bf16.msra.mxu0 0
      %3726 = vmatprep.subr.bf16.mxu0 0
      %3727 = vmatpush1.bf16.msra.mxu0 0
      %3728 = vmatprep.subr.bf16.mxu0 0
      %3729 = vmatpush1.bf16.msra.mxu0 0
      %3730 = vmatprep.subr.bf16.mxu0 0
      %3731 = vmatpush1.bf16.msra.mxu0 0
      %3732 = vmatprep.subr.bf16.mxu0 0
      %3733 = vmatpush1.bf16.msra.mxu0 0
      %3734 = vmatprep.subr.bf16.mxu0 0
      %3735 = vmatpush1.bf16.msra.mxu0 0
      %3736 = vmatprep.subr.bf16.mxu0 0
      %3737 = vmatpush1.bf16.msra.mxu0 0
      %3738 = vmatprep.subr.bf16.mxu0 0
      %3739 = vmatpush1.bf16.msra.mxu0 0
      %3740 = vmatprep.mubr.bf16.mxu0 0
      %3741 = vmatmul.mubr.bf16.gmra.mrb[0].mxu0 %v3652
      %v3742 = vpop.f32.mrb[0].mxu0
      %v3743 = vadd.f32 0.0, %v3742
      %v3744 = vpop.f32.mrb[0].mxu0
      %v3745 = vpop.f32.mrb[0].mxu0
      %v3746 = vadd.f32 0.0, %v3745
      %v3747 = vpop.f32.mrb[0].mxu0
      %3748 = vmatprep.mubr.bf16.mxu0 0
      %3749 = vmatmul.mubr.bf16.gmra.mrb[0].mxu0 %v3655
      %v3750 = vpop.f32.mrb[0].mxu0
      %v3751 = vadd.f32 0.0, %v3750
      %v3752 = vpop.f32.mrb[0].mxu0
      %v3753 = vpop.f32.mrb[0].mxu0
      %v3754 = vadd.f32 0.0, %v3753
      %v3755 = vpop.f32.mrb[0].mxu0
      %3756 = vmatprep.mubr.bf16.mxu0 0
      %3757 = vmatmul.mubr.bf16.gmra.mrb[0].mxu0 %v3658
      %v3758 = vpop.f32.mrb[0].mxu0
      %v3759 = vadd.f32 0.0, %v3758
      %v3760 = vpop.f32.mrb[0].mxu0
      %v3761 = vpop.f32.mrb[0].mxu0
      %v3762 = vadd.f32 0.0, %v3761
      %v3763 = vpop.f32.mrb[0].mxu0
      %3764 = vmatprep.mubr.bf16.mxu0 0
      %3765 = vmatmul.mubr.bf16.gmra.mrb[0].mxu0 %v3661
      %v3766 = vpop.f32.mrb[0].mxu0
      %v3767 = vadd.f32 0.0, %v3766
      %v3768 = vpop.f32.mrb[0].mxu0
      %v3769 = vpop.f32.mrb[0].mxu0
      %v3770 = vadd.f32 0.0, %v3769
      %v3771 = vpop.f32.mrb[0].mxu0
      %3772 = vmatprep.mubr.bf16.mxu0 0
      %3773 = vmatmul.mubr.bf16.gmra.mrb[0].mxu0 %v3664
      %v3774 = vpop.f32.mrb[0].mxu0
      %v3775 = vadd.f32 0.0, %v3774
      %v3776 = vpop.f32.mrb[0].mxu0
      %v3777 = vpop.f32.mrb[0].mxu0
      %v3778 = vadd.f32 0.0, %v3777
      %v3779 = vpop.f32.mrb[0].mxu0
      %3780 = vmatprep.mubr.bf16.mxu0 0
      %3781 = vmatmul.mubr.bf16.gmra.mrb[0].mxu0 %v3667
      %v3782 = vpop.f32.mrb[0].mxu0
      %v3783 = vadd.f32 0.0, %v3782
      %v3784 = vpop.f32.mrb[0].mxu0
      %v3785 = vpop.f32.mrb[0].mxu0
      %v3786 = vadd.f32 0.0, %v3785
      %v3787 = vpop.f32.mrb[0].mxu0
      %3788 = vmatprep.mubr.bf16.mxu0 0
      %3789 = vmatmul.mubr.bf16.gmra.mrb[0].mxu0 %v3670
      %v3790 = vpop.f32.mrb[0].mxu0
      %v3791 = vadd.f32 0.0, %v3790
      %v3792 = vpop.f32.mrb[0].mxu0
      %v3793 = vpop.f32.mrb[0].mxu0
      %v3794 = vadd.f32 0.0, %v3793
      %v3795 = vpop.f32.mrb[0].mxu0
      %3796 = vmatprep.mubr.bf16.mxu0 0
      %3797 = vmatmul.mubr.bf16.gmra.mrb[0].mxu0 %v3673
      %v3798 = vpop.f32.mrb[0].mxu0
      %v3799 = vadd.f32 0.0, %v3798
      %v3800 = vpop.f32.mrb[0].mxu0
      %v3801 = vpop.f32.mrb[0].mxu0
      %v3802 = vadd.f32 0.0, %v3801
      %v3803 = vpop.f32.mrb[0].mxu0
      %3804 = vmatprep.mubr.bf16.mxu0 0
      %3805 = vmatmul.mubr.bf16.gmra.mrb[0].mxu0 %v3676
      %v3806 = vpop.f32.mrb[0].mxu0
      %v3807 = vadd.f32 0.0, %v3806
      %v3808 = vpop.f32.mrb[0].mxu0
      %v3809 = vpop.f32.mrb[0].mxu0
      %v3810 = vadd.f32 0.0, %v3809
      %v3811 = vpop.f32.mrb[0].mxu0
      %3812 = vmatprep.mubr.bf16.mxu0 0
      %3813 = vmatmul.mubr.bf16.gmra.mrb[0].mxu0 %v3679
      %v3814 = vpop.f32.mrb[0].mxu0
      %v3815 = vadd.f32 0.0, %v3814
      %v3816 = vpop.f32.mrb[0].mxu0
      %v3817 = vpop.f32.mrb[0].mxu0
      %v3818 = vadd.f32 0.0, %v3817
      %v3819 = vpop.f32.mrb[0].mxu0
      %3820 = vmatprep.mubr.bf16.mxu0 0
      %3821 = vmatmul.mubr.bf16.gmra.mrb[0].mxu0 %v3682
      %v3822 = vpop.f32.mrb[0].mxu0
      %v3823 = vadd.f32 0.0, %v3822
      %v3824 = vpop.f32.mrb[0].mxu0
      %v3825 = vpop.f32.mrb[0].mxu0
      %v3826 = vadd.f32 0.0, %v3825
      %v3827 = vpop.f32.mrb[0].mxu0
      %3828 = vmatprep.mubr.bf16.mxu0 0
      %3829 = vmatmul.mubr.bf16.gmra.mrb[0].mxu0 %v3685
      %v3830 = vpop.f32.mrb[0].mxu0
      %v3831 = vadd.f32 0.0, %v3830
      %v3832 = vpop.f32.mrb[0].mxu0
      %v3833 = vpop.f32.mrb[0].mxu0
      %v3834 = vadd.f32 0.0, %v3833
      %v3835 = vpop.f32.mrb[0].mxu0
      %3836 = vmatprep.mubr.bf16.mxu0 0
      %3837 = vmatmul.mubr.bf16.gmra.mrb[0].mxu0 %v3688
      %v3838 = vpop.f32.mrb[0].mxu0
      %v3839 = vadd.f32 0.0, %v3838
      %v3840 = vpop.f32.mrb[0].mxu0
      %v3841 = vpop.f32.mrb[0].mxu0
      %v3842 = vadd.f32 0.0, %v3841
      %v3843 = vpop.f32.mrb[0].mxu0
      %3844 = vmatprep.mubr.bf16.mxu0 0
      %3845 = vmatmul.mubr.bf16.gmra.mrb[0].mxu0 %v3691
      %v3846 = vpop.f32.mrb[0].mxu0
      %v3847 = vadd.f32 0.0, %v3846
      %v3848 = vpop.f32.mrb[0].mxu0
      %v3849 = vpop.f32.mrb[0].mxu0
      %v3850 = vadd.f32 0.0, %v3849
      %v3851 = vpop.f32.mrb[0].mxu0
      %3852 = vmatprep.mubr.bf16.mxu0 0
      %3853 = vmatmul.mubr.bf16.gmra.mrb[0].mxu0 %v3694
      %v3854 = vpop.f32.mrb[0].mxu0
      %v3855 = vadd.f32 0.0, %v3854
      %v3856 = vpop.f32.mrb[0].mxu0
      %v3857 = vpop.f32.mrb[0].mxu0
      %v3858 = vadd.f32 0.0, %v3857
      %v3859 = vpop.f32.mrb[0].mxu0
      %3860 = vmatprep.mubr.bf16.mxu0 0
      %3861 = vmatmul.mubr.bf16.gmra.mrb[0].mxu0 %v3697
      %v3862 = vpop.f32.mrb[0].mxu0
      %v3863 = vadd.f32 0.0, %v3862
      %v3864 = vpop.f32.mrb[0].mxu0
      %v3865 = vpop.f32.mrb[0].mxu0
      %v3866 = vadd.f32 0.0, %v3865
      %v3867 = vpop.f32.mrb[0].mxu0
      %3868 = vmatprep.mubr.bf16.mxu0 0
      %3869 = vmatmul.mubr.bf16.gmra.mrb[0].mxu0 %v3700
      %v3870 = vpop.f32.mrb[0].mxu0
      %v3871 = vadd.f32 0.0, %v3870
      %v3872 = vpop.f32.mrb[0].mxu0
      %v3873 = vpop.f32.mrb[0].mxu0
      %v3874 = vadd.f32 0.0, %v3873
      %v3875 = vpop.f32.mrb[0].mxu0
      %3876 = vmatprep.mubr.bf16.mxu0 0
      %3877 = vmatmul.mubr.bf16.gmra.mrb[0].mxu0 %v3703
      %v3878 = vpop.f32.mrb[0].mxu0
      %v3879 = vadd.f32 0.0, %v3878
      %v3880 = vpop.f32.mrb[0].mxu0
      %v3881 = vpop.f32.mrb[0].mxu0
      %v3882 = vadd.f32 0.0, %v3881
      %v3883 = vpop.f32.mrb[0].mxu0
      %3884 = vdwg.mxu0
      %v3885 = vadd.f32 %v3438, %v3743
      %v3886 = vadd.f32 %v3439, %v3746
      %v3887 = vadd.f32 %v3440, %v3751
      %v3888 = vadd.f32 %v3441, %v3754
      %v3889 = vadd.f32 %v3442, %v3759
      %v3890 = vadd.f32 %v3443, %v3762
      %v3891 = vadd.f32 %v3444, %v3767
      %v3892 = vadd.f32 %v3445, %v3770
      %v3893 = vadd.f32 %v3446, %v3775
      %v3894 = vadd.f32 %v3447, %v3778
      %v3895 = vadd.f32 %v3448, %v3783
      %v3896 = vadd.f32 %v3449, %v3786
      %v3897 = vadd.f32 %v3450, %v3791
      %v3898 = vadd.f32 %v3451, %v3794
      %v3899 = vadd.f32 %v3452, %v3799
      %v3900 = vadd.f32 %v3453, %v3802
      %v3901 = vadd.f32 %v3454, %v3807
      %v3902 = vadd.f32 %v3455, %v3810
      %v3903 = vadd.f32 %v3456, %v3815
      %v3904 = vadd.f32 %v3457, %v3818
      %v3905 = vadd.f32 %v3458, %v3823
      %v3906 = vadd.f32 %v3459, %v3826
      %v3907 = vadd.f32 %v3460, %v3831
      %v3908 = vadd.f32 %v3461, %v3834
      %v3909 = vadd.f32 %v3462, %v3839
      %v3910 = vadd.f32 %v3463, %v3842
      %v3911 = vadd.f32 %v3464, %v3847
      %v3912 = vadd.f32 %v3465, %v3850
      %v3913 = vadd.f32 %v3466, %v3855
      %v3914 = vadd.f32 %v3467, %v3858
      %v3915 = vadd.f32 %v3468, %v3863
      %v3916 = vadd.f32 %v3469, %v3866
      %v3917 = vadd.f32 %v3470, %v3871
      %v3918 = vadd.f32 %v3471, %v3874
      %v3919 = vadd.f32 %v3472, %v3879
      %v3920 = vadd.f32 %v3473, %v3882
      %v3921 = vld [vmem:[#allocation2 + $0x10] sm:$0x8]
      %s3922 = scalar_lea.vmem %s210, 32
      %v3923 = vld [vmem:[%s3922] sm:$0xf]
      %v3925 = vunpack.c.l.b16 %v3921
      %v3926 = vpack.c.b16 %v3112, %v3925
      %vm3927 = vcmask 1044480
      %v3928 = vrot.slane %v3926, 3
      %v3929 = vrot.slane %v3149, 3
      %v3930 = vsel %vm3927, %v3928, %v3929
      %v3931 = vrot.slane %v3150, 3
      %v3932 = vsel %vm3927, %v3929, %v3931
      %v3933 = vrot.slane %v3151, 3
      %v3934 = vsel %vm3927, %v3931, %v3933
      %v3935 = vrot.slane %v3152, 3
      %v3936 = vsel %vm3927, %v3933, %v3935
      %v3937 = vrot.slane %v3153, 3
      %v3938 = vsel %vm3927, %v3935, %v3937
      %v3939 = vrot.slane %v3154, 3
      %v3940 = vsel %vm3927, %v3937, %v3939
      %v3941 = vrot.slane %v3155, 3
      %v3942 = vsel %vm3927, %v3939, %v3941
      %v3943 = vrot.slane %v3156, 3
      %v3944 = vsel %vm3927, %v3941, %v3943
      %v3945 = vrot.slane %v3157, 3
      %v3946 = vsel %vm3927, %v3943, %v3945
      %v3947 = vrot.slane %v3158, 3
      %v3948 = vsel %vm3927, %v3945, %v3947
      %v3949 = vrot.slane %v3159, 3
      %v3950 = vsel %vm3927, %v3947, %v3949
      %v3951 = vrot.slane %v3160, 3
      %v3952 = vsel %vm3927, %v3949, %v3951
      %v3953 = vrot.slane %v3161, 3
      %v3954 = vsel %vm3927, %v3951, %v3953
      %v3955 = vrot.slane %v3162, 3
      %v3956 = vsel %vm3927, %v3953, %v3955
      %v3957 = vrot.slane %v3163, 3
      %v3958 = vsel %vm3927, %v3955, %v3957
      %v3959 = vrot.slane %v3164, 3
      %v3960 = vsel %vm3927, %v3957, %v3959
      %v3961 = vrot.slane %v3165, 3
      %v3962 = vsel %vm3927, %v3959, %v3961
      %v3963 = vrot.slane %v3479, 3
      %v3964 = vsel %vm3927, %v3961, %v3963
      %v3966 = vsel %vm1069, %v3930, 0
      %v3969 = vsel %vm1069, %v3932, 0
      %v3972 = vsel %vm1069, %v3934, 0
      %v3975 = vsel %vm1069, %v3936, 0
      %v3978 = vsel %vm1069, %v3938, 0
      %v3981 = vsel %vm1069, %v3940, 0
      %v3984 = vsel %vm1069, %v3942, 0
      %v3987 = vsel %vm1069, %v3944, 0
      %v3990 = vsel %vm1069, %v3946, 0
      %v3993 = vsel %vm1069, %v3948, 0
      %v3996 = vsel %vm1069, %v3950, 0
      %v3999 = vsel %vm1069, %v3952, 0
      %v4002 = vsel %vm1069, %v3954, 0
      %v4005 = vsel %vm1069, %v3956, 0
      %v4008 = vsel %vm1069, %v3958, 0
      %v4011 = vsel %vm1069, %v3960, 0
      %v4014 = vsel %vm1069, %v3962, 0
      %v4017 = vsel %vm1069, %v3964, 0
      %v4020 = vsel %vm1124, %v3923, 0
      %4022 = vmatprep.subr.bf16.mxu0 0
      %4023 = vmatpush1.bf16.msra.mxu0 %v4020
      %4024 = vmatprep.subr.bf16.mxu0 0
      %4025 = vmatpush1.bf16.msra.mxu0 0
      %4026 = vmatprep.subr.bf16.mxu0 0
      %4027 = vmatpush1.bf16.msra.mxu0 0
      %4028 = vmatprep.subr.bf16.mxu0 0
      %4029 = vmatpush1.bf16.msra.mxu0 0
      %4030 = vmatprep.subr.bf16.mxu0 0
      %4031 = vmatpush1.bf16.msra.mxu0 0
      %4032 = vmatprep.subr.bf16.mxu0 0
      %4033 = vmatpush1.bf16.msra.mxu0 0
      %4034 = vmatprep.subr.bf16.mxu0 0
      %4035 = vmatpush1.bf16.msra.mxu0 0
      %4036 = vmatprep.subr.bf16.mxu0 0
      %4037 = vmatpush1.bf16.msra.mxu0 0
      %4038 = vmatprep.subr.bf16.mxu0 0
      %4039 = vmatpush1.bf16.msra.mxu0 0
      %4040 = vmatprep.subr.bf16.mxu0 0
      %4041 = vmatpush1.bf16.msra.mxu0 0
      %4042 = vmatprep.subr.bf16.mxu0 0
      %4043 = vmatpush1.bf16.msra.mxu0 0
      %4044 = vmatprep.subr.bf16.mxu0 0
      %4045 = vmatpush1.bf16.msra.mxu0 0
      %4046 = vmatprep.subr.bf16.mxu0 0
      %4047 = vmatpush1.bf16.msra.mxu0 0
      %4048 = vmatprep.subr.bf16.mxu0 0
      %4049 = vmatpush1.bf16.msra.mxu0 0
      %4050 = vmatprep.subr.bf16.mxu0 0
      %4051 = vmatpush1.bf16.msra.mxu0 0
      %4052 = vmatprep.subr.bf16.mxu0 0
      %4053 = vmatpush1.bf16.msra.mxu0 0
      %4054 = vmatprep.mubr.bf16.mxu0 0
      %4055 = vmatmul.mubr.bf16.gmra.mrb[0].mxu0 %v3966
      %v4056 = vpop.f32.mrb[0].mxu0
      %v4057 = vadd.f32 0.0, %v4056
      %v4058 = vpop.f32.mrb[0].mxu0
      %v4059 = vpop.f32.mrb[0].mxu0
      %v4060 = vadd.f32 0.0, %v4059
      %v4061 = vpop.f32.mrb[0].mxu0
      %4062 = vmatprep.mubr.bf16.mxu0 0
      %4063 = vmatmul.mubr.bf16.gmra.mrb[0].mxu0 %v3969
      %v4064 = vpop.f32.mrb[0].mxu0
      %v4065 = vadd.f32 0.0, %v4064
      %v4066 = vpop.f32.mrb[0].mxu0
      %v4067 = vpop.f32.mrb[0].mxu0
      %v4068 = vadd.f32 0.0, %v4067
      %v4069 = vpop.f32.mrb[0].mxu0
      %4070 = vmatprep.mubr.bf16.mxu0 0
      %4071 = vmatmul.mubr.bf16.gmra.mrb[0].mxu0 %v3972
      %v4072 = vpop.f32.mrb[0].mxu0
      %v4073 = vadd.f32 0.0, %v4072
      %v4074 = vpop.f32.mrb[0].mxu0
      %v4075 = vpop.f32.mrb[0].mxu0
      %v4076 = vadd.f32 0.0, %v4075
      %v4077 = vpop.f32.mrb[0].mxu0
      %4078 = vmatprep.mubr.bf16.mxu0 0
      %4079 = vmatmul.mubr.bf16.gmra.mrb[0].mxu0 %v3975
      %v4080 = vpop.f32.mrb[0].mxu0
      %v4081 = vadd.f32 0.0, %v4080
      %v4082 = vpop.f32.mrb[0].mxu0
      %v4083 = vpop.f32.mrb[0].mxu0
      %v4084 = vadd.f32 0.0, %v4083
      %v4085 = vpop.f32.mrb[0].mxu0
      %4086 = vmatprep.mubr.bf16.mxu0 0
      %4087 = vmatmul.mubr.bf16.gmra.mrb[0].mxu0 %v3978
      %v4088 = vpop.f32.mrb[0].mxu0
      %v4089 = vadd.f32 0.0, %v4088
      %v4090 = vpop.f32.mrb[0].mxu0
      %v4091 = vpop.f32.mrb[0].mxu0
      %v4092 = vadd.f32 0.0, %v4091
      %v4093 = vpop.f32.mrb[0].mxu0
      %4094 = vmatprep.mubr.bf16.mxu0 0
      %4095 = vmatmul.mubr.bf16.gmra.mrb[0].mxu0 %v3981
      %v4096 = vpop.f32.mrb[0].mxu0
      %v4097 = vadd.f32 0.0, %v4096
      %v4098 = vpop.f32.mrb[0].mxu0
      %v4099 = vpop.f32.mrb[0].mxu0
      %v4100 = vadd.f32 0.0, %v4099
      %v4101 = vpop.f32.mrb[0].mxu0
      %4102 = vmatprep.mubr.bf16.mxu0 0
      %4103 = vmatmul.mubr.bf16.gmra.mrb[0].mxu0 %v3984
      %v4104 = vpop.f32.mrb[0].mxu0
      %v4105 = vadd.f32 0.0, %v4104
      %v4106 = vpop.f32.mrb[0].mxu0
      %v4107 = vpop.f32.mrb[0].mxu0
      %v4108 = vadd.f32 0.0, %v4107
      %v4109 = vpop.f32.mrb[0].mxu0
      %4110 = vmatprep.mubr.bf16.mxu0 0
      %4111 = vmatmul.mubr.bf16.gmra.mrb[0].mxu0 %v3987
      %v4112 = vpop.f32.mrb[0].mxu0
      %v4113 = vadd.f32 0.0, %v4112
      %v4114 = vpop.f32.mrb[0].mxu0
      %v4115 = vpop.f32.mrb[0].mxu0
      %v4116 = vadd.f32 0.0, %v4115
      %v4117 = vpop.f32.mrb[0].mxu0
      %4118 = vmatprep.mubr.bf16.mxu0 0
      %4119 = vmatmul.mubr.bf16.gmra.mrb[0].mxu0 %v3990
      %v4120 = vpop.f32.mrb[0].mxu0
      %v4121 = vadd.f32 0.0, %v4120
      %v4122 = vpop.f32.mrb[0].mxu0
      %v4123 = vpop.f32.mrb[0].mxu0
      %v4124 = vadd.f32 0.0, %v4123
      %v4125 = vpop.f32.mrb[0].mxu0
      %4126 = vmatprep.mubr.bf16.mxu0 0
      %4127 = vmatmul.mubr.bf16.gmra.mrb[0].mxu0 %v3993
      %v4128 = vpop.f32.mrb[0].mxu0
      %v4129 = vadd.f32 0.0, %v4128
      %v4130 = vpop.f32.mrb[0].mxu0
      %v4131 = vpop.f32.mrb[0].mxu0
      %v4132 = vadd.f32 0.0, %v4131
      %v4133 = vpop.f32.mrb[0].mxu0
      %4134 = vmatprep.mubr.bf16.mxu0 0
      %4135 = vmatmul.mubr.bf16.gmra.mrb[0].mxu0 %v3996
      %v4136 = vpop.f32.mrb[0].mxu0
      %v4137 = vadd.f32 0.0, %v4136
      %v4138 = vpop.f32.mrb[0].mxu0
      %v4139 = vpop.f32.mrb[0].mxu0
      %v4140 = vadd.f32 0.0, %v4139
      %v4141 = vpop.f32.mrb[0].mxu0
      %4142 = vmatprep.mubr.bf16.mxu0 0
      %4143 = vmatmul.mubr.bf16.gmra.mrb[0].mxu0 %v3999
      %v4144 = vpop.f32.mrb[0].mxu0
      %v4145 = vadd.f32 0.0, %v4144
      %v4146 = vpop.f32.mrb[0].mxu0
      %v4147 = vpop.f32.mrb[0].mxu0
      %v4148 = vadd.f32 0.0, %v4147
      %v4149 = vpop.f32.mrb[0].mxu0
      %4150 = vmatprep.mubr.bf16.mxu0 0
      %4151 = vmatmul.mubr.bf16.gmra.mrb[0].mxu0 %v4002
      %v4152 = vpop.f32.mrb[0].mxu0
      %v4153 = vadd.f32 0.0, %v4152
      %v4154 = vpop.f32.mrb[0].mxu0
      %v4155 = vpop.f32.mrb[0].mxu0
      %v4156 = vadd.f32 0.0, %v4155
      %v4157 = vpop.f32.mrb[0].mxu0
      %4158 = vmatprep.mubr.bf16.mxu0 0
      %4159 = vmatmul.mubr.bf16.gmra.mrb[0].mxu0 %v4005
      %v4160 = vpop.f32.mrb[0].mxu0
      %v4161 = vadd.f32 0.0, %v4160
      %v4162 = vpop.f32.mrb[0].mxu0
      %v4163 = vpop.f32.mrb[0].mxu0
      %v4164 = vadd.f32 0.0, %v4163
      %v4165 = vpop.f32.mrb[0].mxu0
      %4166 = vmatprep.mubr.bf16.mxu0 0
      %4167 = vmatmul.mubr.bf16.gmra.mrb[0].mxu0 %v4008
      %v4168 = vpop.f32.mrb[0].mxu0
      %v4169 = vadd.f32 0.0, %v4168
      %v4170 = vpop.f32.mrb[0].mxu0
      %v4171 = vpop.f32.mrb[0].mxu0
      %v4172 = vadd.f32 0.0, %v4171
      %v4173 = vpop.f32.mrb[0].mxu0
      %4174 = vmatprep.mubr.bf16.mxu0 0
      %4175 = vmatmul.mubr.bf16.gmra.mrb[0].mxu0 %v4011
      %v4176 = vpop.f32.mrb[0].mxu0
      %v4177 = vadd.f32 0.0, %v4176
      %v4178 = vpop.f32.mrb[0].mxu0
      %v4179 = vpop.f32.mrb[0].mxu0
      %v4180 = vadd.f32 0.0, %v4179
      %v4181 = vpop.f32.mrb[0].mxu0
      %4182 = vmatprep.mubr.bf16.mxu0 0
      %4183 = vmatmul.mubr.bf16.gmra.mrb[0].mxu0 %v4014
      %v4184 = vpop.f32.mrb[0].mxu0
      %v4185 = vadd.f32 0.0, %v4184
      %v4186 = vpop.f32.mrb[0].mxu0
      %v4187 = vpop.f32.mrb[0].mxu0
      %v4188 = vadd.f32 0.0, %v4187
      %v4189 = vpop.f32.mrb[0].mxu0
      %4190 = vmatprep.mubr.bf16.mxu0 0
      %4191 = vmatmul.mubr.bf16.gmra.mrb[0].mxu0 %v4017
      %v4192 = vpop.f32.mrb[0].mxu0
      %v4193 = vadd.f32 0.0, %v4192
      %v4194 = vpop.f32.mrb[0].mxu0
      %v4195 = vpop.f32.mrb[0].mxu0
      %v4196 = vadd.f32 0.0, %v4195
      %v4197 = vpop.f32.mrb[0].mxu0
      %4198 = vdwg.mxu0
      %v4199 = vadd.f32 %v3885, %v4057
      %v4200 = vadd.f32 %v3886, %v4060
      %v4201 = vadd.f32 %v3887, %v4065
      %v4202 = vadd.f32 %v3888, %v4068
      %v4203 = vadd.f32 %v3889, %v4073
      %v4204 = vadd.f32 %v3890, %v4076
      %v4205 = vadd.f32 %v3891, %v4081
      %v4206 = vadd.f32 %v3892, %v4084
      %v4207 = vadd.f32 %v3893, %v4089
      %v4208 = vadd.f32 %v3894, %v4092
      %v4209 = vadd.f32 %v3895, %v4097
      %v4210 = vadd.f32 %v3896, %v4100
      %v4211 = vadd.f32 %v3897, %v4105
      %v4212 = vadd.f32 %v3898, %v4108
      %v4213 = vadd.f32 %v3899, %v4113
      %v4214 = vadd.f32 %v3900, %v4116
      %v4215 = vadd.f32 %v3901, %v4121
      %v4216 = vadd.f32 %v3902, %v4124
      %v4217 = vadd.f32 %v3903, %v4129
      %v4218 = vadd.f32 %v3904, %v4132
      %v4219 = vadd.f32 %v3905, %v4137
      %v4220 = vadd.f32 %v3906, %v4140
      %v4221 = vadd.f32 %v3907, %v4145
      %v4222 = vadd.f32 %v3908, %v4148
      %v4223 = vadd.f32 %v3909, %v4153
      %v4224 = vadd.f32 %v3910, %v4156
      %v4225 = vadd.f32 %v3911, %v4161
      %v4226 = vadd.f32 %v3912, %v4164
      %v4227 = vadd.f32 %v3913, %v4169
      %v4228 = vadd.f32 %v3914, %v4172
      %v4229 = vadd.f32 %v3915, %v4177
      %v4230 = vadd.f32 %v3916, %v4180
      %v4231 = vadd.f32 %v3917, %v4185
      %v4232 = vadd.f32 %v3918, %v4188
      %v4233 = vadd.f32 %v3919, %v4193
      %v4234 = vadd.f32 %v3920, %v4196
      %v4235 = vld [vmem:[%s213] sm:$0x1]
      %v4237 = vlaneseq
      %v4238 = vshrl.u32 %v4237, 7
      %v4239 = vsub.s32 0, %v4238
      %v4240 = vrot.slane %v4235, %v4239
      %v4242 = vadd.f32 %v4199, %v4240
      %v4243 = vadd.f32 %v4200, %v4240
      %v4244 = vadd.f32 %v4201, %v4240
      %v4245 = vadd.f32 %v4202, %v4240
      %v4246 = vadd.f32 %v4203, %v4240
      %v4247 = vadd.f32 %v4204, %v4240
      %v4248 = vadd.f32 %v4205, %v4240
      %v4249 = vadd.f32 %v4206, %v4240
      %v4250 = vadd.f32 %v4207, %v4240
      %v4251 = vadd.f32 %v4208, %v4240
      %v4252 = vadd.f32 %v4209, %v4240
      %v4253 = vadd.f32 %v4210, %v4240
      %v4254 = vadd.f32 %v4211, %v4240
      %v4255 = vadd.f32 %v4212, %v4240
      %v4256 = vadd.f32 %v4213, %v4240
      %v4257 = vadd.f32 %v4214, %v4240
      %v4258 = vadd.f32 %v4215, %v4240
      %v4259 = vadd.f32 %v4216, %v4240
      %v4260 = vadd.f32 %v4217, %v4240
      %v4261 = vadd.f32 %v4218, %v4240
      %v4262 = vadd.f32 %v4219, %v4240
      %v4263 = vadd.f32 %v4220, %v4240
      %v4264 = vadd.f32 %v4221, %v4240
      %v4265 = vadd.f32 %v4222, %v4240
      %v4266 = vadd.f32 %v4223, %v4240
      %v4267 = vadd.f32 %v4224, %v4240
      %v4268 = vadd.f32 %v4225, %v4240
      %v4269 = vadd.f32 %v4226, %v4240
      %v4270 = vadd.f32 %v4227, %v4240
      %v4271 = vadd.f32 %v4228, %v4240
      %v4272 = vadd.f32 %v4229, %v4240
      %v4273 = vadd.f32 %v4230, %v4240
      %v4274 = vadd.f32 %v4231, %v4240
      %v4275 = vadd.f32 %v4232, %v4240
      %v4276 = vadd.f32 %v4233, %v4240
      %v4277 = vadd.f32 %v4234, %v4240
      %v4278 = vmax.f32 %v4242, 0.0
      %v4279 = vmax.f32 %v4243, 0.0
      %v4280 = vmax.f32 %v4244, 0.0
      %v4281 = vmax.f32 %v4245, 0.0
      %v4282 = vmax.f32 %v4246, 0.0
      %v4283 = vmax.f32 %v4247, 0.0
      %v4284 = vmax.f32 %v4248, 0.0
      %v4285 = vmax.f32 %v4249, 0.0
      %v4286 = vmax.f32 %v4250, 0.0
      %v4287 = vmax.f32 %v4251, 0.0
      %v4288 = vmax.f32 %v4252, 0.0
      %v4289 = vmax.f32 %v4253, 0.0
      %v4290 = vmax.f32 %v4254, 0.0
      %v4291 = vmax.f32 %v4255, 0.0
      %v4292 = vmax.f32 %v4256, 0.0
      %v4293 = vmax.f32 %v4257, 0.0
      %v4294 = vmax.f32 %v4258, 0.0
      %v4295 = vmax.f32 %v4259, 0.0
      %v4296 = vmax.f32 %v4260, 0.0
      %v4297 = vmax.f32 %v4261, 0.0
      %v4298 = vmax.f32 %v4262, 0.0
      %v4299 = vmax.f32 %v4263, 0.0
      %v4300 = vmax.f32 %v4264, 0.0
      %v4301 = vmax.f32 %v4265, 0.0
      %v4302 = vmax.f32 %v4266, 0.0
      %v4303 = vmax.f32 %v4267, 0.0
      %v4304 = vmax.f32 %v4268, 0.0
      %v4305 = vmax.f32 %v4269, 0.0
      %v4306 = vmax.f32 %v4270, 0.0
      %v4307 = vmax.f32 %v4271, 0.0
      %v4308 = vmax.f32 %v4272, 0.0
      %v4309 = vmax.f32 %v4273, 0.0
      %v4310 = vmax.f32 %v4274, 0.0
      %v4311 = vmax.f32 %v4275, 0.0
      %v4312 = vmax.f32 %v4276, 0.0
      %v4313 = vmax.f32 %v4277, 0.0
      %v4314 = vpack.c.bf16 %v4279, %v4278
      %v4316 = vunpack.c.l.b16 %v4314
      %v4317 = vunpack.c.h.b16 %v4314
      %v4318 = vpack.c.b16 %v4316, %v4316
      %v4319 = vpack.c.b16 %v4317, %v4317
      %vm4322 = vcmask 519168
      %4323 = vst.msk [vmem:[%s221] sm:$0xf] %vm4322, %v4318
      %4324 = vst.msk [vmem:[%s221 + $0x4] sm:$0xf] %vm4322, %v4319
      %v4325 = vpack.c.bf16 %v4281, %v4280
      %v4326 = vpack.c.bf16 %v4282, %v4282
      %v4329 = vunpack.c.l.b16 %v4325
      %v4330 = vunpack.c.h.b16 %v4325
      %v4331 = vunpack.c.l.b16 %v4326
      %v4332 = vpack.c.b16 %v4329, %v4329
      %v4333 = vpack.c.b16 %v4330, %v4330
      %v4334 = vpack.c.b16 %v4331, %v4331
      %vm4335 = vcmask 1042432
      %vm4336 = vcmask 1046532
      %vm4337 = vmor %vm4335, %vm4336
      %v4338 = vrot.slane %v4332, 5
      %v4339 = vrot.slane %v4338, 4
      %v4340 = vrot.slane %v4333, 5
      %v4341 = vsel %vm4337, %v4339, %v4340
      %v4342 = vrot.slane %v4340, 4
      %v4343 = vrot.slane %v4334, 5
      %v4344 = vsel %vm4337, %v4342, %v4343
      %4347 = vst.msk [vmem:[%s221 + $0x8] sm:$0xf] %vm4322, %v4341
      %4348 = vst.msk [vmem:[%s221 + $0xc] sm:$0xf] %vm4322, %v4344
      %v4349 = vpack.c.bf16 %v4283, %v4282
      %v4350 = vpack.c.bf16 %v4284, %v4284
      %v4353 = vunpack.c.l.b16 %v4349
      %v4354 = vunpack.c.h.b16 %v4349
      %v4355 = vunpack.c.l.b16 %v4350
      %v4356 = vpack.c.b16 %v4353, %v4353
      %v4357 = vpack.c.b16 %v4354, %v4354
      %v4358 = vpack.c.b16 %v4355, %v4355
      %vm4359 = vcmask 1041408
      %vm4360 = vcmask 1045508
      %vm4361 = vmor %vm4359, %vm4360
      %v4362 = vrot.slane %v4356, 6
      %v4363 = vrot.slane %v4362, 4
      %v4364 = vrot.slane %v4357, 6
      %v4365 = vsel %vm4361, %v4363, %v4364
      %v4366 = vrot.slane %v4364, 4
      %v4367 = vrot.slane %v4358, 6
      %v4368 = vsel %vm4361, %v4366, %v4367
      %4371 = vst.msk [vmem:[%s221 + $0x10] sm:$0xf] %vm4322, %v4365
      %4372 = vst.msk [vmem:[%s221 + $0x14] sm:$0xf] %vm4322, %v4368
      %v4373 = vpack.c.bf16 %v4285, %v4284
      %v4374 = vpack.c.bf16 %v4286, %v4286
      %v4377 = vunpack.c.l.b16 %v4373
      %v4378 = vunpack.c.h.b16 %v4373
      %v4379 = vunpack.c.l.b16 %v4374
      %v4380 = vpack.c.b16 %v4377, %v4377
      %v4381 = vpack.c.b16 %v4378, %v4378
      %v4382 = vpack.c.b16 %v4379, %v4379
      %vm4383 = vcmask 1040384
      %vm4384 = vcmask 1044484
      %vm4385 = vmor %vm4383, %vm4384
      %v4386 = vrot.slane %v4380, 7
      %v4387 = vrot.slane %v4386, 4
      %v4388 = vrot.slane %v4381, 7
      %v4389 = vsel %vm4385, %v4387, %v4388
      %v4390 = vrot.slane %v4388, 4
      %v4391 = vrot.slane %v4382, 7
      %v4392 = vsel %vm4385, %v4390, %v4391
      %4395 = vst.msk [vmem:[%s221 + $0x18] sm:$0xf] %vm4322, %v4389
      %4396 = vst.msk [vmem:[%s221 + $0x1c] sm:$0xf] %vm4322, %v4392
      %v4397 = vpack.c.bf16 %v4288, %v4287
      %v4399 = vunpack.c.l.b16 %v4397
      %v4400 = vunpack.c.h.b16 %v4397
      %v4401 = vpack.c.b16 %v4399, %v4399
      %v4402 = vpack.c.b16 %v4400, %v4400
      %4405 = vst.msk [vmem:[%s221 + $0x20] sm:$0xf] %vm4322, %v4401
      %4406 = vst.msk [vmem:[%s221 + $0x24] sm:$0xf] %vm4322, %v4402
      %v4407 = vpack.c.bf16 %v4290, %v4289
      %v4408 = vpack.c.bf16 %v4291, %v4291
      %v4411 = vunpack.c.l.b16 %v4407
      %v4412 = vunpack.c.h.b16 %v4407
      %v4413 = vunpack.c.l.b16 %v4408
      %v4414 = vpack.c.b16 %v4411, %v4411
      %v4415 = vpack.c.b16 %v4412, %v4412
      %v4416 = vpack.c.b16 %v4413, %v4413
      %v4417 = vrot.slane %v4414, 5
      %v4418 = vrot.slane %v4417, 4
      %v4419 = vrot.slane %v4415, 5
      %v4420 = vsel %vm4337, %v4418, %v4419
      %v4421 = vrot.slane %v4419, 4
      %v4422 = vrot.slane %v4416, 5
      %v4423 = vsel %vm4337, %v4421, %v4422
      %4426 = vst.msk [vmem:[%s221 + $0x28] sm:$0xf] %vm4322, %v4420
      %4427 = vst.msk [vmem:[%s221 + $0x2c] sm:$0xf] %vm4322, %v4423
      %v4428 = vpack.c.bf16 %v4292, %v4291
      %v4429 = vpack.c.bf16 %v4293, %v4293
      %v4432 = vunpack.c.l.b16 %v4428
      %v4433 = vunpack.c.h.b16 %v4428
      %v4434 = vunpack.c.l.b16 %v4429
      %v4435 = vpack.c.b16 %v4432, %v4432
      %v4436 = vpack.c.b16 %v4433, %v4433
      %v4437 = vpack.c.b16 %v4434, %v4434
      %v4438 = vrot.slane %v4435, 6
      %v4439 = vrot.slane %v4438, 4
      %v4440 = vrot.slane %v4436, 6
      %v4441 = vsel %vm4361, %v4439, %v4440
      %v4442 = vrot.slane %v4440, 4
      %v4443 = vrot.slane %v4437, 6
      %v4444 = vsel %vm4361, %v4442, %v4443
      %4447 = vst.msk [vmem:[%s221 + $0x30] sm:$0xf] %vm4322, %v4441
      %4448 = vst.msk [vmem:[%s221 + $0x34] sm:$0xf] %vm4322, %v4444
      %v4449 = vpack.c.bf16 %v4294, %v4293
      %v4450 = vpack.c.bf16 %v4295, %v4295
      %v4453 = vunpack.c.l.b16 %v4449
      %v4454 = vunpack.c.h.b16 %v4449
      %v4455 = vunpack.c.l.b16 %v4450
      %v4456 = vpack.c.b16 %v4453, %v4453
      %v4457 = vpack.c.b16 %v4454, %v4454
      %v4458 = vpack.c.b16 %v4455, %v4455
      %v4459 = vrot.slane %v4456, 7
      %v4460 = vrot.slane %v4459, 4
      %v4461 = vrot.slane %v4457, 7
      %v4462 = vsel %vm4385, %v4460, %v4461
      %v4463 = vrot.slane %v4461, 4
      %v4464 = vrot.slane %v4458, 7
      %v4465 = vsel %vm4385, %v4463, %v4464
      %4468 = vst.msk [vmem:[%s221 + $0x38] sm:$0xf] %vm4322, %v4462
      %4469 = vst.msk [vmem:[%s221 + $0x3c] sm:$0xf] %vm4322, %v4465
      %v4470 = vpack.c.bf16 %v4297, %v4296
      %v4472 = vunpack.c.l.b16 %v4470
      %v4473 = vunpack.c.h.b16 %v4470
      %v4474 = vpack.c.b16 %v4472, %v4472
      %v4475 = vpack.c.b16 %v4473, %v4473
      %4478 = vst.msk [vmem:[%s221 + $0x40] sm:$0xf] %vm4322, %v4474
      %4479 = vst.msk [vmem:[%s221 + $0x44] sm:$0xf] %vm4322, %v4475
      %v4480 = vpack.c.bf16 %v4299, %v4298
      %v4481 = vpack.c.bf16 %v4300, %v4300
      %v4484 = vunpack.c.l.b16 %v4480
      %v4485 = vunpack.c.h.b16 %v4480
      %v4486 = vunpack.c.l.b16 %v4481
      %v4487 = vpack.c.b16 %v4484, %v4484
      %v4488 = vpack.c.b16 %v4485, %v4485
      %v4489 = vpack.c.b16 %v4486, %v4486
      %v4490 = vrot.slane %v4487, 5
      %v4491 = vrot.slane %v4490, 4
      %v4492 = vrot.slane %v4488, 5
      %v4493 = vsel %vm4337, %v4491, %v4492
      %v4494 = vrot.slane %v4492, 4
      %v4495 = vrot.slane %v4489, 5
      %v4496 = vsel %vm4337, %v4494, %v4495
      %4499 = vst.msk [vmem:[%s221 + $0x48] sm:$0xf] %vm4322, %v4493
      %4500 = vst.msk [vmem:[%s221 + $0x4c] sm:$0xf] %vm4322, %v4496
      %v4501 = vpack.c.bf16 %v4301, %v4300
      %v4502 = vpack.c.bf16 %v4302, %v4302
      %v4505 = vunpack.c.l.b16 %v4501
      %v4506 = vunpack.c.h.b16 %v4501
      %v4507 = vunpack.c.l.b16 %v4502
      %v4508 = vpack.c.b16 %v4505, %v4505
      %v4509 = vpack.c.b16 %v4506, %v4506
      %v4510 = vpack.c.b16 %v4507, %v4507
      %v4511 = vrot.slane %v4508, 6
      %v4512 = vrot.slane %v4511, 4
      %v4513 = vrot.slane %v4509, 6
      %v4514 = vsel %vm4361, %v4512, %v4513
      %v4515 = vrot.slane %v4513, 4
      %v4516 = vrot.slane %v4510, 6
      %v4517 = vsel %vm4361, %v4515, %v4516
      %4520 = vst.msk [vmem:[%s221 + $0x50] sm:$0xf] %vm4322, %v4514
      %4521 = vst.msk [vmem:[%s221 + $0x54] sm:$0xf] %vm4322, %v4517
      %v4522 = vpack.c.bf16 %v4303, %v4302
      %v4523 = vpack.c.bf16 %v4304, %v4304
      %v4526 = vunpack.c.l.b16 %v4522
      %v4527 = vunpack.c.h.b16 %v4522
      %v4528 = vunpack.c.l.b16 %v4523
      %v4529 = vpack.c.b16 %v4526, %v4526
      %v4530 = vpack.c.b16 %v4527, %v4527
      %v4531 = vpack.c.b16 %v4528, %v4528
      %v4532 = vrot.slane %v4529, 7
      %v4533 = vrot.slane %v4532, 4
      %v4534 = vrot.slane %v4530, 7
      %v4535 = vsel %vm4385, %v4533, %v4534
      %v4536 = vrot.slane %v4534, 4
      %v4537 = vrot.slane %v4531, 7
      %v4538 = vsel %vm4385, %v4536, %v4537
      %4541 = vst.msk [vmem:[%s221 + $0x58] sm:$0xf] %vm4322, %v4535
      %4542 = vst.msk [vmem:[%s221 + $0x5c] sm:$0xf] %vm4322, %v4538
      %v4543 = vpack.c.bf16 %v4306, %v4305
      %v4545 = vunpack.c.l.b16 %v4543
      %v4546 = vunpack.c.h.b16 %v4543
      %v4547 = vpack.c.b16 %v4545, %v4545
      %v4548 = vpack.c.b16 %v4546, %v4546
      %4551 = vst.msk [vmem:[%s221 + $0x60] sm:$0xf] %vm4322, %v4547
      %4552 = vst.msk [vmem:[%s221 + $0x64] sm:$0xf] %vm4322, %v4548
      %v4553 = vpack.c.bf16 %v4308, %v4307
      %v4554 = vpack.c.bf16 %v4309, %v4309
      %v4557 = vunpack.c.l.b16 %v4553
      %v4558 = vunpack.c.h.b16 %v4553
      %v4559 = vunpack.c.l.b16 %v4554
      %v4560 = vpack.c.b16 %v4557, %v4557
      %v4561 = vpack.c.b16 %v4558, %v4558
      %v4562 = vpack.c.b16 %v4559, %v4559
      %v4563 = vrot.slane %v4560, 5
      %v4564 = vrot.slane %v4563, 4
      %v4565 = vrot.slane %v4561, 5
      %v4566 = vsel %vm4337, %v4564, %v4565
      %v4567 = vrot.slane %v4565, 4
      %v4568 = vrot.slane %v4562, 5
      %v4569 = vsel %vm4337, %v4567, %v4568
      %4572 = vst.msk [vmem:[%s221 + $0x68] sm:$0xf] %vm4322, %v4566
      %4573 = vst.msk [vmem:[%s221 + $0x6c] sm:$0xf] %vm4322, %v4569
      %v4574 = vpack.c.bf16 %v4310, %v4309
      %v4575 = vpack.c.bf16 %v4311, %v4311
      %v4578 = vunpack.c.l.b16 %v4574
      %v4579 = vunpack.c.h.b16 %v4574
      %v4580 = vunpack.c.l.b16 %v4575
      %v4581 = vpack.c.b16 %v4578, %v4578
      %v4582 = vpack.c.b16 %v4579, %v4579
      %v4583 = vpack.c.b16 %v4580, %v4580
      %v4584 = vrot.slane %v4581, 6
      %v4585 = vrot.slane %v4584, 4
      %v4586 = vrot.slane %v4582, 6
      %v4587 = vsel %vm4361, %v4585, %v4586
      %v4588 = vrot.slane %v4586, 4
      %v4589 = vrot.slane %v4583, 6
      %v4590 = vsel %vm4361, %v4588, %v4589
      %4593 = vst.msk [vmem:[%s221 + $0x70] sm:$0xf] %vm4322, %v4587
      %4594 = vst.msk [vmem:[%s221 + $0x74] sm:$0xf] %vm4322, %v4590
      %v4595 = vpack.c.bf16 %v4312, %v4311
      %v4596 = vpack.c.bf16 %v4313, %v4313
      %v4599 = vunpack.c.l.b16 %v4595
      %v4600 = vunpack.c.h.b16 %v4595
      %v4601 = vunpack.c.l.b16 %v4596
      %v4602 = vpack.c.b16 %v4599, %v4599
      %v4603 = vpack.c.b16 %v4600, %v4600
      %v4604 = vpack.c.b16 %v4601, %v4601
      %v4605 = vrot.slane %v4602, 7
      %v4606 = vrot.slane %v4605, 4
      %v4607 = vrot.slane %v4603, 7
      %v4608 = vsel %vm4385, %v4606, %v4607
      %v4609 = vrot.slane %v4607, 4
      %v4610 = vrot.slane %v4604, 7
      %v4611 = vsel %vm4385, %v4609, %v4610
      %4614 = vst.msk [vmem:[%s221 + $0x78] sm:$0xf] %vm4322, %v4608
      %4615 = vst.msk [vmem:[%s221 + $0x7c] sm:$0xf] %vm4322, %v4611
      %p4616 = scmp.lt.s32.totalorder %s18, 1
      %s4617 = scalar_select %p4616, %s18, 1
      %p4618 = scmp.lt.s32.totalorder %s19, 0
      %s4619 = scalar_select %p4618, %s19, 0
      %s4620 = smul.addr %s4617, 32
      %s4621 = sadd.s32 %s4619, %s4620
      %s4622 = smul.addr %s4621, 4
      %s4623 = scalar_lea.vmem %s3, %s4622
      // Predicated region
      $region33: #{tpu_custom_call.1} parent=31 // pred_check
        %p4624 = pneg %p124
      $region34: #{tpu_custom_call.1} parent=31 // pred_check_branch
        %4626 = sbr.rel (%p4624) target = $region36
      $region35: #{tpu_custom_call.1} parent=31 // pred_region
        _
      $region36: #{tpu_custom_call.1} parent=31 // pred_fallthru
        _
    $region32: #{tpu_custom_call.1} parent=5 // pred_fallthru
      _
    %p4627 = scmp.le.s32.totalorder 2, %s9
    // Predicated region
    $region37: #{tpu_custom_call.1} parent=5 // pred_check
      %p4628 = pneg %p4627
    $region38: #{tpu_custom_call.1} parent=5 // pred_check_branch
      %4630 = sbr.rel (%p4628) target = $region40
    $region39: #{tpu_custom_call.1} parent=5 // pred_region
      %s4631 = ssub.s32 %s9, 2
      // Predicated region
      $region41: #{tpu_custom_call.1} parent=39 // pred_check
        %p4632 = pneg %p130
      $region42: #{tpu_custom_call.1} parent=39 // pred_check_branch
        %4634 = sbr.rel (%p4632) target = $region44
      $region43: #{tpu_custom_call.1} parent=39 // pred_region
        %p4635 = scmp.lt.s32.totalorder %s20, 1
        %s4636 = scalar_select %p4635, %s20, 1
        %p4637 = scmp.lt.s32.totalorder %s21, 0
        %s4638 = scalar_select %p4637, %s21, 0
        %s4639 = smul.addr %s4636, 32
        %s4640 = sadd.s32 %s4638, %s4639
        %s4641 = smul.addr %s4640, 4
        %s4642 = scalar_lea.vmem %s3, %s4641
      $region44: #{tpu_custom_call.1} parent=39 // pred_fallthru
        _
    $region40: #{tpu_custom_call.1} parent=5 // pred_fallthru
      _
  $region6: #{tpu_custom_call.1} parent=0 // loop_footer
    %s13 = sadd.s32 1, %s9
  $region7: #{tpu_custom_call.1} parent=0 // loop_footer_branch
    %8 = sbr.rel target = $region3
  $region8: #{tpu_custom_call.1} parent=0 // loop_exit
    _

</llo_original>
